<compile_context>
chip_gen: v7x
topology: tpu7x:2x2x1
jax: 0.10.0
libtpu: 0.0.40
codegen_flags: <defaults>
</compile_context>

<pallas_src>
import numpy as np

import jax
import jax.numpy as jnp
from jax.experimental import pallas as pl
from jax.experimental.pallas import tpu as pltpu

_LANES = 128  # classifier output padded to one full lane group


# ----------------------------------------------------------------------------
# Wrapper-side construction of matmul-form conv / pooling operands (run once).
# ----------------------------------------------------------------------------
def _conv_shift_mats(w, w_in, pad):
    """HWIO (3,3,Ci,Co) conv weight -> 3 'width-shift' matmul weights.

    mats[kh][wi*Ci + ci, wo*Co + co] = w[kh, wi-wo+pad, ci, co] (0 if OOB), so a
    3x3 conv on an (H, W*Ci) activation is  out = sum_kh RowShift_kh @ (x @ mats[kh]).
    Width-direction zero padding is free (missing terms).
    """
    _, _, ci, co = w.shape
    w_out = w_in - 2 + 2 * pad
    wi = np.arange(w_in)[:, None]
    wo = np.arange(w_out)[None, :]
    mats = []
    for kh in range(3):
        m = jnp.zeros((w_in, ci, w_out, co), jnp.float32)
        for kw in range(3):
            mask = jnp.asarray((wi == wo + kw - pad).astype(np.float32))
            m = m + mask[:, None, :, None] * w[kh, kw].astype(jnp.float32)[None, :, None, :]
        mats.append(m.reshape(w_in * ci, w_out * co))
    return jnp.stack(mats, axis=0)                    # (3, w_in*Ci, w_out*Co)


def _pool_col_mats(w_in, c):
    """Exact 0/1 selectors implementing the width half of MaxPool2d(2) as matmuls."""
    w_out = w_in // 2
    j = np.arange(w_in * c)[:, None]
    k = np.arange(w_out * c)[None, :]
    base = (k // c) * (2 * c) + (k % c)               # column of (w=2w', c)
    even = (j == base).astype(np.float32)
    odd = (j == base + c).astype(np.float32)
    return jnp.asarray(np.stack([even, odd], axis=0))  # (2, w_in*c, w_out*c)


def _bias_row(b, w_out):
    """Per-channel bias tiled into one (1, w_out*Co) row for the (H, W*C) layout."""
    return jnp.tile(b.astype(jnp.float32), w_out).reshape(1, -1)


def prepare_params(p, spatial=28):
    """Fold BN + biases and build the matmul-form conv weights (runs once)."""
    f = p["conv1_w"].shape[-1]

    # Fold BatchNorm2d (inference): BN(conv(x)+b) = conv(x; w*s) + (b*s + t).
    s = p["bn_gamma"] / jnp.sqrt(p["bn_var"] + 1e-5)
    t = p["bn_beta"] - p["bn_mean"] * s
    w5 = p["conv5_w"] * s[None, None, None, :]
    b5 = p["conv5_b"] * s + t

    # Spatial plan (square input): 28 ->28 ->14 ->12 ->6 ->4 ->2 ->2 ->1
    wA = spatial            # conv1 (pad=1) keeps size
    wB = wA // 2            # pool1
    wC = wB - 2             # conv2 (pad=0)
    wD = wC // 2            # pool2
    wE = wD - 2             # conv3
    wF = wE - 2             # conv4; conv5 (pad=1) keeps size
    wG = wF // 2            # pool3
    assert wG == 1, "agg = MaxPool2d((1,1)) identity assumes 28x28 inputs"

    return {
        "mk1": _conv_shift_mats(p["conv1_w"], wA, 1), "br1": _bias_row(p["conv1_b"], wA),
        "pc1": _pool_col_mats(wA, f),
        "mk2": _conv_shift_mats(p["conv2_w"], wB, 0), "br2": _bias_row(p["conv2_b"], wC),
        "pc2": _pool_col_mats(wC, f),
        "mk3": _conv_shift_mats(p["conv3_w"], wD, 0), "br3": _bias_row(p["conv3_b"], wE),
        "mk4": _conv_shift_mats(p["conv4_w"], wE, 0), "br4": _bias_row(p["conv4_b"], wF),
        "mk5": _conv_shift_mats(w5, wF, 1),           "br5": _bias_row(b5, wF),
        "pc3": _pool_col_mats(wF, f),
        "fw1": p["fc1_w"].astype(jnp.float32), "fb1": p["fc1_b"].reshape(1, -1).astype(jnp.float32),
        "fw2": p["fc2_w"].astype(jnp.float32), "fb2": p["fc2_b"].reshape(1, -1).astype(jnp.float32),
        "fw3": p["fc3_w"].astype(jnp.float32), "fb3": p["fc3_b"].reshape(1, -1).astype(jnp.float32),
    }


# ----------------------------------------------------------------------------
# Batch-dependent block-diagonal row selectors (0/1 matmul operands).
# Built wrapper-side with numpy; under jit they are baked-in constants.
# ----------------------------------------------------------------------------
def _batch_selectors(batch, spatial=28):
    hA = spatial; hB = hA // 2; hC = hB - 2; hD = hC // 2
    hE = hD - 2; hF = hE - 2; hG = hF // 2
    eye = np.eye(batch, dtype=np.float32)

    def shift(h_out, h_in, off):
        # S[i, j] = 1 iff j == i + off, block-diagonal per image.
        base = (np.arange(h_in)[None, :] == np.arange(h_out)[:, None] + off).astype(np.float32)
        return np.kron(eye, base)                      # (B*h_out, B*h_in)

    def stride2(h_out, h_in, par):
        # S[i, j] = 1 iff j == 2*i + par, block-diagonal per image.
        base = (np.arange(h_in)[None, :] == 2 * np.arange(h_out)[:, None] + par).astype(np.float32)
        return np.kron(eye, base)                      # (B*h_out, B*h_in)

    return {
        # pad=1 convs: center tap (kh=1) is an identity row-shift, skipped in-kernel.
        "rs1": jnp.asarray(np.stack([shift(hA, hA, -1), shift(hA, hA, 1)])),
        "pr1": jnp.asarray(np.stack([stride2(hB, hA, 0), stride2(hB, hA, 1)])),
        "rs2": jnp.asarray(np.stack([shift(hC, hB, k) for k in range(3)])),
        "pr2": jnp.asarray(np.stack([stride2(hD, hC, 0), stride2(hD, hC, 1)])),
        "rs3": jnp.asarray(np.stack([shift(hE, hD, k) for k in range(3)])),
        "rs4": jnp.asarray(np.stack([shift(hF, hE, k) for k in range(3)])),
        "rs5": jnp.asarray(np.stack([shift(hF, hF, -1), shift(hF, hF, 1)])),
        "pr3": jnp.asarray(np.stack([stride2(hG, hF, 0), stride2(hG, hF, 1)])),
    }


# ----------------------------------------------------------------------------
# The single fused forward-pass kernel (whole batch, everything in VMEM).
# ----------------------------------------------------------------------------
def _cnn_fused_kernel(x_ref,
                      rs1_ref, mk1_ref, br1_ref, pr1_ref, pc1_ref,
                      rs2_ref, mk2_ref, br2_ref, pr2_ref, pc2_ref,
                      rs3_ref, mk3_ref, br3_ref,
                      rs4_ref, mk4_ref, br4_ref,
                      rs5_ref, mk5_ref, br5_ref,
                      pr3_ref, pc3_ref,
                      fw1_ref, fb1_ref, fw2_ref, fb2_ref, fw3_ref, fb3_ref,
                      o_ref):
    def mm(a, b):
        return jnp.dot(a, b, preferred_element_type=jnp.float32)

    def conv_pad1(x, rs_ref, mk_ref, br_ref):
        # kh=0 -> row offset -1 (rs[0]); kh=1 -> identity; kh=2 -> +1 (rs[1]).
        y = mm(rs_ref[0], mm(x, mk_ref[0]))
        y = y + mm(x, mk_ref[1])
        y = y + mm(rs_ref[1], mm(x, mk_ref[2]))
        return jnp.maximum(y + br_ref[...], 0.0)

    def conv_pad0(x, rs_ref, mk_ref, br_ref):
        y = mm(rs_ref[0], mm(x, mk_ref[0]))
        y = y + mm(rs_ref[1], mm(x, mk_ref[1]))
        y = y + mm(rs_ref[2], mm(x, mk_ref[2]))
        return jnp.maximum(y + br_ref[...], 0.0)

    def pool(x, pr_ref, pc_ref):
        r = jnp.maximum(mm(pr_ref[0], x), mm(pr_ref[1], x))             # H direction
        return jnp.maximum(mm(r, pc_ref[0]), mm(r, pc_ref[1]))          # W direction

    a = x_ref[...]                                       # (B*28, 28)    Ci=1
    a = conv_pad1(a, rs1_ref, mk1_ref, br1_ref)          # (B*28, 28*F)
    a = pool(a, pr1_ref, pc1_ref)                        # (B*14, 14*F)
    a = conv_pad0(a, rs2_ref, mk2_ref, br2_ref)          # (B*12, 12*F)
    a = pool(a, pr2_ref, pc2_ref)                        # (B*6,  6*F)
    a = conv_pad0(a, rs3_ref, mk3_ref, br3_ref)          # (B*4,  4*F)
    a = conv_pad0(a, rs4_ref, mk4_ref, br4_ref)          # (B*2,  2*F)
    a = conv_pad1(a, rs5_ref, mk5_ref, br5_ref)          # (B*2,  2*F)  BN folded in
    feat = pool(a, pr3_ref, pc3_ref)                     # (B, F)
    # agg = MaxPool2d((1,1)) on a 1x1 map -> identity; Flatten -> (B, F).
    # Dropout(p=0.25) layers are identity in inference mode.
    h = jnp.maximum(mm(feat, fw1_ref[...]) + fb1_ref[...], 0.0)   # (B, units1)
    h = jnp.maximum(mm(h, fw2_ref[...]) + fb2_ref[...], 0.0)      # (B, units2)
    o_ref[...] = mm(h, fw3_ref[...]) + fb3_ref[...]               # (B, 128) lane-dense


def cnn_forward(x_nchw, prep):
    """Forward pass. x_nchw: (B, 1, H, W) like PyTorch; returns (B, 10) logits."""
    B, C, H, W = x_nchw.shape
    assert C == 1 and H == W, "CNN spec: single input channel, square images"
    x2d = x_nchw.reshape(B * H, W).astype(jnp.float32)   # (B*H, W*Ci) layout, Ci=1

    sel = _batch_selectors(B, spatial=H)

    # Lane-pad the classifier so the kernel's single HBM store is unmasked.
    ncls = prep["fw3"].shape[1]
    assert ncls <= _LANES
    fw3p = jnp.pad(prep["fw3"], ((0, 0), (0, _LANES - ncls)))
    fb3p = jnp.pad(prep["fb3"], ((0, 0), (0, _LANES - ncls)))

    args = (x2d,
            sel["rs1"], prep["mk1"], prep["br1"], sel["pr1"], prep["pc1"],
            sel["rs2"], prep["mk2"], prep["br2"], sel["pr2"], prep["pc2"],
            sel["rs3"], prep["mk3"], prep["br3"],
            sel["rs4"], prep["mk4"], prep["br4"],
            sel["rs5"], prep["mk5"], prep["br5"],
            sel["pr3"], prep["pc3"],
            prep["fw1"], prep["fb1"], prep["fw2"], prep["fb2"], fw3p, fb3p)
    vmem = pl.BlockSpec(memory_space=pltpu.MemorySpace.VMEM)
    out = pl.pallas_call(
        _cnn_fused_kernel,
        out_shape=jax.ShapeDtypeStruct((B, _LANES), jnp.float32),
        in_specs=[vmem] * len(args),
        out_specs=vmem,
        compiler_params=pltpu.CompilerParams(vmem_limit_bytes=32 * 1024 * 1024),
    )(*args)
    return out[:, :ncls]


# ----------------------------------------------------------------------------
# Parameters (deterministic synthetic init, shapes from CNN.__init__).
# Conv weights HWIO (3,3,Ci,Co); Linear weights (in_features, out_features).
# ----------------------------------------------------------------------------
def init_params(key, filters=8, units1=32, units2=16):
    ks = jax.random.split(key, 16)

    def w(k, shape, scale=0.1):
        return scale * jax.random.normal(k, shape, dtype=jnp.float32)

    return {
        "conv1_w": w(ks[0], (3, 3, 1, filters)), "conv1_b": w(ks[1], (filters,)),
        "conv2_w": w(ks[2], (3, 3, filters, filters)), "conv2_b": w(ks[3], (filters,)),
        "conv3_w": w(ks[4], (3, 3, filters, filters)), "conv3_b": w(ks[5], (filters,)),
        "conv4_w": w(ks[6], (3, 3, filters, filters)), "conv4_b": w(ks[7], (filters,)),
        "conv5_w": w(ks[8], (3, 3, filters, filters)), "conv5_b": w(ks[9], (filters,)),
        # BatchNorm2d default init / running stats.
        "bn_gamma": jnp.ones((filters,), jnp.float32),
        "bn_beta": jnp.zeros((filters,), jnp.float32),
        "bn_mean": jnp.zeros((filters,), jnp.float32),
        "bn_var": jnp.ones((filters,), jnp.float32),
        "fc1_w": w(ks[10], (filters, units1)), "fc1_b": w(ks[11], (units1,)),
        "fc2_w": w(ks[12], (units1, units2)), "fc2_b": w(ks[13], (units2,)),
        "fc3_w": w(ks[14], (units2, 10)), "fc3_b": w(ks[15], (10,)),
    }


# ----------------------------------------------------------------------------
# Pure-JAX reference (inference semantics) used as a correctness cross-check.
# ----------------------------------------------------------------------------
def _reference_forward(x_nchw, p):
    x = jnp.transpose(x_nchw, (0, 2, 3, 1)).astype(jnp.float32)   # NHWC

    def conv(y, w, b, pad):
        y = jax.lax.conv_general_dilated(
            y, w, window_strides=(1, 1), padding=[(pad, pad), (pad, pad)],
            dimension_numbers=("NHWC", "HWIO", "NHWC"))
        return jax.nn.relu(y + b)

    def pool(y):
        return jax.lax.reduce_window(y, -jnp.inf, jax.lax.max,
                                     (1, 2, 2, 1), (1, 2, 2, 1), "VALID")

    y = pool(conv(x, p["conv1_w"], p["conv1_b"], 1))
    y = pool(conv(y, p["conv2_w"], p["conv2_b"], 0))
    y = conv(y, p["conv3_w"], p["conv3_b"], 0)
    y = conv(y, p["conv4_w"], p["conv4_b"], 0)
    s = p["bn_gamma"] / jnp.sqrt(p["bn_var"] + 1e-5)
    t = p["bn_beta"] - p["bn_mean"] * s
    y = jax.lax.conv_general_dilated(
        y, p["conv5_w"], (1, 1), [(1, 1), (1, 1)],
        dimension_numbers=("NHWC", "HWIO", "NHWC"))
    y = jax.nn.relu((y + p["conv5_b"]) * s + t)
    y = pool(y)
    feat = jnp.max(y, axis=(1, 2))                 # agg (1x1) + Flatten -> (B, F)
    h = jax.nn.relu(feat @ p["fc1_w"] + p["fc1_b"])
    h = jax.nn.relu(h @ p["fc2_w"] + p["fc2_b"])
    return h @ p["fc3_w"] + p["fc3_b"]


if __name__ == "__main__":
    key = jax.random.PRNGKey(0)
    k_x, k_p = jax.random.split(key)
    x = jax.random.normal(k_x, (2, 1, 28, 28), dtype=jnp.float32)   # NCHW like PyTorch
    params = init_params(k_p, filters=8, units1=32, units2=16)
    prep = prepare_params(params)          # fold BN / biases, build matmul-form weights

    fwd = jax.jit(cnn_forward)
    logits = jax.block_until_ready(fwd(x, prep))

    assert logits.shape == (2, 10), logits.shape
    assert bool(jnp.all(jnp.isfinite(logits)))

    ref = _reference_forward(x, params)
    err = float(jnp.max(jnp.abs(logits - ref)))
    assert err < 2e-2, f"mismatch vs plain-JAX reference: max|diff|={err}"

    print("KERNEL_OK")
</pallas_src>

<mosaic_0001>
module attributes {stable_mosaic.version = 11 : i64} {
  func.func @_cnn_fused_kernel(%arg0: memref<56x28xf32, #tpu.memory_space<vmem>>, %arg1: memref<2x56x56xf32, #tpu.memory_space<vmem>>, %arg2: memref<3x28x224xf32, #tpu.memory_space<vmem>>, %arg3: memref<1x224xf32, #tpu.memory_space<vmem>>, %arg4: memref<2x28x56xf32, #tpu.memory_space<vmem>>, %arg5: memref<2x224x112xf32, #tpu.memory_space<vmem>>, %arg6: memref<3x24x28xf32, #tpu.memory_space<vmem>>, %arg7: memref<3x112x96xf32, #tpu.memory_space<vmem>>, %arg8: memref<1x96xf32, #tpu.memory_space<vmem>>, %arg9: memref<2x12x24xf32, #tpu.memory_space<vmem>>, %arg10: memref<2x96x48xf32, #tpu.memory_space<vmem>>, %arg11: memref<3x8x12xf32, #tpu.memory_space<vmem>>, %arg12: memref<3x48x32xf32, #tpu.memory_space<vmem>>, %arg13: memref<1x32xf32, #tpu.memory_space<vmem>>, %arg14: memref<3x4x8xf32, #tpu.memory_space<vmem>>, %arg15: memref<3x32x16xf32, #tpu.memory_space<vmem>>, %arg16: memref<1x16xf32, #tpu.memory_space<vmem>>, %arg17: memref<2x4x4xf32, #tpu.memory_space<vmem>>, %arg18: memref<3x16x16xf32, #tpu.memory_space<vmem>>, %arg19: memref<1x16xf32, #tpu.memory_space<vmem>>, %arg20: memref<2x2x4xf32, #tpu.memory_space<vmem>>, %arg21: memref<2x16x8xf32, #tpu.memory_space<vmem>>, %arg22: memref<8x32xf32, #tpu.memory_space<vmem>>, %arg23: memref<1x32xf32, #tpu.memory_space<vmem>>, %arg24: memref<32x16xf32, #tpu.memory_space<vmem>>, %arg25: memref<1x16xf32, #tpu.memory_space<vmem>>, %arg26: memref<16x128xf32, #tpu.memory_space<vmem>>, %arg27: memref<1x128xf32, #tpu.memory_space<vmem>>, %arg28: memref<2x128xf32, #tpu.memory_space<vmem>>) attributes {dimension_semantics = [], scalar_prefetch = 0 : i64, scratch_operands = 0 : i64, tpu.core_type = #tpu.core_type<tc>} {
    %c0 = arith.constant 0 : index
    %c0_0 = arith.constant 0 : index
    %0 = vector.load %arg0[%c0, %c0_0] : memref<56x28xf32, #tpu.memory_space<vmem>>, vector<56x28xf32>
    %c0_1 = arith.constant 0 : index
    %c0_2 = arith.constant 0 : index
    %c0_3 = arith.constant 0 : index
    %1 = vector.load %arg1[%c0_1, %c0_2, %c0_3] : memref<2x56x56xf32, #tpu.memory_space<vmem>>, vector<1x56x56xf32>
    %2 = vector.shape_cast %1 : vector<1x56x56xf32> to vector<56x56xf32>
    %c0_4 = arith.constant 0 : index
    %c0_5 = arith.constant 0 : index
    %c0_6 = arith.constant 0 : index
    %3 = vector.load %arg2[%c0_4, %c0_5, %c0_6] : memref<3x28x224xf32, #tpu.memory_space<vmem>>, vector<1x28x224xf32>
    %4 = vector.shape_cast %3 : vector<1x28x224xf32> to vector<28x224xf32>
    %cst = arith.constant dense<0.000000e+00> : vector<56x224xf32>
    %5 = tpu.matmul %0, %4, %cst {dimension_numbers = #tpu.dot_dimension_numbers<[1], [0], [0], [1], [0, 0, 1, 1], [], []>} : vector<56x28xf32>, vector<28x224xf32>, vector<56x224xf32> -> vector<56x224xf32>
    %cst_7 = arith.constant dense<0.000000e+00> : vector<56x224xf32>
    %6 = tpu.matmul %2, %5, %cst_7 {dimension_numbers = #tpu.dot_dimension_numbers<[1], [0], [0], [1], [0, 0, 1, 1], [], []>} : vector<56x56xf32>, vector<56x224xf32>, vector<56x224xf32> -> vector<56x224xf32>
    %c1 = arith.constant 1 : index
    %c0_8 = arith.constant 0 : index
    %c0_9 = arith.constant 0 : index
    %7 = vector.load %arg2[%c1, %c0_8, %c0_9] : memref<3x28x224xf32, #tpu.memory_space<vmem>>, vector<1x28x224xf32>
    %8 = vector.shape_cast %7 : vector<1x28x224xf32> to vector<28x224xf32>
    %cst_10 = arith.constant dense<0.000000e+00> : vector<56x224xf32>
    %9 = tpu.matmul %0, %8, %cst_10 {dimension_numbers = #tpu.dot_dimension_numbers<[1], [0], [0], [1], [0, 0, 1, 1], [], []>} : vector<56x28xf32>, vector<28x224xf32>, vector<56x224xf32> -> vector<56x224xf32>
    %10 = arith.addf %6, %9 : vector<56x224xf32>
    %c1_11 = arith.constant 1 : index
    %c0_12 = arith.constant 0 : index
    %c0_13 = arith.constant 0 : index
    %11 = vector.load %arg1[%c1_11, %c0_12, %c0_13] : memref<2x56x56xf32, #tpu.memory_space<vmem>>, vector<1x56x56xf32>
    %12 = vector.shape_cast %11 : vector<1x56x56xf32> to vector<56x56xf32>
    %c2 = arith.constant 2 : index
    %c0_14 = arith.constant 0 : index
    %c0_15 = arith.constant 0 : index
    %13 = vector.load %arg2[%c2, %c0_14, %c0_15] : memref<3x28x224xf32, #tpu.memory_space<vmem>>, vector<1x28x224xf32>
    %14 = vector.shape_cast %13 : vector<1x28x224xf32> to vector<28x224xf32>
    %cst_16 = arith.constant dense<0.000000e+00> : vector<56x224xf32>
    %15 = tpu.matmul %0, %14, %cst_16 {dimension_numbers = #tpu.dot_dimension_numbers<[1], [0], [0], [1], [0, 0, 1, 1], [], []>} : vector<56x28xf32>, vector<28x224xf32>, vector<56x224xf32> -> vector<56x224xf32>
    %cst_17 = arith.constant dense<0.000000e+00> : vector<56x224xf32>
    %16 = tpu.matmul %12, %15, %cst_17 {dimension_numbers = #tpu.dot_dimension_numbers<[1], [0], [0], [1], [0, 0, 1, 1], [], []>} : vector<56x56xf32>, vector<56x224xf32>, vector<56x224xf32> -> vector<56x224xf32>
    %17 = arith.addf %10, %16 : vector<56x224xf32>
    %c0_18 = arith.constant 0 : index
    %c0_19 = arith.constant 0 : index
    %18 = vector.load %arg3[%c0_18, %c0_19] : memref<1x224xf32, #tpu.memory_space<vmem>>, vector<1x224xf32>
    %19 = vector.broadcast %18 : vector<1x224xf32> to vector<56x224xf32>
    %20 = arith.addf %17, %19 : vector<56x224xf32>
    %cst_20 = arith.constant 0.000000e+00 : f32
    %21 = vector.broadcast %cst_20 : f32 to vector<56x224xf32>
    %22 = arith.maximumf %20, %21 : vector<56x224xf32>
    %c0_21 = arith.constant 0 : index
    %c0_22 = arith.constant 0 : index
    %c0_23 = arith.constant 0 : index
    %23 = vector.load %arg4[%c0_21, %c0_22, %c0_23] : memref<2x28x56xf32, #tpu.memory_space<vmem>>, vector<1x28x56xf32>
    %24 = vector.shape_cast %23 : vector<1x28x56xf32> to vector<28x56xf32>
    %cst_24 = arith.constant dense<0.000000e+00> : vector<28x224xf32>
    %25 = tpu.matmul %24, %22, %cst_24 {dimension_numbers = #tpu.dot_dimension_numbers<[1], [0], [0], [1], [0, 0, 1, 1], [], []>} : vector<28x56xf32>, vector<56x224xf32>, vector<28x224xf32> -> vector<28x224xf32>
    %c1_25 = arith.constant 1 : index
    %c0_26 = arith.constant 0 : index
    %c0_27 = arith.constant 0 : index
    %26 = vector.load %arg4[%c1_25, %c0_26, %c0_27] : memref<2x28x56xf32, #tpu.memory_space<vmem>>, vector<1x28x56xf32>
    %27 = vector.shape_cast %26 : vector<1x28x56xf32> to vector<28x56xf32>
    %cst_28 = arith.constant dense<0.000000e+00> : vector<28x224xf32>
    %28 = tpu.matmul %27, %22, %cst_28 {dimension_numbers = #tpu.dot_dimension_numbers<[1], [0], [0], [1], [0, 0, 1, 1], [], []>} : vector<28x56xf32>, vector<56x224xf32>, vector<28x224xf32> -> vector<28x224xf32>
    %29 = arith.maximumf %25, %28 : vector<28x224xf32>
    %c0_29 = arith.constant 0 : index
    %c0_30 = arith.constant 0 : index
    %c0_31 = arith.constant 0 : index
    %30 = vector.load %arg5[%c0_29, %c0_30, %c0_31] : memref<2x224x112xf32, #tpu.memory_space<vmem>>, vector<1x224x112xf32>
    %31 = vector.shape_cast %30 : vector<1x224x112xf32> to vector<224x112xf32>
    %cst_32 = arith.constant dense<0.000000e+00> : vector<28x112xf32>
    %32 = tpu.matmul %29, %31, %cst_32 {dimension_numbers = #tpu.dot_dimension_numbers<[1], [0], [0], [1], [0, 0, 1, 1], [], []>} : vector<28x224xf32>, vector<224x112xf32>, vector<28x112xf32> -> vector<28x112xf32>
    %c1_33 = arith.constant 1 : index
    %c0_34 = arith.constant 0 : index
    %c0_35 = arith.constant 0 : index
    %33 = vector.load %arg5[%c1_33, %c0_34, %c0_35] : memref<2x224x112xf32, #tpu.memory_space<vmem>>, vector<1x224x112xf32>
    %34 = vector.shape_cast %33 : vector<1x224x112xf32> to vector<224x112xf32>
    %cst_36 = arith.constant dense<0.000000e+00> : vector<28x112xf32>
    %35 = tpu.matmul %29, %34, %cst_36 {dimension_numbers = #tpu.dot_dimension_numbers<[1], [0], [0], [1], [0, 0, 1, 1], [], []>} : vector<28x224xf32>, vector<224x112xf32>, vector<28x112xf32> -> vector<28x112xf32>
    %36 = arith.maximumf %32, %35 : vector<28x112xf32>
    %c0_37 = arith.constant 0 : index
    %c0_38 = arith.constant 0 : index
    %c0_39 = arith.constant 0 : index
    %37 = vector.load %arg6[%c0_37, %c0_38, %c0_39] : memref<3x24x28xf32, #tpu.memory_space<vmem>>, vector<1x24x28xf32>
    %38 = vector.shape_cast %37 : vector<1x24x28xf32> to vector<24x28xf32>
    %c0_40 = arith.constant 0 : index
    %c0_41 = arith.constant 0 : index
    %c0_42 = arith.constant 0 : index
    %39 = vector.load %arg7[%c0_40, %c0_41, %c0_42] : memref<3x112x96xf32, #tpu.memory_space<vmem>>, vector<1x112x96xf32>
    %40 = vector.shape_cast %39 : vector<1x112x96xf32> to vector<112x96xf32>
    %cst_43 = arith.constant dense<0.000000e+00> : vector<28x96xf32>
    %41 = tpu.matmul %36, %40, %cst_43 {dimension_numbers = #tpu.dot_dimension_numbers<[1], [0], [0], [1], [0, 0, 1, 1], [], []>} : vector<28x112xf32>, vector<112x96xf32>, vector<28x96xf32> -> vector<28x96xf32>
    %cst_44 = arith.constant dense<0.000000e+00> : vector<24x96xf32>
    %42 = tpu.matmul %38, %41, %cst_44 {dimension_numbers = #tpu.dot_dimension_numbers<[1], [0], [0], [1], [0, 0, 1, 1], [], []>} : vector<24x28xf32>, vector<28x96xf32>, vector<24x96xf32> -> vector<24x96xf32>
    %c1_45 = arith.constant 1 : index
    %c0_46 = arith.constant 0 : index
    %c0_47 = arith.constant 0 : index
    %43 = vector.load %arg6[%c1_45, %c0_46, %c0_47] : memref<3x24x28xf32, #tpu.memory_space<vmem>>, vector<1x24x28xf32>
    %44 = vector.shape_cast %43 : vector<1x24x28xf32> to vector<24x28xf32>
    %c1_48 = arith.constant 1 : index
    %c0_49 = arith.constant 0 : index
    %c0_50 = arith.constant 0 : index
    %45 = vector.load %arg7[%c1_48, %c0_49, %c0_50] : memref<3x112x96xf32, #tpu.memory_space<vmem>>, vector<1x112x96xf32>
    %46 = vector.shape_cast %45 : vector<1x112x96xf32> to vector<112x96xf32>
    %cst_51 = arith.constant dense<0.000000e+00> : vector<28x96xf32>
    %47 = tpu.matmul %36, %46, %cst_51 {dimension_numbers = #tpu.dot_dimension_numbers<[1], [0], [0], [1], [0, 0, 1, 1], [], []>} : vector<28x112xf32>, vector<112x96xf32>, vector<28x96xf32> -> vector<28x96xf32>
    %cst_52 = arith.constant dense<0.000000e+00> : vector<24x96xf32>
    %48 = tpu.matmul %44, %47, %cst_52 {dimension_numbers = #tpu.dot_dimension_numbers<[1], [0], [0], [1], [0, 0, 1, 1], [], []>} : vector<24x28xf32>, vector<28x96xf32>, vector<24x96xf32> -> vector<24x96xf32>
    %49 = arith.addf %42, %48 : vector<24x96xf32>
    %c2_53 = arith.constant 2 : index
    %c0_54 = arith.constant 0 : index
    %c0_55 = arith.constant 0 : index
    %50 = vector.load %arg6[%c2_53, %c0_54, %c0_55] : memref<3x24x28xf32, #tpu.memory_space<vmem>>, vector<1x24x28xf32>
    %51 = vector.shape_cast %50 : vector<1x24x28xf32> to vector<24x28xf32>
    %c2_56 = arith.constant 2 : index
    %c0_57 = arith.constant 0 : index
    %c0_58 = arith.constant 0 : index
    %52 = vector.load %arg7[%c2_56, %c0_57, %c0_58] : memref<3x112x96xf32, #tpu.memory_space<vmem>>, vector<1x112x96xf32>
    %53 = vector.shape_cast %52 : vector<1x112x96xf32> to vector<112x96xf32>
    %cst_59 = arith.constant dense<0.000000e+00> : vector<28x96xf32>
    %54 = tpu.matmul %36, %53, %cst_59 {dimension_numbers = #tpu.dot_dimension_numbers<[1], [0], [0], [1], [0, 0, 1, 1], [], []>} : vector<28x112xf32>, vector<112x96xf32>, vector<28x96xf32> -> vector<28x96xf32>
    %cst_60 = arith.constant dense<0.000000e+00> : vector<24x96xf32>
    %55 = tpu.matmul %51, %54, %cst_60 {dimension_numbers = #tpu.dot_dimension_numbers<[1], [0], [0], [1], [0, 0, 1, 1], [], []>} : vector<24x28xf32>, vector<28x96xf32>, vector<24x96xf32> -> vector<24x96xf32>
    %56 = arith.addf %49, %55 : vector<24x96xf32>
    %c0_61 = arith.constant 0 : index
    %c0_62 = arith.constant 0 : index
    %57 = vector.load %arg8[%c0_61, %c0_62] : memref<1x96xf32, #tpu.memory_space<vmem>>, vector<1x96xf32>
    %58 = vector.broadcast %57 : vector<1x96xf32> to vector<24x96xf32>
    %59 = arith.addf %56, %58 : vector<24x96xf32>
    %cst_63 = arith.constant 0.000000e+00 : f32
    %60 = vector.broadcast %cst_63 : f32 to vector<24x96xf32>
    %61 = arith.maximumf %59, %60 : vector<24x96xf32>
    %c0_64 = arith.constant 0 : index
    %c0_65 = arith.constant 0 : index
    %c0_66 = arith.constant 0 : index
    %62 = vector.load %arg9[%c0_64, %c0_65, %c0_66] : memref<2x12x24xf32, #tpu.memory_space<vmem>>, vector<1x12x24xf32>
    %63 = vector.shape_cast %62 : vector<1x12x24xf32> to vector<12x24xf32>
    %cst_67 = arith.constant dense<0.000000e+00> : vector<12x96xf32>
    %64 = tpu.matmul %63, %61, %cst_67 {dimension_numbers = #tpu.dot_dimension_numbers<[1], [0], [0], [1], [0, 0, 1, 1], [], []>} : vector<12x24xf32>, vector<24x96xf32>, vector<12x96xf32> -> vector<12x96xf32>
    %c1_68 = arith.constant 1 : index
    %c0_69 = arith.constant 0 : index
    %c0_70 = arith.constant 0 : index
    %65 = vector.load %arg9[%c1_68, %c0_69, %c0_70] : memref<2x12x24xf32, #tpu.memory_space<vmem>>, vector<1x12x24xf32>
    %66 = vector.shape_cast %65 : vector<1x12x24xf32> to vector<12x24xf32>
    %cst_71 = arith.constant dense<0.000000e+00> : vector<12x96xf32>
    %67 = tpu.matmul %66, %61, %cst_71 {dimension_numbers = #tpu.dot_dimension_numbers<[1], [0], [0], [1], [0, 0, 1, 1], [], []>} : vector<12x24xf32>, vector<24x96xf32>, vector<12x96xf32> -> vector<12x96xf32>
    %68 = arith.maximumf %64, %67 : vector<12x96xf32>
    %c0_72 = arith.constant 0 : index
    %c0_73 = arith.constant 0 : index
    %c0_74 = arith.constant 0 : index
    %69 = vector.load %arg10[%c0_72, %c0_73, %c0_74] : memref<2x96x48xf32, #tpu.memory_space<vmem>>, vector<1x96x48xf32>
    %70 = vector.shape_cast %69 : vector<1x96x48xf32> to vector<96x48xf32>
    %cst_75 = arith.constant dense<0.000000e+00> : vector<12x48xf32>
    %71 = tpu.matmul %68, %70, %cst_75 {dimension_numbers = #tpu.dot_dimension_numbers<[1], [0], [0], [1], [0, 0, 1, 1], [], []>} : vector<12x96xf32>, vector<96x48xf32>, vector<12x48xf32> -> vector<12x48xf32>
    %c1_76 = arith.constant 1 : index
    %c0_77 = arith.constant 0 : index
    %c0_78 = arith.constant 0 : index
    %72 = vector.load %arg10[%c1_76, %c0_77, %c0_78] : memref<2x96x48xf32, #tpu.memory_space<vmem>>, vector<1x96x48xf32>
    %73 = vector.shape_cast %72 : vector<1x96x48xf32> to vector<96x48xf32>
    %cst_79 = arith.constant dense<0.000000e+00> : vector<12x48xf32>
    %74 = tpu.matmul %68, %73, %cst_79 {dimension_numbers = #tpu.dot_dimension_numbers<[1], [0], [0], [1], [0, 0, 1, 1], [], []>} : vector<12x96xf32>, vector<96x48xf32>, vector<12x48xf32> -> vector<12x48xf32>
    %75 = arith.maximumf %71, %74 : vector<12x48xf32>
    %c0_80 = arith.constant 0 : index
    %c0_81 = arith.constant 0 : index
    %c0_82 = arith.constant 0 : index
    %76 = vector.load %arg11[%c0_80, %c0_81, %c0_82] : memref<3x8x12xf32, #tpu.memory_space<vmem>>, vector<1x8x12xf32>
    %77 = vector.shape_cast %76 : vector<1x8x12xf32> to vector<8x12xf32>
    %c0_83 = arith.constant 0 : index
    %c0_84 = arith.constant 0 : index
    %c0_85 = arith.constant 0 : index
    %78 = vector.load %arg12[%c0_83, %c0_84, %c0_85] : memref<3x48x32xf32, #tpu.memory_space<vmem>>, vector<1x48x32xf32>
    %79 = vector.shape_cast %78 : vector<1x48x32xf32> to vector<48x32xf32>
    %cst_86 = arith.constant dense<0.000000e+00> : vector<12x32xf32>
    %80 = tpu.matmul %75, %79, %cst_86 {dimension_numbers = #tpu.dot_dimension_numbers<[1], [0], [0], [1], [0, 0, 1, 1], [], []>} : vector<12x48xf32>, vector<48x32xf32>, vector<12x32xf32> -> vector<12x32xf32>
    %cst_87 = arith.constant dense<0.000000e+00> : vector<8x32xf32>
    %81 = tpu.matmul %77, %80, %cst_87 {dimension_numbers = #tpu.dot_dimension_numbers<[1], [0], [0], [1], [0, 0, 1, 1], [], []>} : vector<8x12xf32>, vector<12x32xf32>, vector<8x32xf32> -> vector<8x32xf32>
    %c1_88 = arith.constant 1 : index
    %c0_89 = arith.constant 0 : index
    %c0_90 = arith.constant 0 : index
    %82 = vector.load %arg11[%c1_88, %c0_89, %c0_90] : memref<3x8x12xf32, #tpu.memory_space<vmem>>, vector<1x8x12xf32>
    %83 = vector.shape_cast %82 : vector<1x8x12xf32> to vector<8x12xf32>
    %c1_91 = arith.constant 1 : index
    %c0_92 = arith.constant 0 : index
    %c0_93 = arith.constant 0 : index
    %84 = vector.load %arg12[%c1_91, %c0_92, %c0_93] : memref<3x48x32xf32, #tpu.memory_space<vmem>>, vector<1x48x32xf32>
    %85 = vector.shape_cast %84 : vector<1x48x32xf32> to vector<48x32xf32>
    %cst_94 = arith.constant dense<0.000000e+00> : vector<12x32xf32>
    %86 = tpu.matmul %75, %85, %cst_94 {dimension_numbers = #tpu.dot_dimension_numbers<[1], [0], [0], [1], [0, 0, 1, 1], [], []>} : vector<12x48xf32>, vector<48x32xf32>, vector<12x32xf32> -> vector<12x32xf32>
    %cst_95 = arith.constant dense<0.000000e+00> : vector<8x32xf32>
    %87 = tpu.matmul %83, %86, %cst_95 {dimension_numbers = #tpu.dot_dimension_numbers<[1], [0], [0], [1], [0, 0, 1, 1], [], []>} : vector<8x12xf32>, vector<12x32xf32>, vector<8x32xf32> -> vector<8x32xf32>
    %88 = arith.addf %81, %87 : vector<8x32xf32>
    %c2_96 = arith.constant 2 : index
    %c0_97 = arith.constant 0 : index
    %c0_98 = arith.constant 0 : index
    %89 = vector.load %arg11[%c2_96, %c0_97, %c0_98] : memref<3x8x12xf32, #tpu.memory_space<vmem>>, vector<1x8x12xf32>
    %90 = vector.shape_cast %89 : vector<1x8x12xf32> to vector<8x12xf32>
    %c2_99 = arith.constant 2 : index
    %c0_100 = arith.constant 0 : index
    %c0_101 = arith.constant 0 : index
    %91 = vector.load %arg12[%c2_99, %c0_100, %c0_101] : memref<3x48x32xf32, #tpu.memory_space<vmem>>, vector<1x48x32xf32>
    %92 = vector.shape_cast %91 : vector<1x48x32xf32> to vector<48x32xf32>
    %cst_102 = arith.constant dense<0.000000e+00> : vector<12x32xf32>
    %93 = tpu.matmul %75, %92, %cst_102 {dimension_numbers = #tpu.dot_dimension_numbers<[1], [0], [0], [1], [0, 0, 1, 1], [], []>} : vector<12x48xf32>, vector<48x32xf32>, vector<12x32xf32> -> vector<12x32xf32>
    %cst_103 = arith.constant dense<0.000000e+00> : vector<8x32xf32>
    %94 = tpu.matmul %90, %93, %cst_103 {dimension_numbers = #tpu.dot_dimension_numbers<[1], [0], [0], [1], [0, 0, 1, 1], [], []>} : vector<8x12xf32>, vector<12x32xf32>, vector<8x32xf32> -> vector<8x32xf32>
    %95 = arith.addf %88, %94 : vector<8x32xf32>
    %c0_104 = arith.constant 0 : index
    %c0_105 = arith.constant 0 : index
    %96 = vector.load %arg13[%c0_104, %c0_105] : memref<1x32xf32, #tpu.memory_space<vmem>>, vector<1x32xf32>
    %97 = vector.broadcast %96 : vector<1x32xf32> to vector<8x32xf32>
    %98 = arith.addf %95, %97 : vector<8x32xf32>
    %cst_106 = arith.constant 0.000000e+00 : f32
    %99 = vector.broadcast %cst_106 : f32 to vector<8x32xf32>
    %100 = arith.maximumf %98, %99 : vector<8x32xf32>
    %c0_107 = arith.constant 0 : index
    %c0_108 = arith.constant 0 : index
    %c0_109 = arith.constant 0 : index
    %101 = vector.load %arg14[%c0_107, %c0_108, %c0_109] : memref<3x4x8xf32, #tpu.memory_space<vmem>>, vector<1x4x8xf32>
    %102 = vector.shape_cast %101 : vector<1x4x8xf32> to vector<4x8xf32>
    %c0_110 = arith.constant 0 : index
    %c0_111 = arith.constant 0 : index
    %c0_112 = arith.constant 0 : index
    %103 = vector.load %arg15[%c0_110, %c0_111, %c0_112] : memref<3x32x16xf32, #tpu.memory_space<vmem>>, vector<1x32x16xf32>
    %104 = vector.shape_cast %103 : vector<1x32x16xf32> to vector<32x16xf32>
    %cst_113 = arith.constant dense<0.000000e+00> : vector<8x16xf32>
    %105 = tpu.matmul %100, %104, %cst_113 {dimension_numbers = #tpu.dot_dimension_numbers<[1], [0], [0], [1], [0, 0, 1, 1], [], []>} : vector<8x32xf32>, vector<32x16xf32>, vector<8x16xf32> -> vector<8x16xf32>
    %cst_114 = arith.constant dense<0.000000e+00> : vector<4x16xf32>
    %106 = tpu.matmul %102, %105, %cst_114 {dimension_numbers = #tpu.dot_dimension_numbers<[1], [0], [0], [1], [0, 0, 1, 1], [], []>} : vector<4x8xf32>, vector<8x16xf32>, vector<4x16xf32> -> vector<4x16xf32>
    %c1_115 = arith.constant 1 : index
    %c0_116 = arith.constant 0 : index
    %c0_117 = arith.constant 0 : index
    %107 = vector.load %arg14[%c1_115, %c0_116, %c0_117] : memref<3x4x8xf32, #tpu.memory_space<vmem>>, vector<1x4x8xf32>
    %108 = vector.shape_cast %107 : vector<1x4x8xf32> to vector<4x8xf32>
    %c1_118 = arith.constant 1 : index
    %c0_119 = arith.constant 0 : index
    %c0_120 = arith.constant 0 : index
    %109 = vector.load %arg15[%c1_118, %c0_119, %c0_120] : memref<3x32x16xf32, #tpu.memory_space<vmem>>, vector<1x32x16xf32>
    %110 = vector.shape_cast %109 : vector<1x32x16xf32> to vector<32x16xf32>
    %cst_121 = arith.constant dense<0.000000e+00> : vector<8x16xf32>
    %111 = tpu.matmul %100, %110, %cst_121 {dimension_numbers = #tpu.dot_dimension_numbers<[1], [0], [0], [1], [0, 0, 1, 1], [], []>} : vector<8x32xf32>, vector<32x16xf32>, vector<8x16xf32> -> vector<8x16xf32>
    %cst_122 = arith.constant dense<0.000000e+00> : vector<4x16xf32>
    %112 = tpu.matmul %108, %111, %cst_122 {dimension_numbers = #tpu.dot_dimension_numbers<[1], [0], [0], [1], [0, 0, 1, 1], [], []>} : vector<4x8xf32>, vector<8x16xf32>, vector<4x16xf32> -> vector<4x16xf32>
    %113 = arith.addf %106, %112 : vector<4x16xf32>
    %c2_123 = arith.constant 2 : index
    %c0_124 = arith.constant 0 : index
    %c0_125 = arith.constant 0 : index
    %114 = vector.load %arg14[%c2_123, %c0_124, %c0_125] : memref<3x4x8xf32, #tpu.memory_space<vmem>>, vector<1x4x8xf32>
    %115 = vector.shape_cast %114 : vector<1x4x8xf32> to vector<4x8xf32>
    %c2_126 = arith.constant 2 : index
    %c0_127 = arith.constant 0 : index
    %c0_128 = arith.constant 0 : index
    %116 = vector.load %arg15[%c2_126, %c0_127, %c0_128] : memref<3x32x16xf32, #tpu.memory_space<vmem>>, vector<1x32x16xf32>
    %117 = vector.shape_cast %116 : vector<1x32x16xf32> to vector<32x16xf32>
    %cst_129 = arith.constant dense<0.000000e+00> : vector<8x16xf32>
    %118 = tpu.matmul %100, %117, %cst_129 {dimension_numbers = #tpu.dot_dimension_numbers<[1], [0], [0], [1], [0, 0, 1, 1], [], []>} : vector<8x32xf32>, vector<32x16xf32>, vector<8x16xf32> -> vector<8x16xf32>
    %cst_130 = arith.constant dense<0.000000e+00> : vector<4x16xf32>
    %119 = tpu.matmul %115, %118, %cst_130 {dimension_numbers = #tpu.dot_dimension_numbers<[1], [0], [0], [1], [0, 0, 1, 1], [], []>} : vector<4x8xf32>, vector<8x16xf32>, vector<4x16xf32> -> vector<4x16xf32>
    %120 = arith.addf %113, %119 : vector<4x16xf32>
    %c0_131 = arith.constant 0 : index
    %c0_132 = arith.constant 0 : index
    %121 = vector.load %arg16[%c0_131, %c0_132] : memref<1x16xf32, #tpu.memory_space<vmem>>, vector<1x16xf32>
    %122 = vector.broadcast %121 : vector<1x16xf32> to vector<4x16xf32>
    %123 = arith.addf %120, %122 : vector<4x16xf32>
    %cst_133 = arith.constant 0.000000e+00 : f32
    %124 = vector.broadcast %cst_133 : f32 to vector<4x16xf32>
    %125 = arith.maximumf %123, %124 : vector<4x16xf32>
    %c0_134 = arith.constant 0 : index
    %c0_135 = arith.constant 0 : index
    %c0_136 = arith.constant 0 : index
    %126 = vector.load %arg17[%c0_134, %c0_135, %c0_136] : memref<2x4x4xf32, #tpu.memory_space<vmem>>, vector<1x4x4xf32>
    %127 = vector.shape_cast %126 : vector<1x4x4xf32> to vector<4x4xf32>
    %c0_137 = arith.constant 0 : index
    %c0_138 = arith.constant 0 : index
    %c0_139 = arith.constant 0 : index
    %128 = vector.load %arg18[%c0_137, %c0_138, %c0_139] : memref<3x16x16xf32, #tpu.memory_space<vmem>>, vector<1x16x16xf32>
    %129 = vector.shape_cast %128 : vector<1x16x16xf32> to vector<16x16xf32>
    %cst_140 = arith.constant dense<0.000000e+00> : vector<4x16xf32>
    %130 = tpu.matmul %125, %129, %cst_140 {dimension_numbers = #tpu.dot_dimension_numbers<[1], [0], [0], [1], [0, 0, 1, 1], [], []>} : vector<4x16xf32>, vector<16x16xf32>, vector<4x16xf32> -> vector<4x16xf32>
    %cst_141 = arith.constant dense<0.000000e+00> : vector<4x16xf32>
    %131 = tpu.matmul %127, %130, %cst_141 {dimension_numbers = #tpu.dot_dimension_numbers<[1], [0], [0], [1], [0, 0, 1, 1], [], []>} : vector<4x4xf32>, vector<4x16xf32>, vector<4x16xf32> -> vector<4x16xf32>
    %c1_142 = arith.constant 1 : index
    %c0_143 = arith.constant 0 : index
    %c0_144 = arith.constant 0 : index
    %132 = vector.load %arg18[%c1_142, %c0_143, %c0_144] : memref<3x16x16xf32, #tpu.memory_space<vmem>>, vector<1x16x16xf32>
    %133 = vector.shape_cast %132 : vector<1x16x16xf32> to vector<16x16xf32>
    %cst_145 = arith.constant dense<0.000000e+00> : vector<4x16xf32>
    %134 = tpu.matmul %125, %133, %cst_145 {dimension_numbers = #tpu.dot_dimension_numbers<[1], [0], [0], [1], [0, 0, 1, 1], [], []>} : vector<4x16xf32>, vector<16x16xf32>, vector<4x16xf32> -> vector<4x16xf32>
    %135 = arith.addf %131, %134 : vector<4x16xf32>
    %c1_146 = arith.constant 1 : index
    %c0_147 = arith.constant 0 : index
    %c0_148 = arith.constant 0 : index
    %136 = vector.load %arg17[%c1_146, %c0_147, %c0_148] : memref<2x4x4xf32, #tpu.memory_space<vmem>>, vector<1x4x4xf32>
    %137 = vector.shape_cast %136 : vector<1x4x4xf32> to vector<4x4xf32>
    %c2_149 = arith.constant 2 : index
    %c0_150 = arith.constant 0 : index
    %c0_151 = arith.constant 0 : index
    %138 = vector.load %arg18[%c2_149, %c0_150, %c0_151] : memref<3x16x16xf32, #tpu.memory_space<vmem>>, vector<1x16x16xf32>
    %139 = vector.shape_cast %138 : vector<1x16x16xf32> to vector<16x16xf32>
    %cst_152 = arith.constant dense<0.000000e+00> : vector<4x16xf32>
    %140 = tpu.matmul %125, %139, %cst_152 {dimension_numbers = #tpu.dot_dimension_numbers<[1], [0], [0], [1], [0, 0, 1, 1], [], []>} : vector<4x16xf32>, vector<16x16xf32>, vector<4x16xf32> -> vector<4x16xf32>
    %cst_153 = arith.constant dense<0.000000e+00> : vector<4x16xf32>
    %141 = tpu.matmul %137, %140, %cst_153 {dimension_numbers = #tpu.dot_dimension_numbers<[1], [0], [0], [1], [0, 0, 1, 1], [], []>} : vector<4x4xf32>, vector<4x16xf32>, vector<4x16xf32> -> vector<4x16xf32>
    %142 = arith.addf %135, %141 : vector<4x16xf32>
    %c0_154 = arith.constant 0 : index
    %c0_155 = arith.constant 0 : index
    %143 = vector.load %arg19[%c0_154, %c0_155] : memref<1x16xf32, #tpu.memory_space<vmem>>, vector<1x16xf32>
    %144 = vector.broadcast %143 : vector<1x16xf32> to vector<4x16xf32>
    %145 = arith.addf %142, %144 : vector<4x16xf32>
    %cst_156 = arith.constant 0.000000e+00 : f32
    %146 = vector.broadcast %cst_156 : f32 to vector<4x16xf32>
    %147 = arith.maximumf %145, %146 : vector<4x16xf32>
    %c0_157 = arith.constant 0 : index
    %c0_158 = arith.constant 0 : index
    %c0_159 = arith.constant 0 : index
    %148 = vector.load %arg20[%c0_157, %c0_158, %c0_159] : memref<2x2x4xf32, #tpu.memory_space<vmem>>, vector<1x2x4xf32>
    %149 = vector.shape_cast %148 : vector<1x2x4xf32> to vector<2x4xf32>
    %cst_160 = arith.constant dense<0.000000e+00> : vector<2x16xf32>
    %150 = tpu.matmul %149, %147, %cst_160 {dimension_numbers = #tpu.dot_dimension_numbers<[1], [0], [0], [1], [0, 0, 1, 1], [], []>} : vector<2x4xf32>, vector<4x16xf32>, vector<2x16xf32> -> vector<2x16xf32>
    %c1_161 = arith.constant 1 : index
    %c0_162 = arith.constant 0 : index
    %c0_163 = arith.constant 0 : index
    %151 = vector.load %arg20[%c1_161, %c0_162, %c0_163] : memref<2x2x4xf32, #tpu.memory_space<vmem>>, vector<1x2x4xf32>
    %152 = vector.shape_cast %151 : vector<1x2x4xf32> to vector<2x4xf32>
    %cst_164 = arith.constant dense<0.000000e+00> : vector<2x16xf32>
    %153 = tpu.matmul %152, %147, %cst_164 {dimension_numbers = #tpu.dot_dimension_numbers<[1], [0], [0], [1], [0, 0, 1, 1], [], []>} : vector<2x4xf32>, vector<4x16xf32>, vector<2x16xf32> -> vector<2x16xf32>
    %154 = arith.maximumf %150, %153 : vector<2x16xf32>
    %c0_165 = arith.constant 0 : index
    %c0_166 = arith.constant 0 : index
    %c0_167 = arith.constant 0 : index
    %155 = vector.load %arg21[%c0_165, %c0_166, %c0_167] : memref<2x16x8xf32, #tpu.memory_space<vmem>>, vector<1x16x8xf32>
    %156 = vector.shape_cast %155 : vector<1x16x8xf32> to vector<16x8xf32>
    %cst_168 = arith.constant dense<0.000000e+00> : vector<2x8xf32>
    %157 = tpu.matmul %154, %156, %cst_168 {dimension_numbers = #tpu.dot_dimension_numbers<[1], [0], [0], [1], [0, 0, 1, 1], [], []>} : vector<2x16xf32>, vector<16x8xf32>, vector<2x8xf32> -> vector<2x8xf32>
    %c1_169 = arith.constant 1 : index
    %c0_170 = arith.constant 0 : index
    %c0_171 = arith.constant 0 : index
    %158 = vector.load %arg21[%c1_169, %c0_170, %c0_171] : memref<2x16x8xf32, #tpu.memory_space<vmem>>, vector<1x16x8xf32>
    %159 = vector.shape_cast %158 : vector<1x16x8xf32> to vector<16x8xf32>
    %cst_172 = arith.constant dense<0.000000e+00> : vector<2x8xf32>
    %160 = tpu.matmul %154, %159, %cst_172 {dimension_numbers = #tpu.dot_dimension_numbers<[1], [0], [0], [1], [0, 0, 1, 1], [], []>} : vector<2x16xf32>, vector<16x8xf32>, vector<2x8xf32> -> vector<2x8xf32>
    %161 = arith.maximumf %157, %160 : vector<2x8xf32>
    %c0_173 = arith.constant 0 : index
    %c0_174 = arith.constant 0 : index
    %162 = vector.load %arg22[%c0_173, %c0_174] : memref<8x32xf32, #tpu.memory_space<vmem>>, vector<8x32xf32>
    %cst_175 = arith.constant dense<0.000000e+00> : vector<2x32xf32>
    %163 = tpu.matmul %161, %162, %cst_175 {dimension_numbers = #tpu.dot_dimension_numbers<[1], [0], [0], [1], [0, 0, 1, 1], [], []>} : vector<2x8xf32>, vector<8x32xf32>, vector<2x32xf32> -> vector<2x32xf32>
    %c0_176 = arith.constant 0 : index
    %c0_177 = arith.constant 0 : index
    %164 = vector.load %arg23[%c0_176, %c0_177] : memref<1x32xf32, #tpu.memory_space<vmem>>, vector<1x32xf32>
    %165 = vector.broadcast %164 : vector<1x32xf32> to vector<2x32xf32>
    %166 = arith.addf %163, %165 : vector<2x32xf32>
    %cst_178 = arith.constant 0.000000e+00 : f32
    %167 = vector.broadcast %cst_178 : f32 to vector<2x32xf32>
    %168 = arith.maximumf %166, %167 : vector<2x32xf32>
    %c0_179 = arith.constant 0 : index
    %c0_180 = arith.constant 0 : index
    %169 = vector.load %arg24[%c0_179, %c0_180] : memref<32x16xf32, #tpu.memory_space<vmem>>, vector<32x16xf32>
    %cst_181 = arith.constant dense<0.000000e+00> : vector<2x16xf32>
    %170 = tpu.matmul %168, %169, %cst_181 {dimension_numbers = #tpu.dot_dimension_numbers<[1], [0], [0], [1], [0, 0, 1, 1], [], []>} : vector<2x32xf32>, vector<32x16xf32>, vector<2x16xf32> -> vector<2x16xf32>
    %c0_182 = arith.constant 0 : index
    %c0_183 = arith.constant 0 : index
    %171 = vector.load %arg25[%c0_182, %c0_183] : memref<1x16xf32, #tpu.memory_space<vmem>>, vector<1x16xf32>
    %172 = vector.broadcast %171 : vector<1x16xf32> to vector<2x16xf32>
    %173 = arith.addf %170, %172 : vector<2x16xf32>
    %cst_184 = arith.constant 0.000000e+00 : f32
    %174 = vector.broadcast %cst_184 : f32 to vector<2x16xf32>
    %175 = arith.maximumf %173, %174 : vector<2x16xf32>
    %c0_185 = arith.constant 0 : index
    %c0_186 = arith.constant 0 : index
    %176 = vector.load %arg26[%c0_185, %c0_186] : memref<16x128xf32, #tpu.memory_space<vmem>>, vector<16x128xf32>
    %cst_187 = arith.constant dense<0.000000e+00> : vector<2x128xf32>
    %177 = tpu.matmul %175, %176, %cst_187 {dimension_numbers = #tpu.dot_dimension_numbers<[1], [0], [0], [1], [0, 0, 1, 1], [], []>} : vector<2x16xf32>, vector<16x128xf32>, vector<2x128xf32> -> vector<2x128xf32>
    %c0_188 = arith.constant 0 : index
    %c0_189 = arith.constant 0 : index
    %178 = vector.load %arg27[%c0_188, %c0_189] : memref<1x128xf32, #tpu.memory_space<vmem>>, vector<1x128xf32>
    %179 = vector.broadcast %178 : vector<1x128xf32> to vector<2x128xf32>
    %180 = arith.addf %177, %179 : vector<2x128xf32>
    %c0_190 = arith.constant 0 : index
    %c0_191 = arith.constant 0 : index
    %181 = vector.load %arg28[%c0_190, %c0_191] : memref<2x128xf32, #tpu.memory_space<vmem>>, vector<2x128xf32>
    tpu.vector_store %arg28[%c0_190, %c0_191], %180 {strides = array<i32>} : memref<2x128xf32, #tpu.memory_space<vmem>>, vector<2x128xf32>,
    return
  }
}

</mosaic_0001>

<llo_original>
// kernel: cnn_forward.1
$region0: #{cnn_forward.1}
  #allocation0 [shape = 'u32[]', space=smem, size = 0x4, offset = 0x4, fixed_abs, tag = 'smem constant byte address 0x4 - core index']
  #allocation1 [shape = 'u32[144,128]{1,0:T(1,128)}', space=vmem, size = 0x12000, scoped, tag = 'internal scratch']
  %s0 = inlined_call_operand.vmem [shape: f32[56,28], index: 0, kind: input, shape index: {}]
  %s1 = inlined_call_operand.vmem [shape: f32[2,56,56], index: 1, kind: input, shape index: {}]
  %s2 = inlined_call_operand.vmem [shape: f32[3,28,224], index: 2, kind: input, shape index: {}]
  %s3 = inlined_call_operand.hbm [shape: f32[1,224], index: 3, kind: input, shape index: {}]
  %s4 = inlined_call_operand.vmem [shape: f32[2,28,56], index: 4, kind: input, shape index: {}]
  %s5 = inlined_call_operand.vmem [shape: f32[2,224,112], index: 5, kind: input, shape index: {}]
  %s6 = inlined_call_operand.vmem [shape: f32[3,24,28], index: 6, kind: input, shape index: {}]
  %s7 = inlined_call_operand.vmem [shape: f32[3,112,96], index: 7, kind: input, shape index: {}]
  %s8 = inlined_call_operand.vmem [shape: f32[1,96], index: 8, kind: input, shape index: {}]
  %s9 = inlined_call_operand.vmem [shape: f32[2,12,24], index: 9, kind: input, shape index: {}]
  %s10 = inlined_call_operand.vmem [shape: f32[2,96,48], index: 10, kind: input, shape index: {}]
  %s11 = inlined_call_operand.hbm [shape: f32[3,8,12], index: 11, kind: input, shape index: {}]
  %s12 = inlined_call_operand.vmem [shape: f32[3,48,32], index: 12, kind: input, shape index: {}]
  %s13 = inlined_call_operand.vmem [shape: f32[1,32], index: 13, kind: input, shape index: {}]
  %s14 = inlined_call_operand.vmem [shape: f32[3,4,8], index: 14, kind: input, shape index: {}]
  %s15 = inlined_call_operand.vmem [shape: f32[3,32,16], index: 15, kind: input, shape index: {}]
  %s16 = inlined_call_operand.hbm [shape: f32[1,16], index: 16, kind: input, shape index: {}]
  %s17 = inlined_call_operand.hbm [shape: f32[2,4,4], index: 17, kind: input, shape index: {}]
  %s18 = inlined_call_operand.hbm [shape: f32[3,16,16], index: 18, kind: input, shape index: {}]
  %s19 = inlined_call_operand.hbm [shape: f32[1,16], index: 19, kind: input, shape index: {}]
  %s20 = inlined_call_operand.hbm [shape: f32[2,2,4], index: 20, kind: input, shape index: {}]
  %s21 = inlined_call_operand.vmem [shape: f32[2,16,8], index: 21, kind: input, shape index: {}]
  %s22 = inlined_call_operand.hbm [shape: f32[8,32], index: 22, kind: input, shape index: {}]
  %s23 = inlined_call_operand.hbm [shape: f32[1,32], index: 23, kind: input, shape index: {}]
  %s24 = inlined_call_operand.vmem [shape: f32[32,16], index: 24, kind: input, shape index: {}]
  %s25 = inlined_call_operand.hbm [shape: f32[1,16], index: 25, kind: input, shape index: {}]
  %s26 = inlined_call_operand.vmem [shape: f32[16,128], index: 26, kind: input, shape index: {}]
  %s27 = inlined_call_operand.vmem [shape: f32[1,128], index: 27, kind: input, shape index: {}]
  %s28 = inlined_call_operand.hbm [shape: f32[2,128], index: 28, kind: output, shape index: {}]
  %s29 = sld [smem:[#allocation0]]
  $region162: #{cnn_forward.1} parent=0
    _
  %s31 = ssub.s32 1, %s29
  %s32 = scalar_select 0, %s31, %s29
  $region1: #{cnn_forward.1} parent=0
    #allocation2 [shape = 'u8[1024]{0}', space=vmem, size = 0x400, scoped, tag = 'input window, operand 3, single buffered']
    #allocation3 [shape = 's32[1]{0}', space=sflag, size = 0x4, scoped, tag = 'scoped memory for cnn_forward.1']
    #allocation4 [shape = 's32[1]{0}', space=sflag, size = 0x4, scoped, tag = 'scoped memory for cnn_forward.1']
    #allocation5 [shape = 'u8[12288]{0}', space=vmem, size = 0x3000, scoped, tag = 'input window, operand 11, single buffered']
    #allocation6 [shape = 's32[1]{0}', space=sflag, size = 0x4, scoped, tag = 'scoped memory for cnn_forward.1']
    #allocation7 [shape = 'u8[512]{0}', space=vmem, size = 0x400, scoped, tag = 'input window, operand 16, single buffered']
    #allocation8 [shape = 'u8[4096]{0}', space=vmem, size = 0x1000, scoped, tag = 'input window, operand 17, single buffered']
    #allocation9 [shape = 's32[1]{0}', space=sflag, size = 0x4, scoped, tag = 'scoped memory for cnn_forward.1']
    #allocation10 [shape = 'u8[24576]{0}', space=vmem, size = 0x6000, scoped, tag = 'input window, operand 18, single buffered']
    #allocation11 [shape = 'u8[512]{0}', space=vmem, size = 0x400, scoped, tag = 'input window, operand 19, single buffered']
    #allocation12 [shape = 's32[1]{0}', space=sflag, size = 0x4, scoped, tag = 'scoped memory for cnn_forward.1']
    #allocation13 [shape = 'u8[2048]{0}', space=vmem, size = 0x800, scoped, tag = 'input window, operand 20, single buffered']
    #allocation14 [shape = 'u8[4096]{0}', space=vmem, size = 0x1000, scoped, tag = 'input window, operand 22, single buffered']
    #allocation15 [shape = 's32[1]{0}', space=sflag, size = 0x4, scoped, tag = 'scoped memory for cnn_forward.1']
    #allocation16 [shape = 'u8[512]{0}', space=vmem, size = 0x400, scoped, tag = 'input window, operand 23, single buffered']
    #allocation17 [shape = 'u8[512]{0}', space=vmem, size = 0x400, scoped, tag = 'input window, operand 25, single buffered']
    #allocation18 [shape = 's32[1]{0}', space=sflag, size = 0x4, scoped, tag = 'scoped memory for cnn_forward.1']
    #allocation19 [shape = 'u8[1024]{0}', space=vmem, size = 0x400, scoped, tag = 'output window, operand 0, single buffered']
    %33 = vsyncpa [#allocation3], 0
    %34 = vsyncpa [#allocation6], 0
    %35 = vsyncpa [#allocation9], 0
    %36 = vsyncpa [#allocation12], 0
    %37 = vsyncpa [#allocation15], 0
    %38 = vsyncpa [#allocation18], 0
    %39 = vsyncpa [#allocation4], 0
    // Predicated region
    $region2: #{cnn_forward.1} parent=1 // pred_check
      _
    $region3: #{cnn_forward.1} parent=1 // pred_check_branch
      %41 = sbr.rel (0) target = $region5
    $region4: #{cnn_forward.1} parent=1 // pred_region
      _
    $region5: #{cnn_forward.1} parent=1 // pred_fallthru
      _
    // Predicated region
    $region6: #{cnn_forward.1} parent=1 // pred_check
      _
    $region7: #{cnn_forward.1} parent=1 // pred_check_branch
      %43 = sbr.rel (0) target = $region9
    $region8: #{cnn_forward.1} parent=1 // pred_region
      _
    $region9: #{cnn_forward.1} parent=1 // pred_fallthru
      _
    // Predicated region
    $region10: #{cnn_forward.1} parent=1 // pred_check
      _
    $region11: #{cnn_forward.1} parent=1 // pred_check_branch
      %45 = sbr.rel (0) target = $region13
    $region12: #{cnn_forward.1} parent=1 // pred_region
      _
    $region13: #{cnn_forward.1} parent=1 // pred_fallthru
      _
    // Predicated region
    $region14: #{cnn_forward.1} parent=1 // pred_check
      _
    $region15: #{cnn_forward.1} parent=1 // pred_check_branch
      %47 = sbr.rel (0) target = $region17
    $region16: #{cnn_forward.1} parent=1 // pred_region
      %s49 = ssub.s32 32, 32
      %50 = vsyncadd [#allocation3], %s49
      %s52 = sshll.u32 [#allocation2], 4
      %s53 = int_to_ptr.vmem [resolvable:$true] %s52
      %55 = dma.hbm_to_vmem [thread:$0]  %s3, 32, %s53, [#allocation3]
    $region17: #{cnn_forward.1} parent=1 // pred_fallthru
      _
    // Predicated region
    $region18: #{cnn_forward.1} parent=1 // pred_check
      _
    $region19: #{cnn_forward.1} parent=1 // pred_check_branch
      %57 = sbr.rel (0) target = $region21
    $region20: #{cnn_forward.1} parent=1 // pred_region
      _
    $region21: #{cnn_forward.1} parent=1 // pred_fallthru
      _
    // Predicated region
    $region22: #{cnn_forward.1} parent=1 // pred_check
      _
    $region23: #{cnn_forward.1} parent=1 // pred_check_branch
      %59 = sbr.rel (0) target = $region25
    $region24: #{cnn_forward.1} parent=1 // pred_region
      _
    $region25: #{cnn_forward.1} parent=1 // pred_fallthru
      _
    // Predicated region
    $region26: #{cnn_forward.1} parent=1 // pred_check
      _
    $region27: #{cnn_forward.1} parent=1 // pred_check_branch
      %61 = sbr.rel (0) target = $region29
    $region28: #{cnn_forward.1} parent=1 // pred_region
      _
    $region29: #{cnn_forward.1} parent=1 // pred_fallthru
      _
    // Predicated region
    $region30: #{cnn_forward.1} parent=1 // pred_check
      _
    $region31: #{cnn_forward.1} parent=1 // pred_check_branch
      %63 = sbr.rel (0) target = $region33
    $region32: #{cnn_forward.1} parent=1 // pred_region
      _
    $region33: #{cnn_forward.1} parent=1 // pred_fallthru
      _
    // Predicated region
    $region34: #{cnn_forward.1} parent=1 // pred_check
      _
    $region35: #{cnn_forward.1} parent=1 // pred_check_branch
      %65 = sbr.rel (0) target = $region37
    $region36: #{cnn_forward.1} parent=1 // pred_region
      _
    $region37: #{cnn_forward.1} parent=1 // pred_fallthru
      _
    // Predicated region
    $region38: #{cnn_forward.1} parent=1 // pred_check
      _
    $region39: #{cnn_forward.1} parent=1 // pred_check_branch
      %67 = sbr.rel (0) target = $region41
    $region40: #{cnn_forward.1} parent=1 // pred_region
      _
    $region41: #{cnn_forward.1} parent=1 // pred_fallthru
      _
    // Predicated region
    $region42: #{cnn_forward.1} parent=1 // pred_check
      _
    $region43: #{cnn_forward.1} parent=1 // pred_check_branch
      %69 = sbr.rel (0) target = $region45
    $region44: #{cnn_forward.1} parent=1 // pred_region
      _
    $region45: #{cnn_forward.1} parent=1 // pred_fallthru
      _
    // Predicated region
    $region46: #{cnn_forward.1} parent=1 // pred_check
      _
    $region47: #{cnn_forward.1} parent=1 // pred_check_branch
      %71 = sbr.rel (0) target = $region49
    $region48: #{cnn_forward.1} parent=1 // pred_region
      %s73 = ssub.s32 384, 384
      %74 = vsyncadd [#allocation6], %s73
      %s75 = sshll.u32 [#allocation5], 4
      %s76 = int_to_ptr.vmem [resolvable:$true] %s75
      %81 = dma.hbm_to_vmem [thread:$0]  %s11, 384, %s76, [#allocation6], 128, 128, 8
    $region49: #{cnn_forward.1} parent=1 // pred_fallthru
      _
    // Predicated region
    $region50: #{cnn_forward.1} parent=1 // pred_check
      _
    $region51: #{cnn_forward.1} parent=1 // pred_check_branch
      %83 = sbr.rel (0) target = $region53
    $region52: #{cnn_forward.1} parent=1 // pred_region
      _
    $region53: #{cnn_forward.1} parent=1 // pred_fallthru
      _
    // Predicated region
    $region54: #{cnn_forward.1} parent=1 // pred_check
      _
    $region55: #{cnn_forward.1} parent=1 // pred_check_branch
      %85 = sbr.rel (0) target = $region57
    $region56: #{cnn_forward.1} parent=1 // pred_region
      _
    $region57: #{cnn_forward.1} parent=1 // pred_fallthru
      _
    // Predicated region
    $region58: #{cnn_forward.1} parent=1 // pred_check
      _
    $region59: #{cnn_forward.1} parent=1 // pred_check_branch
      %87 = sbr.rel (0) target = $region61
    $region60: #{cnn_forward.1} parent=1 // pred_region
      _
    $region61: #{cnn_forward.1} parent=1 // pred_fallthru
      _
    // Predicated region
    $region62: #{cnn_forward.1} parent=1 // pred_check
      _
    $region63: #{cnn_forward.1} parent=1 // pred_check_branch
      %89 = sbr.rel (0) target = $region65
    $region64: #{cnn_forward.1} parent=1 // pred_region
      _
    $region65: #{cnn_forward.1} parent=1 // pred_fallthru
      _
    // Predicated region
    $region66: #{cnn_forward.1} parent=1 // pred_check
      _
    $region67: #{cnn_forward.1} parent=1 // pred_check_branch
      %91 = sbr.rel (0) target = $region69
    $region68: #{cnn_forward.1} parent=1 // pred_region
      %s93 = ssub.s32 16, 16
      %94 = vsyncadd [#allocation6], %s93
      %s96 = sshll.u32 [#allocation7], 4
      %s97 = int_to_ptr.vmem [resolvable:$true] %s96
      %99 = dma.hbm_to_vmem [thread:$0]  %s16, 16, %s97, [#allocation6]
    $region69: #{cnn_forward.1} parent=1 // pred_fallthru
      _
    // Predicated region
    $region70: #{cnn_forward.1} parent=1 // pred_check
      _
    $region71: #{cnn_forward.1} parent=1 // pred_check_branch
      %101 = sbr.rel (0) target = $region73
    $region72: #{cnn_forward.1} parent=1 // pred_region
      %s103 = ssub.s32 128, 128
      %104 = vsyncadd [#allocation9], %s103
      %s105 = sshll.u32 [#allocation8], 4
      %s106 = int_to_ptr.vmem [resolvable:$true] %s105
      %111 = dma.hbm_to_vmem [thread:$0]  %s17, 128, %s106, [#allocation9], 64, 64, 4
    $region73: #{cnn_forward.1} parent=1 // pred_fallthru
      _
    // Predicated region
    $region74: #{cnn_forward.1} parent=1 // pred_check
      _
    $region75: #{cnn_forward.1} parent=1 // pred_check_branch
      %113 = sbr.rel (0) target = $region77
    $region76: #{cnn_forward.1} parent=1 // pred_region
      %s115 = ssub.s32 768, 768
      %116 = vsyncadd [#allocation9], %s115
      %s117 = sshll.u32 [#allocation10], 4
      %s118 = int_to_ptr.vmem [resolvable:$true] %s117
      %123 = dma.hbm_to_vmem [thread:$0]  %s18, 768, %s118, [#allocation9], 128, 128, 8
    $region77: #{cnn_forward.1} parent=1 // pred_fallthru
      _
    // Predicated region
    $region78: #{cnn_forward.1} parent=1 // pred_check
      _
    $region79: #{cnn_forward.1} parent=1 // pred_check_branch
      %125 = sbr.rel (0) target = $region81
    $region80: #{cnn_forward.1} parent=1 // pred_region
      %s127 = ssub.s32 16, 16
      %128 = vsyncadd [#allocation12], %s127
      %s130 = sshll.u32 [#allocation11], 4
      %s131 = int_to_ptr.vmem [resolvable:$true] %s130
      %133 = dma.hbm_to_vmem [thread:$0]  %s19, 16, %s131, [#allocation12]
    $region81: #{cnn_forward.1} parent=1 // pred_fallthru
      _
    // Predicated region
    $region82: #{cnn_forward.1} parent=1 // pred_check
      _
    $region83: #{cnn_forward.1} parent=1 // pred_check_branch
      %135 = sbr.rel (0) target = $region85
    $region84: #{cnn_forward.1} parent=1 // pred_region
      %s137 = ssub.s32 64, 64
      %138 = vsyncadd [#allocation12], %s137
      %s139 = sshll.u32 [#allocation13], 4
      %s140 = int_to_ptr.vmem [resolvable:$true] %s139
      %145 = dma.hbm_to_vmem [thread:$0]  %s20, 64, %s140, [#allocation12], 32, 32, 2
    $region85: #{cnn_forward.1} parent=1 // pred_fallthru
      _
    // Predicated region
    $region86: #{cnn_forward.1} parent=1 // pred_check
      _
    $region87: #{cnn_forward.1} parent=1 // pred_check_branch
      %147 = sbr.rel (0) target = $region89
    $region88: #{cnn_forward.1} parent=1 // pred_region
      _
    $region89: #{cnn_forward.1} parent=1 // pred_fallthru
      _
    // Predicated region
    $region90: #{cnn_forward.1} parent=1 // pred_check
      _
    $region91: #{cnn_forward.1} parent=1 // pred_check_branch
      %149 = sbr.rel (0) target = $region93
    $region92: #{cnn_forward.1} parent=1 // pred_region
      %s151 = ssub.s32 128, 128
      %152 = vsyncadd [#allocation15], %s151
      %s154 = sshll.u32 [#allocation14], 4
      %s155 = int_to_ptr.vmem [resolvable:$true] %s154
      %157 = dma.hbm_to_vmem [thread:$0]  %s22, 128, %s155, [#allocation15]
    $region93: #{cnn_forward.1} parent=1 // pred_fallthru
      _
    // Predicated region
    $region94: #{cnn_forward.1} parent=1 // pred_check
      _
    $region95: #{cnn_forward.1} parent=1 // pred_check_branch
      %159 = sbr.rel (0) target = $region97
    $region96: #{cnn_forward.1} parent=1 // pred_region
      %s161 = ssub.s32 16, 16
      %162 = vsyncadd [#allocation15], %s161
      %s164 = sshll.u32 [#allocation16], 4
      %s165 = int_to_ptr.vmem [resolvable:$true] %s164
      %167 = dma.hbm_to_vmem [thread:$0]  %s23, 16, %s165, [#allocation15]
    $region97: #{cnn_forward.1} parent=1 // pred_fallthru
      _
    // Predicated region
    $region98: #{cnn_forward.1} parent=1 // pred_check
      _
    $region99: #{cnn_forward.1} parent=1 // pred_check_branch
      %169 = sbr.rel (0) target = $region101
    $region100: #{cnn_forward.1} parent=1 // pred_region
      _
    $region101: #{cnn_forward.1} parent=1 // pred_fallthru
      _
    // Predicated region
    $region102: #{cnn_forward.1} parent=1 // pred_check
      _
    $region103: #{cnn_forward.1} parent=1 // pred_check_branch
      %171 = sbr.rel (0) target = $region105
    $region104: #{cnn_forward.1} parent=1 // pred_region
      %s173 = ssub.s32 16, 16
      %174 = vsyncadd [#allocation18], %s173
      %s176 = sshll.u32 [#allocation17], 4
      %s177 = int_to_ptr.vmem [resolvable:$true] %s176
      %179 = dma.hbm_to_vmem [thread:$0]  %s25, 16, %s177, [#allocation18]
    $region105: #{cnn_forward.1} parent=1 // pred_fallthru
      _
    // Predicated region
    $region106: #{cnn_forward.1} parent=1 // pred_check
      _
    $region107: #{cnn_forward.1} parent=1 // pred_check_branch
      %181 = sbr.rel (0) target = $region109
    $region108: #{cnn_forward.1} parent=1 // pred_region
      _
    $region109: #{cnn_forward.1} parent=1 // pred_fallthru
      _
    // Predicated region
    $region110: #{cnn_forward.1} parent=1 // pred_check
      _
    $region111: #{cnn_forward.1} parent=1 // pred_check_branch
      %183 = sbr.rel (0) target = $region113
    $region112: #{cnn_forward.1} parent=1 // pred_region
      _
    $region113: #{cnn_forward.1} parent=1 // pred_fallthru
      _
    // Predicated region
    $region114: #{cnn_forward.1} parent=1 // pred_check
      _
    $region115: #{cnn_forward.1} parent=1 // pred_check_branch
      %185 = sbr.rel (0) target = $region117
    $region116: #{cnn_forward.1} parent=1 // pred_region
      %186 = dma.done [#allocation3], 32
    $region117: #{cnn_forward.1} parent=1 // pred_fallthru
      _
    // Predicated region
    $region118: #{cnn_forward.1} parent=1 // pred_check
      _
    $region119: #{cnn_forward.1} parent=1 // pred_check_branch
      %188 = sbr.rel (0) target = $region121
    $region120: #{cnn_forward.1} parent=1 // pred_region
      %189 = dma.done [#allocation6], 384
    $region121: #{cnn_forward.1} parent=1 // pred_fallthru
      _
    // Predicated region
    $region122: #{cnn_forward.1} parent=1 // pred_check
      _
    $region123: #{cnn_forward.1} parent=1 // pred_check_branch
      %191 = sbr.rel (0) target = $region125
    $region124: #{cnn_forward.1} parent=1 // pred_region
      %192 = dma.done [#allocation6], 16
    $region125: #{cnn_forward.1} parent=1 // pred_fallthru
      _
    // Predicated region
    $region126: #{cnn_forward.1} parent=1 // pred_check
      _
    $region127: #{cnn_forward.1} parent=1 // pred_check_branch
      %194 = sbr.rel (0) target = $region129
    $region128: #{cnn_forward.1} parent=1 // pred_region
      %195 = dma.done [#allocation9], 128
    $region129: #{cnn_forward.1} parent=1 // pred_fallthru
      _
    // Predicated region
    $region130: #{cnn_forward.1} parent=1 // pred_check
      _
    $region131: #{cnn_forward.1} parent=1 // pred_check_branch
      %197 = sbr.rel (0) target = $region133
    $region132: #{cnn_forward.1} parent=1 // pred_region
      %198 = dma.done [#allocation9], 768
    $region133: #{cnn_forward.1} parent=1 // pred_fallthru
      _
    // Predicated region
    $region134: #{cnn_forward.1} parent=1 // pred_check
      _
    $region135: #{cnn_forward.1} parent=1 // pred_check_branch
      %200 = sbr.rel (0) target = $region137
    $region136: #{cnn_forward.1} parent=1 // pred_region
      %201 = dma.done [#allocation12], 16
    $region137: #{cnn_forward.1} parent=1 // pred_fallthru
      _
    // Predicated region
    $region138: #{cnn_forward.1} parent=1 // pred_check
      _
    $region139: #{cnn_forward.1} parent=1 // pred_check_branch
      %203 = sbr.rel (0) target = $region141
    $region140: #{cnn_forward.1} parent=1 // pred_region
      %204 = dma.done [#allocation12], 64
    $region141: #{cnn_forward.1} parent=1 // pred_fallthru
      _
    // Predicated region
    $region142: #{cnn_forward.1} parent=1 // pred_check
      _
    $region143: #{cnn_forward.1} parent=1 // pred_check_branch
      %206 = sbr.rel (0) target = $region145
    $region144: #{cnn_forward.1} parent=1 // pred_region
      %207 = dma.done [#allocation15], 128
    $region145: #{cnn_forward.1} parent=1 // pred_fallthru
      _
    // Predicated region
    $region146: #{cnn_forward.1} parent=1 // pred_check
      _
    $region147: #{cnn_forward.1} parent=1 // pred_check_branch
      %209 = sbr.rel (0) target = $region149
    $region148: #{cnn_forward.1} parent=1 // pred_region
      %210 = dma.done [#allocation15], 16
    $region149: #{cnn_forward.1} parent=1 // pred_fallthru
      _
    // Predicated region
    $region150: #{cnn_forward.1} parent=1 // pred_check
      _
    $region151: #{cnn_forward.1} parent=1 // pred_check_branch
      %212 = sbr.rel (0) target = $region153
    $region152: #{cnn_forward.1} parent=1 // pred_region
      %213 = dma.done [#allocation18], 16
    $region153: #{cnn_forward.1} parent=1 // pred_fallthru
      _
    %v214 = vld [vmem:[%s0] sm:$0xff]
    %v215 = vld [vmem:[%s0 + $0x8] sm:$0xff]
    %v216 = vld [vmem:[%s0 + $0x10] sm:$0xff]
    %v217 = vld [vmem:[%s0 + $0x18] sm:$0xff]
    %v218 = vld [vmem:[%s0 + $0x20] sm:$0xff]
    %v219 = vld [vmem:[%s0 + $0x28] sm:$0xff]
    %v220 = vld [vmem:[%s0 + $0x30] sm:$0xff]
    %v221 = vld [vmem:[%s1] sm:$0xff]
    %v222 = vld [vmem:[%s1 + $0x8] sm:$0xff]
    %v223 = vld [vmem:[%s1 + $0x10] sm:$0xff]
    %v224 = vld [vmem:[%s1 + $0x18] sm:$0xff]
    %v225 = vld [vmem:[%s1 + $0x20] sm:$0xff]
    %v226 = vld [vmem:[%s1 + $0x28] sm:$0xff]
    %v227 = vld [vmem:[%s1 + $0x30] sm:$0xff]
    %v228 = vld [vmem:[%s2] sm:$0xff]
    %v229 = vld [vmem:[%s2 + $0x8] sm:$0xff]
    %v230 = vld [vmem:[%s2 + $0x10] sm:$0xff]
    %v231 = vld [vmem:[%s2 + $0x18] sm:$0xff]
    %v232 = vld [vmem:[%s2 + $0x20] sm:$0xff]
    %v233 = vld [vmem:[%s2 + $0x28] sm:$0xff]
    %v234 = vld [vmem:[%s2 + $0x30] sm:$0xf]
    %v235 = vld [vmem:[%s2 + $0x38] sm:$0xf]
    %vm236 = vcmask 228352
    %v238 = vsel %vm236, %v214, 0
    %v241 = vsel %vm236, %v215, 0
    %v244 = vsel %vm236, %v216, 0
    %v247 = vsel %vm236, %v217, 0
    %v250 = vsel %vm236, %v218, 0
    %v253 = vsel %vm236, %v219, 0
    %v256 = vsel %vm236, %v220, 0
    %vm258 = vcmask 1043456
    %v260 = vsel %vm258, %v234, 0
    %v263 = vsel %vm258, %v235, 0
    %265 = vmatprep.subr.mxu0 %v229
    %266 = vmatpush1.msra.mxu0 %v228
    %267 = vmatprep.subr.mxu0 %v231
    %268 = vmatpush1.msra.mxu0 %v230
    %269 = vmatprep.subr.mxu0 %v233
    %270 = vmatpush1.msra.mxu0 %v232
    %271 = vmatprep.subr.mxu0 %v263
    %272 = vmatpush1.msra.mxu0 %v260
    %273 = vmatprep.subr.mxu0 0.0
    %274 = vmatpush1.msra.mxu0 0.0
    %275 = vmatprep.subr.mxu0 0.0
    %276 = vmatpush1.msra.mxu0 0.0
    %277 = vmatprep.subr.mxu0 0.0
    %278 = vmatpush1.msra.mxu0 0.0
    %279 = vmatprep.subr.mxu0 0.0
    %280 = vmatpush1.msra.mxu0 0.0
    %281 = vmatprep.subr.mxu0 0.0
    %282 = vmatpush1.msra.mxu0 0.0
    %283 = vmatprep.subr.mxu0 0.0
    %284 = vmatpush1.msra.mxu0 0.0
    %285 = vmatprep.subr.mxu0 0.0
    %286 = vmatpush1.msra.mxu0 0.0
    %287 = vmatprep.subr.mxu0 0.0
    %288 = vmatpush1.msra.mxu0 0.0
    %289 = vmatprep.subr.mxu0 0.0
    %290 = vmatpush1.msra.mxu0 0.0
    %291 = vmatprep.subr.mxu0 0.0
    %292 = vmatpush1.msra.mxu0 0.0
    %293 = vmatprep.subr.mxu0 0.0
    %294 = vmatpush1.msra.mxu0 0.0
    %295 = vmatprep.subr.mxu0 0.0
    %296 = vmatpush1.msra.mxu0 0.0
    %297 = vmatprep.subr.mxu0 0.0
    %298 = vmatpush1.msra.mxu0 0.0
    %299 = vmatprep.subr.mxu0 0.0
    %300 = vmatpush1.msra.mxu0 0.0
    %301 = vmatprep.subr.mxu0 0.0
    %302 = vmatpush1.msra.mxu0 0.0
    %303 = vmatprep.subr.mxu0 0.0
    %304 = vmatpush1.msra.mxu0 0.0
    %305 = vmatprep.subr.mxu0 0.0
    %306 = vmatpush1.msra.mxu0 0.0
    %307 = vmatprep.subr.mxu0 0.0
    %308 = vmatpush1.msra.mxu0 0.0
    %309 = vmatprep.subr.mxu0 0.0
    %310 = vmatpush1.msra.mxu0 0.0
    %311 = vmatprep.subr.mxu0 0.0
    %312 = vmatpush1.msra.mxu0 0.0
    %313 = vmatprep.subr.mxu0 0.0
    %314 = vmatpush1.msra.mxu0 0.0
    %315 = vmatprep.subr.mxu0 0.0
    %316 = vmatpush1.msra.mxu0 0.0
    %317 = vmatprep.subr.mxu0 0.0
    %318 = vmatpush1.msra.mxu0 0.0
    %319 = vmatprep.subr.mxu0 0.0
    %320 = vmatpush1.msra.mxu0 0.0
    %321 = vmatprep.subr.mxu0 0.0
    %322 = vmatpush1.msra.mxu0 0.0
    %323 = vmatprep.subr.mxu0 0.0
    %324 = vmatpush1.msra.mxu0 0.0
    %325 = vmatprep.subr.mxu0 0.0
    %326 = vmatpush1.msra.mxu0 0.0
    %327 = vmatprep.subr.mxu0 0.0
    %328 = vmatpush1.msra.mxu0 0.0
    %329 = vmatprep.mubr.f32.mxu0 0.0
    %330 = vmatmul.mubr.f32.gmra.mrb[0].mxu0 %v238
    %v331 = vpop.f32.mrb[0].mxu0
    %v332 = vadd.f32 0.0, %v331
    %v333 = vpop.f32.mrb[0].mxu0
    %v334 = vadd.f32 0.0, %v333
    %335 = vmatprep.mubr.f32.mxu0 0.0
    %336 = vmatmul.mubr.f32.gmra.mrb[0].mxu0 %v241
    %v337 = vpop.f32.mrb[0].mxu0
    %v338 = vadd.f32 0.0, %v337
    %v339 = vpop.f32.mrb[0].mxu0
    %v340 = vadd.f32 0.0, %v339
    %341 = vmatprep.mubr.f32.mxu0 0.0
    %342 = vmatmul.mubr.f32.gmra.mrb[0].mxu0 %v244
    %v343 = vpop.f32.mrb[0].mxu0
    %v344 = vadd.f32 0.0, %v343
    %v345 = vpop.f32.mrb[0].mxu0
    %v346 = vadd.f32 0.0, %v345
    %347 = vmatprep.mubr.f32.mxu0 0.0
    %348 = vmatmul.mubr.f32.gmra.mrb[0].mxu0 %v247
    %v349 = vpop.f32.mrb[0].mxu0
    %v350 = vadd.f32 0.0, %v349
    %v351 = vpop.f32.mrb[0].mxu0
    %v352 = vadd.f32 0.0, %v351
    %353 = vmatprep.mubr.f32.mxu0 0.0
    %354 = vmatmul.mubr.f32.gmra.mrb[0].mxu0 %v250
    %v355 = vpop.f32.mrb[0].mxu0
    %v356 = vadd.f32 0.0, %v355
    %v357 = vpop.f32.mrb[0].mxu0
    %v358 = vadd.f32 0.0, %v357
    %359 = vmatprep.mubr.f32.mxu0 0.0
    %360 = vmatmul.mubr.f32.gmra.mrb[0].mxu0 %v253
    %v361 = vpop.f32.mrb[0].mxu0
    %v362 = vadd.f32 0.0, %v361
    %v363 = vpop.f32.mrb[0].mxu0
    %v364 = vadd.f32 0.0, %v363
    %365 = vmatprep.mubr.f32.mxu0 0.0
    %366 = vmatmul.mubr.f32.gmra.mrb[0].mxu0 %v256
    %v367 = vpop.f32.mrb[0].mxu0
    %v368 = vadd.f32 0.0, %v367
    %v369 = vpop.f32.mrb[0].mxu0
    %v370 = vadd.f32 0.0, %v369
    %371 = vdwg.mxu0
    %s372 = scalar_lea.vmem %s2, 64
    %v373 = vld [vmem:[%s372] sm:$0xff]
    %v374 = vld [vmem:[%s372 + $0x8] sm:$0xff]
    %v375 = vld [vmem:[%s372 + $0x10] sm:$0xff]
    %v376 = vld [vmem:[%s372 + $0x18] sm:$0xff]
    %v377 = vld [vmem:[%s372 + $0x20] sm:$0xff]
    %v378 = vld [vmem:[%s372 + $0x28] sm:$0xff]
    %v379 = vld [vmem:[%s372 + $0x30] sm:$0xf]
    %v380 = vld [vmem:[%s372 + $0x38] sm:$0xf]
    %v382 = vsel %vm258, %v379, 0
    %v385 = vsel %vm258, %v380, 0
    %387 = vmatprep.subr.mxu0 %v374
    %388 = vmatpush1.msra.mxu0 %v373
    %389 = vmatprep.subr.mxu0 %v376
    %390 = vmatpush1.msra.mxu0 %v375
    %391 = vmatprep.subr.mxu0 %v378
    %392 = vmatpush1.msra.mxu0 %v377
    %393 = vmatprep.subr.mxu0 %v385
    %394 = vmatpush1.msra.mxu0 %v382
    %395 = vmatprep.subr.mxu0 0.0
    %396 = vmatpush1.msra.mxu0 0.0
    %397 = vmatprep.subr.mxu0 0.0
    %398 = vmatpush1.msra.mxu0 0.0
    %399 = vmatprep.subr.mxu0 0.0
    %400 = vmatpush1.msra.mxu0 0.0
    %401 = vmatprep.subr.mxu0 0.0
    %402 = vmatpush1.msra.mxu0 0.0
    %403 = vmatprep.subr.mxu0 0.0
    %404 = vmatpush1.msra.mxu0 0.0
    %405 = vmatprep.subr.mxu0 0.0
    %406 = vmatpush1.msra.mxu0 0.0
    %407 = vmatprep.subr.mxu0 0.0
    %408 = vmatpush1.msra.mxu0 0.0
    %409 = vmatprep.subr.mxu0 0.0
    %410 = vmatpush1.msra.mxu0 0.0
    %411 = vmatprep.subr.mxu0 0.0
    %412 = vmatpush1.msra.mxu0 0.0
    %413 = vmatprep.subr.mxu0 0.0
    %414 = vmatpush1.msra.mxu0 0.0
    %415 = vmatprep.subr.mxu0 0.0
    %416 = vmatpush1.msra.mxu0 0.0
    %417 = vmatprep.subr.mxu0 0.0
    %418 = vmatpush1.msra.mxu0 0.0
    %419 = vmatprep.subr.mxu0 0.0
    %420 = vmatpush1.msra.mxu0 0.0
    %421 = vmatprep.subr.mxu0 0.0
    %422 = vmatpush1.msra.mxu0 0.0
    %423 = vmatprep.subr.mxu0 0.0
    %424 = vmatpush1.msra.mxu0 0.0
    %425 = vmatprep.subr.mxu0 0.0
    %426 = vmatpush1.msra.mxu0 0.0
    %427 = vmatprep.subr.mxu0 0.0
    %428 = vmatpush1.msra.mxu0 0.0
    %429 = vmatprep.subr.mxu0 0.0
    %430 = vmatpush1.msra.mxu0 0.0
    %431 = vmatprep.subr.mxu0 0.0
    %432 = vmatpush1.msra.mxu0 0.0
    %433 = vmatprep.subr.mxu0 0.0
    %434 = vmatpush1.msra.mxu0 0.0
    %435 = vmatprep.subr.mxu0 0.0
    %436 = vmatpush1.msra.mxu0 0.0
    %437 = vmatprep.subr.mxu0 0.0
    %438 = vmatpush1.msra.mxu0 0.0
    %439 = vmatprep.subr.mxu0 0.0
    %440 = vmatpush1.msra.mxu0 0.0
    %441 = vmatprep.subr.mxu0 0.0
    %442 = vmatpush1.msra.mxu0 0.0
    %443 = vmatprep.subr.mxu0 0.0
    %444 = vmatpush1.msra.mxu0 0.0
    %445 = vmatprep.subr.mxu0 0.0
    %446 = vmatpush1.msra.mxu0 0.0
    %447 = vmatprep.subr.mxu0 0.0
    %448 = vmatpush1.msra.mxu0 0.0
    %449 = vmatprep.subr.mxu0 0.0
    %450 = vmatpush1.msra.mxu0 0.0
    %451 = vmatprep.mubr.f32.mxu0 0.0
    %452 = vmatmul.mubr.f32.gmra.mrb[0].mxu0 %v238
    %v453 = vpop.f32.mrb[0].mxu0
    %v454 = vadd.f32 0.0, %v453
    %v455 = vpop.f32.mrb[0].mxu0
    %v456 = vadd.f32 0.0, %v455
    %457 = vmatprep.mubr.f32.mxu0 0.0
    %458 = vmatmul.mubr.f32.gmra.mrb[0].mxu0 %v241
    %v459 = vpop.f32.mrb[0].mxu0
    %v460 = vadd.f32 0.0, %v459
    %v461 = vpop.f32.mrb[0].mxu0
    %v462 = vadd.f32 0.0, %v461
    %463 = vmatprep.mubr.f32.mxu0 0.0
    %464 = vmatmul.mubr.f32.gmra.mrb[0].mxu0 %v244
    %v465 = vpop.f32.mrb[0].mxu0
    %v466 = vadd.f32 0.0, %v465
    %v467 = vpop.f32.mrb[0].mxu0
    %v468 = vadd.f32 0.0, %v467
    %469 = vmatprep.mubr.f32.mxu0 0.0
    %470 = vmatmul.mubr.f32.gmra.mrb[0].mxu0 %v247
    %v471 = vpop.f32.mrb[0].mxu0
    %v472 = vadd.f32 0.0, %v471
    %v473 = vpop.f32.mrb[0].mxu0
    %v474 = vadd.f32 0.0, %v473
    %475 = vmatprep.mubr.f32.mxu0 0.0
    %476 = vmatmul.mubr.f32.gmra.mrb[0].mxu0 %v250
    %v477 = vpop.f32.mrb[0].mxu0
    %v478 = vadd.f32 0.0, %v477
    %v479 = vpop.f32.mrb[0].mxu0
    %v480 = vadd.f32 0.0, %v479
    %481 = vmatprep.mubr.f32.mxu0 0.0
    %482 = vmatmul.mubr.f32.gmra.mrb[0].mxu0 %v253
    %v483 = vpop.f32.mrb[0].mxu0
    %v484 = vadd.f32 0.0, %v483
    %v485 = vpop.f32.mrb[0].mxu0
    %v486 = vadd.f32 0.0, %v485
    %487 = vmatprep.mubr.f32.mxu0 0.0
    %488 = vmatmul.mubr.f32.gmra.mrb[0].mxu0 %v256
    %v489 = vpop.f32.mrb[0].mxu0
    %v490 = vadd.f32 0.0, %v489
    %v491 = vpop.f32.mrb[0].mxu0
    %v492 = vadd.f32 0.0, %v491
    %493 = vdwg.mxu0
    %vm494 = vcmask 457728
    %v496 = vsel %vm494, %v221, 0
    %v499 = vsel %vm494, %v222, 0
    %v502 = vsel %vm494, %v223, 0
    %v505 = vsel %vm494, %v224, 0
    %v508 = vsel %vm494, %v225, 0
    %v511 = vsel %vm494, %v226, 0
    %v514 = vsel %vm494, %v227, 0
    %516 = vmatprep.subr.mxu0 %v334
    %517 = vmatpush1.msra.mxu0 %v332
    %518 = vmatprep.subr.mxu0 %v340
    %519 = vmatpush1.msra.mxu0 %v338
    %520 = vmatprep.subr.mxu0 %v346
    %521 = vmatpush1.msra.mxu0 %v344
    %522 = vmatprep.subr.mxu0 %v352
    %523 = vmatpush1.msra.mxu0 %v350
    %524 = vmatprep.subr.mxu0 %v358
    %525 = vmatpush1.msra.mxu0 %v356
    %526 = vmatprep.subr.mxu0 %v364
    %527 = vmatpush1.msra.mxu0 %v362
    %528 = vmatprep.subr.mxu0 %v370
    %529 = vmatpush1.msra.mxu0 %v368
    %530 = vmatprep.subr.mxu0 0.0
    %531 = vmatpush1.msra.mxu0 0.0
    %532 = vmatprep.subr.mxu0 0.0
    %533 = vmatpush1.msra.mxu0 0.0
    %534 = vmatprep.subr.mxu0 0.0
    %535 = vmatpush1.msra.mxu0 0.0
    %536 = vmatprep.subr.mxu0 0.0
    %537 = vmatpush1.msra.mxu0 0.0
    %538 = vmatprep.subr.mxu0 0.0
    %539 = vmatpush1.msra.mxu0 0.0
    %540 = vmatprep.subr.mxu0 0.0
    %541 = vmatpush1.msra.mxu0 0.0
    %542 = vmatprep.subr.mxu0 0.0
    %543 = vmatpush1.msra.mxu0 0.0
    %544 = vmatprep.subr.mxu0 0.0
    %545 = vmatpush1.msra.mxu0 0.0
    %546 = vmatprep.subr.mxu0 0.0
    %547 = vmatpush1.msra.mxu0 0.0
    %548 = vmatprep.subr.mxu0 0.0
    %549 = vmatpush1.msra.mxu0 0.0
    %550 = vmatprep.subr.mxu0 0.0
    %551 = vmatpush1.msra.mxu0 0.0
    %552 = vmatprep.subr.mxu0 0.0
    %553 = vmatpush1.msra.mxu0 0.0
    %554 = vmatprep.subr.mxu0 0.0
    %555 = vmatpush1.msra.mxu0 0.0
    %556 = vmatprep.subr.mxu0 0.0
    %557 = vmatpush1.msra.mxu0 0.0
    %558 = vmatprep.subr.mxu0 0.0
    %559 = vmatpush1.msra.mxu0 0.0
    %560 = vmatprep.subr.mxu0 0.0
    %561 = vmatpush1.msra.mxu0 0.0
    %562 = vmatprep.subr.mxu0 0.0
    %563 = vmatpush1.msra.mxu0 0.0
    %564 = vmatprep.subr.mxu0 0.0
    %565 = vmatpush1.msra.mxu0 0.0
    %566 = vmatprep.subr.mxu0 0.0
    %567 = vmatpush1.msra.mxu0 0.0
    %568 = vmatprep.subr.mxu0 0.0
    %569 = vmatpush1.msra.mxu0 0.0
    %570 = vmatprep.subr.mxu0 0.0
    %571 = vmatpush1.msra.mxu0 0.0
    %572 = vmatprep.subr.mxu0 0.0
    %573 = vmatpush1.msra.mxu0 0.0
    %574 = vmatprep.subr.mxu0 0.0
    %575 = vmatpush1.msra.mxu0 0.0
    %576 = vmatprep.subr.mxu0 0.0
    %577 = vmatpush1.msra.mxu0 0.0
    %578 = vmatprep.subr.mxu0 0.0
    %579 = vmatpush1.msra.mxu0 0.0
    %580 = vmatprep.mubr.f32.mxu0 0.0
    %581 = vmatmul.mubr.f32.gmra.mrb[0].mxu0 %v496
    %v582 = vpop.f32.mrb[0].mxu0
    %v583 = vadd.f32 %v454, %v582
    %v584 = vpop.f32.mrb[0].mxu0
    %v585 = vadd.f32 %v456, %v584
    %586 = vmatprep.mubr.f32.mxu0 0.0
    %587 = vmatmul.mubr.f32.gmra.mrb[0].mxu0 %v499
    %v588 = vpop.f32.mrb[0].mxu0
    %v589 = vadd.f32 %v460, %v588
    %v590 = vpop.f32.mrb[0].mxu0
    %v591 = vadd.f32 %v462, %v590
    %592 = vmatprep.mubr.f32.mxu0 0.0
    %593 = vmatmul.mubr.f32.gmra.mrb[0].mxu0 %v502
    %v594 = vpop.f32.mrb[0].mxu0
    %v595 = vadd.f32 %v466, %v594
    %v596 = vpop.f32.mrb[0].mxu0
    %v597 = vadd.f32 %v468, %v596
    %598 = vmatprep.mubr.f32.mxu0 0.0
    %599 = vmatmul.mubr.f32.gmra.mrb[0].mxu0 %v505
    %v600 = vpop.f32.mrb[0].mxu0
    %v601 = vadd.f32 %v472, %v600
    %v602 = vpop.f32.mrb[0].mxu0
    %v603 = vadd.f32 %v474, %v602
    %604 = vmatprep.mubr.f32.mxu0 0.0
    %605 = vmatmul.mubr.f32.gmra.mrb[0].mxu0 %v508
    %v606 = vpop.f32.mrb[0].mxu0
    %v607 = vadd.f32 %v478, %v606
    %v608 = vpop.f32.mrb[0].mxu0
    %v609 = vadd.f32 %v480, %v608
    %610 = vmatprep.mubr.f32.mxu0 0.0
    %611 = vmatmul.mubr.f32.gmra.mrb[0].mxu0 %v511
    %v612 = vpop.f32.mrb[0].mxu0
    %v613 = vadd.f32 %v484, %v612
    %v614 = vpop.f32.mrb[0].mxu0
    %v615 = vadd.f32 %v486, %v614
    %616 = vmatprep.mubr.f32.mxu0 0.0
    %617 = vmatmul.mubr.f32.gmra.mrb[0].mxu0 %v514
    %v618 = vpop.f32.mrb[0].mxu0
    %v619 = vadd.f32 %v490, %v618
    %v620 = vpop.f32.mrb[0].mxu0
    %v621 = vadd.f32 %v492, %v620
    %622 = vdwg.mxu0
    %s623 = scalar_lea.vmem %s1, 56
    %v624 = vld [vmem:[%s623] sm:$0xff]
    %v625 = vld [vmem:[%s623 + $0x8] sm:$0xff]
    %v626 = vld [vmem:[%s623 + $0x10] sm:$0xff]
    %v627 = vld [vmem:[%s623 + $0x18] sm:$0xff]
    %v628 = vld [vmem:[%s623 + $0x20] sm:$0xff]
    %v629 = vld [vmem:[%s623 + $0x28] sm:$0xff]
    %v630 = vld [vmem:[%s623 + $0x30] sm:$0xff]
    %s631 = scalar_lea.vmem %s2, 128
    %v632 = vld [vmem:[%s631] sm:$0xff]
    %v633 = vld [vmem:[%s631 + $0x8] sm:$0xff]
    %v634 = vld [vmem:[%s631 + $0x10] sm:$0xff]
    %v635 = vld [vmem:[%s631 + $0x18] sm:$0xff]
    %v636 = vld [vmem:[%s631 + $0x20] sm:$0xff]
    %v637 = vld [vmem:[%s631 + $0x28] sm:$0xff]
    %v638 = vld [vmem:[%s631 + $0x30] sm:$0xf]
    %v639 = vld [vmem:[%s631 + $0x38] sm:$0xf]
    %v641 = vsel %vm258, %v638, 0
    %v644 = vsel %vm258, %v639, 0
    %646 = vmatprep.subr.mxu0 %v633
    %647 = vmatpush1.msra.mxu0 %v632
    %648 = vmatprep.subr.mxu0 %v635
    %649 = vmatpush1.msra.mxu0 %v634
    %650 = vmatprep.subr.mxu0 %v637
    %651 = vmatpush1.msra.mxu0 %v636
    %652 = vmatprep.subr.mxu0 %v644
    %653 = vmatpush1.msra.mxu0 %v641
    %654 = vmatprep.subr.mxu0 0.0
    %655 = vmatpush1.msra.mxu0 0.0
    %656 = vmatprep.subr.mxu0 0.0
    %657 = vmatpush1.msra.mxu0 0.0
    %658 = vmatprep.subr.mxu0 0.0
    %659 = vmatpush1.msra.mxu0 0.0
    %660 = vmatprep.subr.mxu0 0.0
    %661 = vmatpush1.msra.mxu0 0.0
    %662 = vmatprep.subr.mxu0 0.0
    %663 = vmatpush1.msra.mxu0 0.0
    %664 = vmatprep.subr.mxu0 0.0
    %665 = vmatpush1.msra.mxu0 0.0
    %666 = vmatprep.subr.mxu0 0.0
    %667 = vmatpush1.msra.mxu0 0.0
    %668 = vmatprep.subr.mxu0 0.0
    %669 = vmatpush1.msra.mxu0 0.0
    %670 = vmatprep.subr.mxu0 0.0
    %671 = vmatpush1.msra.mxu0 0.0
    %672 = vmatprep.subr.mxu0 0.0
    %673 = vmatpush1.msra.mxu0 0.0
    %674 = vmatprep.subr.mxu0 0.0
    %675 = vmatpush1.msra.mxu0 0.0
    %676 = vmatprep.subr.mxu0 0.0
    %677 = vmatpush1.msra.mxu0 0.0
    %678 = vmatprep.subr.mxu0 0.0
    %679 = vmatpush1.msra.mxu0 0.0
    %680 = vmatprep.subr.mxu0 0.0
    %681 = vmatpush1.msra.mxu0 0.0
    %682 = vmatprep.subr.mxu0 0.0
    %683 = vmatpush1.msra.mxu0 0.0
    %684 = vmatprep.subr.mxu0 0.0
    %685 = vmatpush1.msra.mxu0 0.0
    %686 = vmatprep.subr.mxu0 0.0
    %687 = vmatpush1.msra.mxu0 0.0
    %688 = vmatprep.subr.mxu0 0.0
    %689 = vmatpush1.msra.mxu0 0.0
    %690 = vmatprep.subr.mxu0 0.0
    %691 = vmatpush1.msra.mxu0 0.0
    %692 = vmatprep.subr.mxu0 0.0
    %693 = vmatpush1.msra.mxu0 0.0
    %694 = vmatprep.subr.mxu0 0.0
    %695 = vmatpush1.msra.mxu0 0.0
    %696 = vmatprep.subr.mxu0 0.0
    %697 = vmatpush1.msra.mxu0 0.0
    %698 = vmatprep.subr.mxu0 0.0
    %699 = vmatpush1.msra.mxu0 0.0
    %700 = vmatprep.subr.mxu0 0.0
    %701 = vmatpush1.msra.mxu0 0.0
    %702 = vmatprep.subr.mxu0 0.0
    %703 = vmatpush1.msra.mxu0 0.0
    %704 = vmatprep.subr.mxu0 0.0
    %705 = vmatpush1.msra.mxu0 0.0
    %706 = vmatprep.subr.mxu0 0.0
    %707 = vmatpush1.msra.mxu0 0.0
    %708 = vmatprep.subr.mxu0 0.0
    %709 = vmatpush1.msra.mxu0 0.0
    %710 = vmatprep.mubr.f32.mxu0 0.0
    %711 = vmatmul.mubr.f32.gmra.mrb[0].mxu0 %v238
    %v712 = vpop.f32.mrb[0].mxu0
    %v713 = vadd.f32 0.0, %v712
    %v714 = vpop.f32.mrb[0].mxu0
    %v715 = vadd.f32 0.0, %v714
    %716 = vmatprep.mubr.f32.mxu0 0.0
    %717 = vmatmul.mubr.f32.gmra.mrb[0].mxu0 %v241
    %v718 = vpop.f32.mrb[0].mxu0
    %v719 = vadd.f32 0.0, %v718
    %v720 = vpop.f32.mrb[0].mxu0
    %v721 = vadd.f32 0.0, %v720
    %722 = vmatprep.mubr.f32.mxu0 0.0
    %723 = vmatmul.mubr.f32.gmra.mrb[0].mxu0 %v244
    %v724 = vpop.f32.mrb[0].mxu0
    %v725 = vadd.f32 0.0, %v724
    %v726 = vpop.f32.mrb[0].mxu0
    %v727 = vadd.f32 0.0, %v726
    %728 = vmatprep.mubr.f32.mxu0 0.0
    %729 = vmatmul.mubr.f32.gmra.mrb[0].mxu0 %v247
    %v730 = vpop.f32.mrb[0].mxu0
    %v731 = vadd.f32 0.0, %v730
    %v732 = vpop.f32.mrb[0].mxu0
    %v733 = vadd.f32 0.0, %v732
    %734 = vmatprep.mubr.f32.mxu0 0.0
    %735 = vmatmul.mubr.f32.gmra.mrb[0].mxu0 %v250
    %v736 = vpop.f32.mrb[0].mxu0
    %v737 = vadd.f32 0.0, %v736
    %v738 = vpop.f32.mrb[0].mxu0
    %v739 = vadd.f32 0.0, %v738
    %740 = vmatprep.mubr.f32.mxu0 0.0
    %741 = vmatmul.mubr.f32.gmra.mrb[0].mxu0 %v253
    %v742 = vpop.f32.mrb[0].mxu0
    %v743 = vadd.f32 0.0, %v742
    %v744 = vpop.f32.mrb[0].mxu0
    %v745 = vadd.f32 0.0, %v744
    %746 = vmatprep.mubr.f32.mxu0 0.0
    %747 = vmatmul.mubr.f32.gmra.mrb[0].mxu0 %v256
    %v748 = vpop.f32.mrb[0].mxu0
    %v749 = vadd.f32 0.0, %v748
    %v750 = vpop.f32.mrb[0].mxu0
    %v751 = vadd.f32 0.0, %v750
    %752 = vdwg.mxu0
    %v754 = vsel %vm494, %v624, 0
    %v757 = vsel %vm494, %v625, 0
    %v760 = vsel %vm494, %v626, 0
    %v763 = vsel %vm494, %v627, 0
    %v766 = vsel %vm494, %v628, 0
    %v769 = vsel %vm494, %v629, 0
    %v772 = vsel %vm494, %v630, 0
    %774 = vmatprep.subr.mxu0 %v715
    %775 = vmatpush1.msra.mxu0 %v713
    %776 = vmatprep.subr.mxu0 %v721
    %777 = vmatpush1.msra.mxu0 %v719
    %778 = vmatprep.subr.mxu0 %v727
    %779 = vmatpush1.msra.mxu0 %v725
    %780 = vmatprep.subr.mxu0 %v733
    %781 = vmatpush1.msra.mxu0 %v731
    %782 = vmatprep.subr.mxu0 %v739
    %783 = vmatpush1.msra.mxu0 %v737
    %784 = vmatprep.subr.mxu0 %v745
    %785 = vmatpush1.msra.mxu0 %v743
    %786 = vmatprep.subr.mxu0 %v751
    %787 = vmatpush1.msra.mxu0 %v749
    %788 = vmatprep.subr.mxu0 0.0
    %789 = vmatpush1.msra.mxu0 0.0
    %790 = vmatprep.subr.mxu0 0.0
    %791 = vmatpush1.msra.mxu0 0.0
    %792 = vmatprep.subr.mxu0 0.0
    %793 = vmatpush1.msra.mxu0 0.0
    %794 = vmatprep.subr.mxu0 0.0
    %795 = vmatpush1.msra.mxu0 0.0
    %796 = vmatprep.subr.mxu0 0.0
    %797 = vmatpush1.msra.mxu0 0.0
    %798 = vmatprep.subr.mxu0 0.0
    %799 = vmatpush1.msra.mxu0 0.0
    %800 = vmatprep.subr.mxu0 0.0
    %801 = vmatpush1.msra.mxu0 0.0
    %802 = vmatprep.subr.mxu0 0.0
    %803 = vmatpush1.msra.mxu0 0.0
    %804 = vmatprep.subr.mxu0 0.0
    %805 = vmatpush1.msra.mxu0 0.0
    %806 = vmatprep.subr.mxu0 0.0
    %807 = vmatpush1.msra.mxu0 0.0
    %808 = vmatprep.subr.mxu0 0.0
    %809 = vmatpush1.msra.mxu0 0.0
    %810 = vmatprep.subr.mxu0 0.0
    %811 = vmatpush1.msra.mxu0 0.0
    %812 = vmatprep.subr.mxu0 0.0
    %813 = vmatpush1.msra.mxu0 0.0
    %814 = vmatprep.subr.mxu0 0.0
    %815 = vmatpush1.msra.mxu0 0.0
    %816 = vmatprep.subr.mxu0 0.0
    %817 = vmatpush1.msra.mxu0 0.0
    %818 = vmatprep.subr.mxu0 0.0
    %819 = vmatpush1.msra.mxu0 0.0
    %820 = vmatprep.subr.mxu0 0.0
    %821 = vmatpush1.msra.mxu0 0.0
    %822 = vmatprep.subr.mxu0 0.0
    %823 = vmatpush1.msra.mxu0 0.0
    %824 = vmatprep.subr.mxu0 0.0
    %825 = vmatpush1.msra.mxu0 0.0
    %826 = vmatprep.subr.mxu0 0.0
    %827 = vmatpush1.msra.mxu0 0.0
    %828 = vmatprep.subr.mxu0 0.0
    %829 = vmatpush1.msra.mxu0 0.0
    %830 = vmatprep.subr.mxu0 0.0
    %831 = vmatpush1.msra.mxu0 0.0
    %832 = vmatprep.subr.mxu0 0.0
    %833 = vmatpush1.msra.mxu0 0.0
    %834 = vmatprep.subr.mxu0 0.0
    %835 = vmatpush1.msra.mxu0 0.0
    %836 = vmatprep.subr.mxu0 0.0
    %837 = vmatpush1.msra.mxu0 0.0
    %838 = vmatprep.mubr.f32.mxu0 0.0
    %839 = vmatmul.mubr.f32.gmra.mrb[0].mxu0 %v754
    %v840 = vpop.f32.mrb[0].mxu0
    %v841 = vadd.f32 0.0, %v840
    %v842 = vpop.f32.mrb[0].mxu0
    %v843 = vadd.f32 0.0, %v842
    %844 = vmatprep.mubr.f32.mxu0 0.0
    %845 = vmatmul.mubr.f32.gmra.mrb[0].mxu0 %v757
    %v846 = vpop.f32.mrb[0].mxu0
    %v847 = vadd.f32 0.0, %v846
    %v848 = vpop.f32.mrb[0].mxu0
    %v849 = vadd.f32 0.0, %v848
    %850 = vmatprep.mubr.f32.mxu0 0.0
    %851 = vmatmul.mubr.f32.gmra.mrb[0].mxu0 %v760
    %v852 = vpop.f32.mrb[0].mxu0
    %v853 = vadd.f32 0.0, %v852
    %v854 = vpop.f32.mrb[0].mxu0
    %v855 = vadd.f32 0.0, %v854
    %856 = vmatprep.mubr.f32.mxu0 0.0
    %857 = vmatmul.mubr.f32.gmra.mrb[0].mxu0 %v763
    %v858 = vpop.f32.mrb[0].mxu0
    %v859 = vadd.f32 0.0, %v858
    %v860 = vpop.f32.mrb[0].mxu0
    %v861 = vadd.f32 0.0, %v860
    %862 = vmatprep.mubr.f32.mxu0 0.0
    %863 = vmatmul.mubr.f32.gmra.mrb[0].mxu0 %v766
    %v864 = vpop.f32.mrb[0].mxu0
    %v865 = vadd.f32 0.0, %v864
    %v866 = vpop.f32.mrb[0].mxu0
    %v867 = vadd.f32 0.0, %v866
    %868 = vmatprep.mubr.f32.mxu0 0.0
    %869 = vmatmul.mubr.f32.gmra.mrb[0].mxu0 %v769
    %v870 = vpop.f32.mrb[0].mxu0
    %v871 = vadd.f32 0.0, %v870
    %v872 = vpop.f32.mrb[0].mxu0
    %v873 = vadd.f32 0.0, %v872
    %874 = vmatprep.mubr.f32.mxu0 0.0
    %875 = vmatmul.mubr.f32.gmra.mrb[0].mxu0 %v772
    %v876 = vpop.f32.mrb[0].mxu0
    %v877 = vadd.f32 0.0, %v876
    %v878 = vpop.f32.mrb[0].mxu0
    %v879 = vadd.f32 0.0, %v878
    %880 = vdwg.mxu0
    %v881 = vadd.f32 %v583, %v841
    %v882 = vadd.f32 %v585, %v843
    %v883 = vadd.f32 %v589, %v847
    %v884 = vadd.f32 %v591, %v849
    %v885 = vadd.f32 %v595, %v853
    %v886 = vadd.f32 %v597, %v855
    %v887 = vadd.f32 %v601, %v859
    %v888 = vadd.f32 %v603, %v861
    %v889 = vadd.f32 %v607, %v865
    %v890 = vadd.f32 %v609, %v867
    %v891 = vadd.f32 %v613, %v871
    %v892 = vadd.f32 %v615, %v873
    %v893 = vadd.f32 %v619, %v877
    %v894 = vadd.f32 %v621, %v879
    %v895 = vld [vmem:[#allocation2] sm:$0x3]
    %v897 = vlaneseq
    %v898 = vshrl.u32 %v897, 7
    %v899 = vsub.s32 0, %v898
    %v900 = vrot.slane %v895, %v899
    %v901 = vlaneseq
    %v902 = vshrl.u32 %v901, 7
    %v903 = vsub.s32 1, %v902
    %v904 = vrot.slane %v895, %v903
    %v907 = vadd.f32 %v881, %v900
    %v908 = vadd.f32 %v882, %v904
    %v909 = vadd.f32 %v883, %v900
    %v910 = vadd.f32 %v884, %v904
    %v911 = vadd.f32 %v885, %v900
    %v912 = vadd.f32 %v886, %v904
    %v913 = vadd.f32 %v887, %v900
    %v914 = vadd.f32 %v888, %v904
    %v915 = vadd.f32 %v889, %v900
    %v916 = vadd.f32 %v890, %v904
    %v917 = vadd.f32 %v891, %v900
    %v918 = vadd.f32 %v892, %v904
    %v919 = vadd.f32 %v893, %v900
    %v920 = vadd.f32 %v894, %v904
    %v921 = vmax.f32 %v907, 0.0
    %v922 = vmax.f32 %v908, 0.0
    %v923 = vmax.f32 %v909, 0.0
    %v924 = vmax.f32 %v910, 0.0
    %v925 = vmax.f32 %v911, 0.0
    %v926 = vmax.f32 %v912, 0.0
    %v927 = vmax.f32 %v913, 0.0
    %v928 = vmax.f32 %v914, 0.0
    %v929 = vmax.f32 %v915, 0.0
    %v930 = vmax.f32 %v916, 0.0
    %v931 = vmax.f32 %v917, 0.0
    %v932 = vmax.f32 %v918, 0.0
    %v933 = vmax.f32 %v919, 0.0
    %v934 = vmax.f32 %v920, 0.0
    %v935 = vld [vmem:[%s4] sm:$0xff]
    %v936 = vld [vmem:[%s4 + $0x8] sm:$0xff]
    %v937 = vld [vmem:[%s4 + $0x10] sm:$0xff]
    %v938 = vld [vmem:[%s4 + $0x18] sm:$0xf]
    %v940 = vsel %vm494, %v935, 0
    %v943 = vsel %vm494, %v936, 0
    %v946 = vsel %vm494, %v937, 0
    %v949 = vsel %vm494, %v938, 0
    %951 = vmatprep.subr.mxu0 %v922
    %952 = vmatpush1.msra.mxu0 %v921
    %953 = vmatprep.subr.mxu0 %v924
    %954 = vmatpush1.msra.mxu0 %v923
    %955 = vmatprep.subr.mxu0 %v926
    %956 = vmatpush1.msra.mxu0 %v925
    %957 = vmatprep.subr.mxu0 %v928
    %958 = vmatpush1.msra.mxu0 %v927
    %959 = vmatprep.subr.mxu0 %v930
    %960 = vmatpush1.msra.mxu0 %v929
    %961 = vmatprep.subr.mxu0 %v932
    %962 = vmatpush1.msra.mxu0 %v931
    %963 = vmatprep.subr.mxu0 %v934
    %964 = vmatpush1.msra.mxu0 %v933
    %965 = vmatprep.subr.mxu0 0.0
    %966 = vmatpush1.msra.mxu0 0.0
    %967 = vmatprep.subr.mxu0 0.0
    %968 = vmatpush1.msra.mxu0 0.0
    %969 = vmatprep.subr.mxu0 0.0
    %970 = vmatpush1.msra.mxu0 0.0
    %971 = vmatprep.subr.mxu0 0.0
    %972 = vmatpush1.msra.mxu0 0.0
    %973 = vmatprep.subr.mxu0 0.0
    %974 = vmatpush1.msra.mxu0 0.0
    %975 = vmatprep.subr.mxu0 0.0
    %976 = vmatpush1.msra.mxu0 0.0
    %977 = vmatprep.subr.mxu0 0.0
    %978 = vmatpush1.msra.mxu0 0.0
    %979 = vmatprep.subr.mxu0 0.0
    %980 = vmatpush1.msra.mxu0 0.0
    %981 = vmatprep.subr.mxu0 0.0
    %982 = vmatpush1.msra.mxu0 0.0
    %983 = vmatprep.subr.mxu0 0.0
    %984 = vmatpush1.msra.mxu0 0.0
    %985 = vmatprep.subr.mxu0 0.0
    %986 = vmatpush1.msra.mxu0 0.0
    %987 = vmatprep.subr.mxu0 0.0
    %988 = vmatpush1.msra.mxu0 0.0
    %989 = vmatprep.subr.mxu0 0.0
    %990 = vmatpush1.msra.mxu0 0.0
    %991 = vmatprep.subr.mxu0 0.0
    %992 = vmatpush1.msra.mxu0 0.0
    %993 = vmatprep.subr.mxu0 0.0
    %994 = vmatpush1.msra.mxu0 0.0
    %995 = vmatprep.subr.mxu0 0.0
    %996 = vmatpush1.msra.mxu0 0.0
    %997 = vmatprep.subr.mxu0 0.0
    %998 = vmatpush1.msra.mxu0 0.0
    %999 = vmatprep.subr.mxu0 0.0
    %1000 = vmatpush1.msra.mxu0 0.0
    %1001 = vmatprep.subr.mxu0 0.0
    %1002 = vmatpush1.msra.mxu0 0.0
    %1003 = vmatprep.subr.mxu0 0.0
    %1004 = vmatpush1.msra.mxu0 0.0
    %1005 = vmatprep.subr.mxu0 0.0
    %1006 = vmatpush1.msra.mxu0 0.0
    %1007 = vmatprep.subr.mxu0 0.0
    %1008 = vmatpush1.msra.mxu0 0.0
    %1009 = vmatprep.subr.mxu0 0.0
    %1010 = vmatpush1.msra.mxu0 0.0
    %1011 = vmatprep.subr.mxu0 0.0
    %1012 = vmatpush1.msra.mxu0 0.0
    %1013 = vmatprep.subr.mxu0 0.0
    %1014 = vmatpush1.msra.mxu0 0.0
    %1015 = vmatprep.mubr.f32.mxu0 0.0
    %1016 = vmatmul.mubr.f32.gmra.mrb[0].mxu0 %v940
    %v1017 = vpop.f32.mrb[0].mxu0
    %v1018 = vadd.f32 0.0, %v1017
    %v1019 = vpop.f32.mrb[0].mxu0
    %v1020 = vadd.f32 0.0, %v1019
    %1021 = vmatprep.mubr.f32.mxu0 0.0
    %1022 = vmatmul.mubr.f32.gmra.mrb[0].mxu0 %v943
    %v1023 = vpop.f32.mrb[0].mxu0
    %v1024 = vadd.f32 0.0, %v1023
    %v1025 = vpop.f32.mrb[0].mxu0
    %v1026 = vadd.f32 0.0, %v1025
    %1027 = vmatprep.mubr.f32.mxu0 0.0
    %1028 = vmatmul.mubr.f32.gmra.mrb[0].mxu0 %v946
    %v1029 = vpop.f32.mrb[0].mxu0
    %v1030 = vadd.f32 0.0, %v1029
    %v1031 = vpop.f32.mrb[0].mxu0
    %v1032 = vadd.f32 0.0, %v1031
    %1033 = vmatprep.mubr.f32.mxu0 0.0
    %1034 = vmatmul.mubr.f32.gmra.mrb[0].mxu0 %v949
    %v1035 = vpop.f32.mrb[0].mxu0
    %v1036 = vadd.f32 0.0, %v1035
    %v1037 = vpop.f32.mrb[0].mxu0
    %v1038 = vadd.f32 0.0, %v1037
    %1039 = vdwg.mxu0
    %s1040 = scalar_lea.vmem %s4, 32
    %v1041 = vld [vmem:[%s1040] sm:$0xff]
    %v1042 = vld [vmem:[%s1040 + $0x8] sm:$0xff]
    %v1043 = vld [vmem:[%s1040 + $0x10] sm:$0xff]
    %v1044 = vld [vmem:[%s1040 + $0x18] sm:$0xf]
    %v1046 = vsel %vm494, %v1041, 0
    %v1049 = vsel %vm494, %v1042, 0
    %v1052 = vsel %vm494, %v1043, 0
    %v1055 = vsel %vm494, %v1044, 0
    %1057 = vmatprep.subr.mxu0 %v922
    %1058 = vmatpush1.msra.mxu0 %v921
    %1059 = vmatprep.subr.mxu0 %v924
    %1060 = vmatpush1.msra.mxu0 %v923
    %1061 = vmatprep.subr.mxu0 %v926
    %1062 = vmatpush1.msra.mxu0 %v925
    %1063 = vmatprep.subr.mxu0 %v928
    %1064 = vmatpush1.msra.mxu0 %v927
    %1065 = vmatprep.subr.mxu0 %v930
    %1066 = vmatpush1.msra.mxu0 %v929
    %1067 = vmatprep.subr.mxu0 %v932
    %1068 = vmatpush1.msra.mxu0 %v931
    %1069 = vmatprep.subr.mxu0 %v934
    %1070 = vmatpush1.msra.mxu0 %v933
    %1071 = vmatprep.subr.mxu0 0.0
    %1072 = vmatpush1.msra.mxu0 0.0
    %1073 = vmatprep.subr.mxu0 0.0
    %1074 = vmatpush1.msra.mxu0 0.0
    %1075 = vmatprep.subr.mxu0 0.0
    %1076 = vmatpush1.msra.mxu0 0.0
    %1077 = vmatprep.subr.mxu0 0.0
    %1078 = vmatpush1.msra.mxu0 0.0
    %1079 = vmatprep.subr.mxu0 0.0
    %1080 = vmatpush1.msra.mxu0 0.0
    %1081 = vmatprep.subr.mxu0 0.0
    %1082 = vmatpush1.msra.mxu0 0.0
    %1083 = vmatprep.subr.mxu0 0.0
    %1084 = vmatpush1.msra.mxu0 0.0
    %1085 = vmatprep.subr.mxu0 0.0
    %1086 = vmatpush1.msra.mxu0 0.0
    %1087 = vmatprep.subr.mxu0 0.0
    %1088 = vmatpush1.msra.mxu0 0.0
    %1089 = vmatprep.subr.mxu0 0.0
    %1090 = vmatpush1.msra.mxu0 0.0
    %1091 = vmatprep.subr.mxu0 0.0
    %1092 = vmatpush1.msra.mxu0 0.0
    %1093 = vmatprep.subr.mxu0 0.0
    %1094 = vmatpush1.msra.mxu0 0.0
    %1095 = vmatprep.subr.mxu0 0.0
    %1096 = vmatpush1.msra.mxu0 0.0
    %1097 = vmatprep.subr.mxu0 0.0
    %1098 = vmatpush1.msra.mxu0 0.0
    %1099 = vmatprep.subr.mxu0 0.0
    %1100 = vmatpush1.msra.mxu0 0.0
    %1101 = vmatprep.subr.mxu0 0.0
    %1102 = vmatpush1.msra.mxu0 0.0
    %1103 = vmatprep.subr.mxu0 0.0
    %1104 = vmatpush1.msra.mxu0 0.0
    %1105 = vmatprep.subr.mxu0 0.0
    %1106 = vmatpush1.msra.mxu0 0.0
    %1107 = vmatprep.subr.mxu0 0.0
    %1108 = vmatpush1.msra.mxu0 0.0
    %1109 = vmatprep.subr.mxu0 0.0
    %1110 = vmatpush1.msra.mxu0 0.0
    %1111 = vmatprep.subr.mxu0 0.0
    %1112 = vmatpush1.msra.mxu0 0.0
    %1113 = vmatprep.subr.mxu0 0.0
    %1114 = vmatpush1.msra.mxu0 0.0
    %1115 = vmatprep.subr.mxu0 0.0
    %1116 = vmatpush1.msra.mxu0 0.0
    %1117 = vmatprep.subr.mxu0 0.0
    %1118 = vmatpush1.msra.mxu0 0.0
    %1119 = vmatprep.subr.mxu0 0.0
    %1120 = vmatpush1.msra.mxu0 0.0
    %1121 = vmatprep.mubr.f32.mxu0 0.0
    %1122 = vmatmul.mubr.f32.gmra.mrb[0].mxu0 %v1046
    %v1123 = vpop.f32.mrb[0].mxu0
    %v1124 = vadd.f32 0.0, %v1123
    %v1125 = vpop.f32.mrb[0].mxu0
    %v1126 = vadd.f32 0.0, %v1125
    %1127 = vmatprep.mubr.f32.mxu0 0.0
    %1128 = vmatmul.mubr.f32.gmra.mrb[0].mxu0 %v1049
    %v1129 = vpop.f32.mrb[0].mxu0
    %v1130 = vadd.f32 0.0, %v1129
    %v1131 = vpop.f32.mrb[0].mxu0
    %v1132 = vadd.f32 0.0, %v1131
    %1133 = vmatprep.mubr.f32.mxu0 0.0
    %1134 = vmatmul.mubr.f32.gmra.mrb[0].mxu0 %v1052
    %v1135 = vpop.f32.mrb[0].mxu0
    %v1136 = vadd.f32 0.0, %v1135
    %v1137 = vpop.f32.mrb[0].mxu0
    %v1138 = vadd.f32 0.0, %v1137
    %1139 = vmatprep.mubr.f32.mxu0 0.0
    %1140 = vmatmul.mubr.f32.gmra.mrb[0].mxu0 %v1055
    %v1141 = vpop.f32.mrb[0].mxu0
    %v1142 = vadd.f32 0.0, %v1141
    %v1143 = vpop.f32.mrb[0].mxu0
    %v1144 = vadd.f32 0.0, %v1143
    %1145 = vdwg.mxu0
    %v1146 = vmax.f32 %v1018, %v1124
    %v1147 = vmax.f32 %v1020, %v1126
    %v1148 = vmax.f32 %v1024, %v1130
    %v1149 = vmax.f32 %v1026, %v1132
    %v1150 = vmax.f32 %v1030, %v1136
    %v1151 = vmax.f32 %v1032, %v1138
    %v1152 = vmax.f32 %v1036, %v1142
    %v1153 = vmax.f32 %v1038, %v1144
    %v1154 = vld [vmem:[%s5] sm:$0xff]
    %v1155 = vld [vmem:[%s5 + $0x8] sm:$0xff]
    %v1156 = vld [vmem:[%s5 + $0x10] sm:$0xff]
    %v1157 = vld [vmem:[%s5 + $0x18] sm:$0xff]
    %v1158 = vld [vmem:[%s5 + $0x20] sm:$0xff]
    %v1159 = vld [vmem:[%s5 + $0x28] sm:$0xff]
    %v1160 = vld [vmem:[%s5 + $0x30] sm:$0xff]
    %v1161 = vld [vmem:[%s5 + $0x38] sm:$0xff]
    %v1162 = vld [vmem:[%s5 + $0x40] sm:$0xff]
    %v1163 = vld [vmem:[%s5 + $0x48] sm:$0xff]
    %v1164 = vld [vmem:[%s5 + $0x50] sm:$0xff]
    %v1165 = vld [vmem:[%s5 + $0x58] sm:$0xff]
    %v1166 = vld [vmem:[%s5 + $0x60] sm:$0xff]
    %v1167 = vld [vmem:[%s5 + $0x68] sm:$0xff]
    %v1168 = vld [vmem:[%s5 + $0x70] sm:$0xff]
    %v1169 = vld [vmem:[%s5 + $0x78] sm:$0xff]
    %v1170 = vld [vmem:[%s5 + $0x80] sm:$0xff]
    %v1171 = vld [vmem:[%s5 + $0x88] sm:$0xff]
    %v1172 = vld [vmem:[%s5 + $0x90] sm:$0xff]
    %v1173 = vld [vmem:[%s5 + $0x98] sm:$0xff]
    %v1174 = vld [vmem:[%s5 + $0xa0] sm:$0xff]
    %v1175 = vld [vmem:[%s5 + $0xa8] sm:$0xff]
    %v1176 = vld [vmem:[%s5 + $0xb0] sm:$0xff]
    %v1177 = vld [vmem:[%s5 + $0xb8] sm:$0xff]
    %v1178 = vld [vmem:[%s5 + $0xc0] sm:$0xff]
    %v1179 = vld [vmem:[%s5 + $0xc8] sm:$0xff]
    %v1180 = vld [vmem:[%s5 + $0xd0] sm:$0xff]
    %v1181 = vld [vmem:[%s5 + $0xd8] sm:$0xff]
    %vm1182 = vcmask 785408
    %v1184 = vsel %vm1182, %v1147, 0
    %v1187 = vsel %vm1182, %v1149, 0
    %v1190 = vsel %vm1182, %v1151, 0
    %v1193 = vsel %vm1182, %v1153, 0
    %1195 = vmatprep.subr.mxu0 0.0
    %1196 = vmatpush1.msra.mxu0 %v1154
    %1197 = vmatprep.subr.mxu0 0.0
    %1198 = vmatpush1.msra.mxu0 %v1155
    %1199 = vmatprep.subr.mxu0 0.0
    %1200 = vmatpush1.msra.mxu0 %v1156
    %1201 = vmatprep.subr.mxu0 0.0
    %1202 = vmatpush1.msra.mxu0 %v1157
    %1203 = vmatprep.subr.mxu0 0.0
    %1204 = vmatpush1.msra.mxu0 %v1158
    %1205 = vmatprep.subr.mxu0 0.0
    %1206 = vmatpush1.msra.mxu0 %v1159
    %1207 = vmatprep.subr.mxu0 0.0
    %1208 = vmatpush1.msra.mxu0 %v1160
    %1209 = vmatprep.subr.mxu0 0.0
    %1210 = vmatpush1.msra.mxu0 %v1161
    %1211 = vmatprep.subr.mxu0 0.0
    %1212 = vmatpush1.msra.mxu0 %v1162
    %1213 = vmatprep.subr.mxu0 0.0
    %1214 = vmatpush1.msra.mxu0 %v1163
    %1215 = vmatprep.subr.mxu0 0.0
    %1216 = vmatpush1.msra.mxu0 %v1164
    %1217 = vmatprep.subr.mxu0 0.0
    %1218 = vmatpush1.msra.mxu0 %v1165
    %1219 = vmatprep.subr.mxu0 0.0
    %1220 = vmatpush1.msra.mxu0 %v1166
    %1221 = vmatprep.subr.mxu0 0.0
    %1222 = vmatpush1.msra.mxu0 %v1167
    %1223 = vmatprep.subr.mxu0 0.0
    %1224 = vmatpush1.msra.mxu0 %v1168
    %1225 = vmatprep.subr.mxu0 0.0
    %1226 = vmatpush1.msra.mxu0 %v1169
    %1227 = vmatprep.subr.mxu0 0.0
    %1228 = vmatpush1.msra.mxu0 %v1170
    %1229 = vmatprep.subr.mxu0 0.0
    %1230 = vmatpush1.msra.mxu0 %v1171
    %1231 = vmatprep.subr.mxu0 0.0
    %1232 = vmatpush1.msra.mxu0 %v1172
    %1233 = vmatprep.subr.mxu0 0.0
    %1234 = vmatpush1.msra.mxu0 %v1173
    %1235 = vmatprep.subr.mxu0 0.0
    %1236 = vmatpush1.msra.mxu0 %v1174
    %1237 = vmatprep.subr.mxu0 0.0
    %1238 = vmatpush1.msra.mxu0 %v1175
    %1239 = vmatprep.subr.mxu0 0.0
    %1240 = vmatpush1.msra.mxu0 %v1176
    %1241 = vmatprep.subr.mxu0 0.0
    %1242 = vmatpush1.msra.mxu0 %v1177
    %1243 = vmatprep.subr.mxu0 0.0
    %1244 = vmatpush1.msra.mxu0 %v1178
    %1245 = vmatprep.subr.mxu0 0.0
    %1246 = vmatpush1.msra.mxu0 %v1179
    %1247 = vmatprep.subr.mxu0 0.0
    %1248 = vmatpush1.msra.mxu0 %v1180
    %1249 = vmatprep.subr.mxu0 0.0
    %1250 = vmatpush1.msra.mxu0 %v1181
    %1251 = vmatprep.subr.mxu0 0.0
    %1252 = vmatpush1.msra.mxu0 0.0
    %1253 = vmatprep.subr.mxu0 0.0
    %1254 = vmatpush1.msra.mxu0 0.0
    %1255 = vmatprep.subr.mxu0 0.0
    %1256 = vmatpush1.msra.mxu0 0.0
    %1257 = vmatprep.subr.mxu0 0.0
    %1258 = vmatpush1.msra.mxu0 0.0
    %1259 = vmatprep.mubr.f32.mxu0 %v1184
    %1260 = vmatmul.mubr.f32.gmra.mrb[0].mxu0 %v1146
    %v1261 = vpop.f32.mrb[0].mxu0
    %v1262 = vadd.f32 0.0, %v1261
    %v1263 = vpop.f32.mrb[0].mxu0
    %1264 = vmatprep.mubr.f32.mxu0 %v1187
    %1265 = vmatmul.mubr.f32.gmra.mrb[0].mxu0 %v1148
    %v1266 = vpop.f32.mrb[0].mxu0
    %v1267 = vadd.f32 0.0, %v1266
    %v1268 = vpop.f32.mrb[0].mxu0
    %1269 = vmatprep.mubr.f32.mxu0 %v1190
    %1270 = vmatmul.mubr.f32.gmra.mrb[0].mxu0 %v1150
    %v1271 = vpop.f32.mrb[0].mxu0
    %v1272 = vadd.f32 0.0, %v1271
    %v1273 = vpop.f32.mrb[0].mxu0
    %1274 = vmatprep.mubr.f32.mxu0 %v1193
    %1275 = vmatmul.mubr.f32.gmra.mrb[0].mxu0 %v1152
    %v1276 = vpop.f32.mrb[0].mxu0
    %v1277 = vadd.f32 0.0, %v1276
    %v1278 = vpop.f32.mrb[0].mxu0
    %1279 = vdwg.mxu0
    %s1280 = scalar_lea.vmem %s5, 224
    %v1281 = vld [vmem:[%s1280] sm:$0xff]
    %v1282 = vld [vmem:[%s1280 + $0x8] sm:$0xff]
    %v1283 = vld [vmem:[%s1280 + $0x10] sm:$0xff]
    %v1284 = vld [vmem:[%s1280 + $0x18] sm:$0xff]
    %v1285 = vld [vmem:[%s1280 + $0x20] sm:$0xff]
    %v1286 = vld [vmem:[%s1280 + $0x28] sm:$0xff]
    %v1287 = vld [vmem:[%s1280 + $0x30] sm:$0xff]
    %v1288 = vld [vmem:[%s1280 + $0x38] sm:$0xff]
    %v1289 = vld [vmem:[%s1280 + $0x40] sm:$0xff]
    %v1290 = vld [vmem:[%s1280 + $0x48] sm:$0xff]
    %v1291 = vld [vmem:[%s1280 + $0x50] sm:$0xff]
    %v1292 = vld [vmem:[%s1280 + $0x58] sm:$0xff]
    %v1293 = vld [vmem:[%s1280 + $0x60] sm:$0xff]
    %v1294 = vld [vmem:[%s1280 + $0x68] sm:$0xff]
    %v1295 = vld [vmem:[%s1280 + $0x70] sm:$0xff]
    %v1296 = vld [vmem:[%s1280 + $0x78] sm:$0xff]
    %v1297 = vld [vmem:[%s1280 + $0x80] sm:$0xff]
    %v1298 = vld [vmem:[%s1280 + $0x88] sm:$0xff]
    %v1299 = vld [vmem:[%s1280 + $0x90] sm:$0xff]
    %v1300 = vld [vmem:[%s1280 + $0x98] sm:$0xff]
    %v1301 = vld [vmem:[%s1280 + $0xa0] sm:$0xff]
    %v1302 = vld [vmem:[%s1280 + $0xa8] sm:$0xff]
    %v1303 = vld [vmem:[%s1280 + $0xb0] sm:$0xff]
    %v1304 = vld [vmem:[%s1280 + $0xb8] sm:$0xff]
    %v1305 = vld [vmem:[%s1280 + $0xc0] sm:$0xff]
    %v1306 = vld [vmem:[%s1280 + $0xc8] sm:$0xff]
    %v1307 = vld [vmem:[%s1280 + $0xd0] sm:$0xff]
    %v1308 = vld [vmem:[%s1280 + $0xd8] sm:$0xff]
    %1309 = vmatprep.subr.mxu0 0.0
    %1310 = vmatpush1.msra.mxu0 %v1281
    %1311 = vmatprep.subr.mxu0 0.0
    %1312 = vmatpush1.msra.mxu0 %v1282
    %1313 = vmatprep.subr.mxu0 0.0
    %1314 = vmatpush1.msra.mxu0 %v1283
    %1315 = vmatprep.subr.mxu0 0.0
    %1316 = vmatpush1.msra.mxu0 %v1284
    %1317 = vmatprep.subr.mxu0 0.0
    %1318 = vmatpush1.msra.mxu0 %v1285
    %1319 = vmatprep.subr.mxu0 0.0
    %1320 = vmatpush1.msra.mxu0 %v1286
    %1321 = vmatprep.subr.mxu0 0.0
    %1322 = vmatpush1.msra.mxu0 %v1287
    %1323 = vmatprep.subr.mxu0 0.0
    %1324 = vmatpush1.msra.mxu0 %v1288
    %1325 = vmatprep.subr.mxu0 0.0
    %1326 = vmatpush1.msra.mxu0 %v1289
    %1327 = vmatprep.subr.mxu0 0.0
    %1328 = vmatpush1.msra.mxu0 %v1290
    %1329 = vmatprep.subr.mxu0 0.0
    %1330 = vmatpush1.msra.mxu0 %v1291
    %1331 = vmatprep.subr.mxu0 0.0
    %1332 = vmatpush1.msra.mxu0 %v1292
    %1333 = vmatprep.subr.mxu0 0.0
    %1334 = vmatpush1.msra.mxu0 %v1293
    %1335 = vmatprep.subr.mxu0 0.0
    %1336 = vmatpush1.msra.mxu0 %v1294
    %1337 = vmatprep.subr.mxu0 0.0
    %1338 = vmatpush1.msra.mxu0 %v1295
    %1339 = vmatprep.subr.mxu0 0.0
    %1340 = vmatpush1.msra.mxu0 %v1296
    %1341 = vmatprep.subr.mxu0 0.0
    %1342 = vmatpush1.msra.mxu0 %v1297
    %1343 = vmatprep.subr.mxu0 0.0
    %1344 = vmatpush1.msra.mxu0 %v1298
    %1345 = vmatprep.subr.mxu0 0.0
    %1346 = vmatpush1.msra.mxu0 %v1299
    %1347 = vmatprep.subr.mxu0 0.0
    %1348 = vmatpush1.msra.mxu0 %v1300
    %1349 = vmatprep.subr.mxu0 0.0
    %1350 = vmatpush1.msra.mxu0 %v1301
    %1351 = vmatprep.subr.mxu0 0.0
    %1352 = vmatpush1.msra.mxu0 %v1302
    %1353 = vmatprep.subr.mxu0 0.0
    %1354 = vmatpush1.msra.mxu0 %v1303
    %1355 = vmatprep.subr.mxu0 0.0
    %1356 = vmatpush1.msra.mxu0 %v1304
    %1357 = vmatprep.subr.mxu0 0.0
    %1358 = vmatpush1.msra.mxu0 %v1305
    %1359 = vmatprep.subr.mxu0 0.0
    %1360 = vmatpush1.msra.mxu0 %v1306
    %1361 = vmatprep.subr.mxu0 0.0
    %1362 = vmatpush1.msra.mxu0 %v1307
    %1363 = vmatprep.subr.mxu0 0.0
    %1364 = vmatpush1.msra.mxu0 %v1308
    %1365 = vmatprep.subr.mxu0 0.0
    %1366 = vmatpush1.msra.mxu0 0.0
    %1367 = vmatprep.subr.mxu0 0.0
    %1368 = vmatpush1.msra.mxu0 0.0
    %1369 = vmatprep.subr.mxu0 0.0
    %1370 = vmatpush1.msra.mxu0 0.0
    %1371 = vmatprep.subr.mxu0 0.0
    %1372 = vmatpush1.msra.mxu0 0.0
    %1373 = vmatprep.mubr.f32.mxu0 %v1184
    %1374 = vmatmul.mubr.f32.gmra.mrb[0].mxu0 %v1146
    %v1375 = vpop.f32.mrb[0].mxu0
    %v1376 = vadd.f32 0.0, %v1375
    %v1377 = vpop.f32.mrb[0].mxu0
    %1378 = vmatprep.mubr.f32.mxu0 %v1187
    %1379 = vmatmul.mubr.f32.gmra.mrb[0].mxu0 %v1148
    %v1380 = vpop.f32.mrb[0].mxu0
    %v1381 = vadd.f32 0.0, %v1380
    %v1382 = vpop.f32.mrb[0].mxu0
    %1383 = vmatprep.mubr.f32.mxu0 %v1190
    %1384 = vmatmul.mubr.f32.gmra.mrb[0].mxu0 %v1150
    %v1385 = vpop.f32.mrb[0].mxu0
    %v1386 = vadd.f32 0.0, %v1385
    %v1387 = vpop.f32.mrb[0].mxu0
    %1388 = vmatprep.mubr.f32.mxu0 %v1193
    %1389 = vmatmul.mubr.f32.gmra.mrb[0].mxu0 %v1152
    %v1390 = vpop.f32.mrb[0].mxu0
    %v1391 = vadd.f32 0.0, %v1390
    %v1392 = vpop.f32.mrb[0].mxu0
    %1393 = vdwg.mxu0
    %v1394 = vmax.f32 %v1262, %v1376
    %v1395 = vmax.f32 %v1267, %v1381
    %v1396 = vmax.f32 %v1272, %v1386
    %v1397 = vmax.f32 %v1277, %v1391
    %v1398 = vld [vmem:[%s6] sm:$0xff]
    %v1399 = vld [vmem:[%s6 + $0x8] sm:$0xff]
    %v1400 = vld [vmem:[%s6 + $0x10] sm:$0xff]
    %v1401 = vld [vmem:[%s7] sm:$0xff]
    %v1402 = vld [vmem:[%s7 + $0x8] sm:$0xff]
    %v1403 = vld [vmem:[%s7 + $0x10] sm:$0xff]
    %v1404 = vld [vmem:[%s7 + $0x18] sm:$0xff]
    %v1405 = vld [vmem:[%s7 + $0x20] sm:$0xff]
    %v1406 = vld [vmem:[%s7 + $0x28] sm:$0xff]
    %v1407 = vld [vmem:[%s7 + $0x30] sm:$0xff]
    %v1408 = vld [vmem:[%s7 + $0x38] sm:$0xff]
    %v1409 = vld [vmem:[%s7 + $0x40] sm:$0xff]
    %v1410 = vld [vmem:[%s7 + $0x48] sm:$0xff]
    %v1411 = vld [vmem:[%s7 + $0x50] sm:$0xff]
    %v1412 = vld [vmem:[%s7 + $0x58] sm:$0xff]
    %v1413 = vld [vmem:[%s7 + $0x60] sm:$0xff]
    %v1414 = vld [vmem:[%s7 + $0x68] sm:$0xff]
    %vm1415 = vcmask 916480
    %v1417 = vsel %vm1415, %v1394, 0
    %v1420 = vsel %vm1415, %v1395, 0
    %v1423 = vsel %vm1415, %v1396, 0
    %v1426 = vsel %vm1415, %v1397, 0
    %1428 = vmatprep.subr.mxu0 0.0
    %1429 = vmatpush1.msra.mxu0 %v1401
    %1430 = vmatprep.subr.mxu0 0.0
    %1431 = vmatpush1.msra.mxu0 %v1402
    %1432 = vmatprep.subr.mxu0 0.0
    %1433 = vmatpush1.msra.mxu0 %v1403
    %1434 = vmatprep.subr.mxu0 0.0
    %1435 = vmatpush1.msra.mxu0 %v1404
    %1436 = vmatprep.subr.mxu0 0.0
    %1437 = vmatpush1.msra.mxu0 %v1405
    %1438 = vmatprep.subr.mxu0 0.0
    %1439 = vmatpush1.msra.mxu0 %v1406
    %1440 = vmatprep.subr.mxu0 0.0
    %1441 = vmatpush1.msra.mxu0 %v1407
    %1442 = vmatprep.subr.mxu0 0.0
    %1443 = vmatpush1.msra.mxu0 %v1408
    %1444 = vmatprep.subr.mxu0 0.0
    %1445 = vmatpush1.msra.mxu0 %v1409
    %1446 = vmatprep.subr.mxu0 0.0
    %1447 = vmatpush1.msra.mxu0 %v1410
    %1448 = vmatprep.subr.mxu0 0.0
    %1449 = vmatpush1.msra.mxu0 %v1411
    %1450 = vmatprep.subr.mxu0 0.0
    %1451 = vmatpush1.msra.mxu0 %v1412
    %1452 = vmatprep.subr.mxu0 0.0
    %1453 = vmatpush1.msra.mxu0 %v1413
    %1454 = vmatprep.subr.mxu0 0.0
    %1455 = vmatpush1.msra.mxu0 %v1414
    %1456 = vmatprep.subr.mxu0 0.0
    %1457 = vmatpush1.msra.mxu0 0.0
    %1458 = vmatprep.subr.mxu0 0.0
    %1459 = vmatpush1.msra.mxu0 0.0
    %1460 = vmatprep.subr.mxu0 0.0
    %1461 = vmatpush1.msra.mxu0 0.0
    %1462 = vmatprep.subr.mxu0 0.0
    %1463 = vmatpush1.msra.mxu0 0.0
    %1464 = vmatprep.subr.mxu0 0.0
    %1465 = vmatpush1.msra.mxu0 0.0
    %1466 = vmatprep.subr.mxu0 0.0
    %1467 = vmatpush1.msra.mxu0 0.0
    %1468 = vmatprep.subr.mxu0 0.0
    %1469 = vmatpush1.msra.mxu0 0.0
    %1470 = vmatprep.subr.mxu0 0.0
    %1471 = vmatpush1.msra.mxu0 0.0
    %1472 = vmatprep.subr.mxu0 0.0
    %1473 = vmatpush1.msra.mxu0 0.0
    %1474 = vmatprep.subr.mxu0 0.0
    %1475 = vmatpush1.msra.mxu0 0.0
    %1476 = vmatprep.subr.mxu0 0.0
    %1477 = vmatpush1.msra.mxu0 0.0
    %1478 = vmatprep.subr.mxu0 0.0
    %1479 = vmatpush1.msra.mxu0 0.0
    %1480 = vmatprep.subr.mxu0 0.0
    %1481 = vmatpush1.msra.mxu0 0.0
    %1482 = vmatprep.subr.mxu0 0.0
    %1483 = vmatpush1.msra.mxu0 0.0
    %1484 = vmatprep.subr.mxu0 0.0
    %1485 = vmatpush1.msra.mxu0 0.0
    %1486 = vmatprep.subr.mxu0 0.0
    %1487 = vmatpush1.msra.mxu0 0.0
    %1488 = vmatprep.subr.mxu0 0.0
    %1489 = vmatpush1.msra.mxu0 0.0
    %1490 = vmatprep.subr.mxu0 0.0
    %1491 = vmatpush1.msra.mxu0 0.0
    %1492 = vmatprep.mubr.f32.mxu0 0.0
    %1493 = vmatmul.mubr.f32.gmra.mrb[0].mxu0 %v1417
    %v1494 = vpop.f32.mrb[0].mxu0
    %v1495 = vadd.f32 0.0, %v1494
    %v1496 = vpop.f32.mrb[0].mxu0
    %1497 = vmatprep.mubr.f32.mxu0 0.0
    %1498 = vmatmul.mubr.f32.gmra.mrb[0].mxu0 %v1420
    %v1499 = vpop.f32.mrb[0].mxu0
    %v1500 = vadd.f32 0.0, %v1499
    %v1501 = vpop.f32.mrb[0].mxu0
    %1502 = vmatprep.mubr.f32.mxu0 0.0
    %1503 = vmatmul.mubr.f32.gmra.mrb[0].mxu0 %v1423
    %v1504 = vpop.f32.mrb[0].mxu0
    %v1505 = vadd.f32 0.0, %v1504
    %v1506 = vpop.f32.mrb[0].mxu0
    %1507 = vmatprep.mubr.f32.mxu0 0.0
    %1508 = vmatmul.mubr.f32.gmra.mrb[0].mxu0 %v1426
    %v1509 = vpop.f32.mrb[0].mxu0
    %v1510 = vadd.f32 0.0, %v1509
    %v1511 = vpop.f32.mrb[0].mxu0
    %1512 = vdwg.mxu0
    %s1513 = scalar_lea.vmem %s6, 24
    %v1514 = vld [vmem:[%s1513] sm:$0xff]
    %v1515 = vld [vmem:[%s1513 + $0x8] sm:$0xff]
    %v1516 = vld [vmem:[%s1513 + $0x10] sm:$0xff]
    %s1517 = scalar_lea.vmem %s7, 112
    %v1518 = vld [vmem:[%s1517] sm:$0xff]
    %v1519 = vld [vmem:[%s1517 + $0x8] sm:$0xff]
    %v1520 = vld [vmem:[%s1517 + $0x10] sm:$0xff]
    %v1521 = vld [vmem:[%s1517 + $0x18] sm:$0xff]
    %v1522 = vld [vmem:[%s1517 + $0x20] sm:$0xff]
    %v1523 = vld [vmem:[%s1517 + $0x28] sm:$0xff]
    %v1524 = vld [vmem:[%s1517 + $0x30] sm:$0xff]
    %v1525 = vld [vmem:[%s1517 + $0x38] sm:$0xff]
    %v1526 = vld [vmem:[%s1517 + $0x40] sm:$0xff]
    %v1527 = vld [vmem:[%s1517 + $0x48] sm:$0xff]
    %v1528 = vld [vmem:[%s1517 + $0x50] sm:$0xff]
    %v1529 = vld [vmem:[%s1517 + $0x58] sm:$0xff]
    %v1530 = vld [vmem:[%s1517 + $0x60] sm:$0xff]
    %v1531 = vld [vmem:[%s1517 + $0x68] sm:$0xff]
    %1532 = vmatprep.subr.mxu0 0.0
    %1533 = vmatpush1.msra.mxu0 %v1518
    %1534 = vmatprep.subr.mxu0 0.0
    %1535 = vmatpush1.msra.mxu0 %v1519
    %1536 = vmatprep.subr.mxu0 0.0
    %1537 = vmatpush1.msra.mxu0 %v1520
    %1538 = vmatprep.subr.mxu0 0.0
    %1539 = vmatpush1.msra.mxu0 %v1521
    %1540 = vmatprep.subr.mxu0 0.0
    %1541 = vmatpush1.msra.mxu0 %v1522
    %1542 = vmatprep.subr.mxu0 0.0
    %1543 = vmatpush1.msra.mxu0 %v1523
    %1544 = vmatprep.subr.mxu0 0.0
    %1545 = vmatpush1.msra.mxu0 %v1524
    %1546 = vmatprep.subr.mxu0 0.0
    %1547 = vmatpush1.msra.mxu0 %v1525
    %1548 = vmatprep.subr.mxu0 0.0
    %1549 = vmatpush1.msra.mxu0 %v1526
    %1550 = vmatprep.subr.mxu0 0.0
    %1551 = vmatpush1.msra.mxu0 %v1527
    %1552 = vmatprep.subr.mxu0 0.0
    %1553 = vmatpush1.msra.mxu0 %v1528
    %1554 = vmatprep.subr.mxu0 0.0
    %1555 = vmatpush1.msra.mxu0 %v1529
    %1556 = vmatprep.subr.mxu0 0.0
    %1557 = vmatpush1.msra.mxu0 %v1530
    %1558 = vmatprep.subr.mxu0 0.0
    %1559 = vmatpush1.msra.mxu0 %v1531
    %1560 = vmatprep.subr.mxu0 0.0
    %1561 = vmatpush1.msra.mxu0 0.0
    %1562 = vmatprep.subr.mxu0 0.0
    %1563 = vmatpush1.msra.mxu0 0.0
    %1564 = vmatprep.subr.mxu0 0.0
    %1565 = vmatpush1.msra.mxu0 0.0
    %1566 = vmatprep.subr.mxu0 0.0
    %1567 = vmatpush1.msra.mxu0 0.0
    %1568 = vmatprep.subr.mxu0 0.0
    %1569 = vmatpush1.msra.mxu0 0.0
    %1570 = vmatprep.subr.mxu0 0.0
    %1571 = vmatpush1.msra.mxu0 0.0
    %1572 = vmatprep.subr.mxu0 0.0
    %1573 = vmatpush1.msra.mxu0 0.0
    %1574 = vmatprep.subr.mxu0 0.0
    %1575 = vmatpush1.msra.mxu0 0.0
    %1576 = vmatprep.subr.mxu0 0.0
    %1577 = vmatpush1.msra.mxu0 0.0
    %1578 = vmatprep.subr.mxu0 0.0
    %1579 = vmatpush1.msra.mxu0 0.0
    %1580 = vmatprep.subr.mxu0 0.0
    %1581 = vmatpush1.msra.mxu0 0.0
    %1582 = vmatprep.subr.mxu0 0.0
    %1583 = vmatpush1.msra.mxu0 0.0
    %1584 = vmatprep.subr.mxu0 0.0
    %1585 = vmatpush1.msra.mxu0 0.0
    %1586 = vmatprep.subr.mxu0 0.0
    %1587 = vmatpush1.msra.mxu0 0.0
    %1588 = vmatprep.subr.mxu0 0.0
    %1589 = vmatpush1.msra.mxu0 0.0
    %1590 = vmatprep.subr.mxu0 0.0
    %1591 = vmatpush1.msra.mxu0 0.0
    %1592 = vmatprep.subr.mxu0 0.0
    %1593 = vmatpush1.msra.mxu0 0.0
    %1594 = vmatprep.subr.mxu0 0.0
    %1595 = vmatpush1.msra.mxu0 0.0
    %1596 = vmatprep.mubr.f32.mxu0 0.0
    %1597 = vmatmul.mubr.f32.gmra.mrb[0].mxu0 %v1417
    %v1598 = vpop.f32.mrb[0].mxu0
    %v1599 = vadd.f32 0.0, %v1598
    %v1600 = vpop.f32.mrb[0].mxu0
    %1601 = vmatprep.mubr.f32.mxu0 0.0
    %1602 = vmatmul.mubr.f32.gmra.mrb[0].mxu0 %v1420
    %v1603 = vpop.f32.mrb[0].mxu0
    %v1604 = vadd.f32 0.0, %v1603
    %v1605 = vpop.f32.mrb[0].mxu0
    %1606 = vmatprep.mubr.f32.mxu0 0.0
    %1607 = vmatmul.mubr.f32.gmra.mrb[0].mxu0 %v1423
    %v1608 = vpop.f32.mrb[0].mxu0
    %v1609 = vadd.f32 0.0, %v1608
    %v1610 = vpop.f32.mrb[0].mxu0
    %1611 = vmatprep.mubr.f32.mxu0 0.0
    %1612 = vmatmul.mubr.f32.gmra.mrb[0].mxu0 %v1426
    %v1613 = vpop.f32.mrb[0].mxu0
    %v1614 = vadd.f32 0.0, %v1613
    %v1615 = vpop.f32.mrb[0].mxu0
    %1616 = vdwg.mxu0
    %v1618 = vsel %vm236, %v1514, 0
    %v1621 = vsel %vm236, %v1515, 0
    %v1624 = vsel %vm236, %v1516, 0
    %v1627 = vsel %vm258, %v1614, 0
    %1629 = vmatprep.subr.mxu0 0.0
    %1630 = vmatpush1.msra.mxu0 %v1599
    %1631 = vmatprep.subr.mxu0 0.0
    %1632 = vmatpush1.msra.mxu0 %v1604
    %1633 = vmatprep.subr.mxu0 0.0
    %1634 = vmatpush1.msra.mxu0 %v1609
    %1635 = vmatprep.subr.mxu0 0.0
    %1636 = vmatpush1.msra.mxu0 %v1627
    %1637 = vmatprep.subr.mxu0 0.0
    %1638 = vmatpush1.msra.mxu0 0.0
    %1639 = vmatprep.subr.mxu0 0.0
    %1640 = vmatpush1.msra.mxu0 0.0
    %1641 = vmatprep.subr.mxu0 0.0
    %1642 = vmatpush1.msra.mxu0 0.0
    %1643 = vmatprep.subr.mxu0 0.0
    %1644 = vmatpush1.msra.mxu0 0.0
    %1645 = vmatprep.subr.mxu0 0.0
    %1646 = vmatpush1.msra.mxu0 0.0
    %1647 = vmatprep.subr.mxu0 0.0
    %1648 = vmatpush1.msra.mxu0 0.0
    %1649 = vmatprep.subr.mxu0 0.0
    %1650 = vmatpush1.msra.mxu0 0.0
    %1651 = vmatprep.subr.mxu0 0.0
    %1652 = vmatpush1.msra.mxu0 0.0
    %1653 = vmatprep.subr.mxu0 0.0
    %1654 = vmatpush1.msra.mxu0 0.0
    %1655 = vmatprep.subr.mxu0 0.0
    %1656 = vmatpush1.msra.mxu0 0.0
    %1657 = vmatprep.subr.mxu0 0.0
    %1658 = vmatpush1.msra.mxu0 0.0
    %1659 = vmatprep.subr.mxu0 0.0
    %1660 = vmatpush1.msra.mxu0 0.0
    %1661 = vmatprep.subr.mxu0 0.0
    %1662 = vmatpush1.msra.mxu0 0.0
    %1663 = vmatprep.subr.mxu0 0.0
    %1664 = vmatpush1.msra.mxu0 0.0
    %1665 = vmatprep.subr.mxu0 0.0
    %1666 = vmatpush1.msra.mxu0 0.0
    %1667 = vmatprep.subr.mxu0 0.0
    %1668 = vmatpush1.msra.mxu0 0.0
    %1669 = vmatprep.subr.mxu0 0.0
    %1670 = vmatpush1.msra.mxu0 0.0
    %1671 = vmatprep.subr.mxu0 0.0
    %1672 = vmatpush1.msra.mxu0 0.0
    %1673 = vmatprep.subr.mxu0 0.0
    %1674 = vmatpush1.msra.mxu0 0.0
    %1675 = vmatprep.subr.mxu0 0.0
    %1676 = vmatpush1.msra.mxu0 0.0
    %1677 = vmatprep.subr.mxu0 0.0
    %1678 = vmatpush1.msra.mxu0 0.0
    %1679 = vmatprep.subr.mxu0 0.0
    %1680 = vmatpush1.msra.mxu0 0.0
    %1681 = vmatprep.subr.mxu0 0.0
    %1682 = vmatpush1.msra.mxu0 0.0
    %1683 = vmatprep.subr.mxu0 0.0
    %1684 = vmatpush1.msra.mxu0 0.0
    %1685 = vmatprep.subr.mxu0 0.0
    %1686 = vmatpush1.msra.mxu0 0.0
    %1687 = vmatprep.subr.mxu0 0.0
    %1688 = vmatpush1.msra.mxu0 0.0
    %1689 = vmatprep.subr.mxu0 0.0
    %1690 = vmatpush1.msra.mxu0 0.0
    %1691 = vmatprep.subr.mxu0 0.0
    %1692 = vmatpush1.msra.mxu0 0.0
    %1693 = vmatprep.mubr.f32.mxu0 0.0
    %1694 = vmatmul.mubr.f32.gmra.mrb[0].mxu0 %v1618
    %v1695 = vpop.f32.mrb[0].mxu0
    %v1696 = vadd.f32 0.0, %v1695
    %v1697 = vpop.f32.mrb[0].mxu0
    %1698 = vmatprep.mubr.f32.mxu0 0.0
    %1699 = vmatmul.mubr.f32.gmra.mrb[0].mxu0 %v1621
    %v1700 = vpop.f32.mrb[0].mxu0
    %v1701 = vadd.f32 0.0, %v1700
    %v1702 = vpop.f32.mrb[0].mxu0
    %1703 = vmatprep.mubr.f32.mxu0 0.0
    %1704 = vmatmul.mubr.f32.gmra.mrb[0].mxu0 %v1624
    %v1705 = vpop.f32.mrb[0].mxu0
    %v1706 = vadd.f32 0.0, %v1705
    %v1707 = vpop.f32.mrb[0].mxu0
    %1708 = vdwg.mxu0
    %v1710 = vsel %vm236, %v1398, 0
    %v1713 = vsel %vm236, %v1399, 0
    %v1716 = vsel %vm236, %v1400, 0
    %v1719 = vsel %vm258, %v1510, 0
    %1721 = vmatprep.subr.mxu0 0.0
    %1722 = vmatpush1.msra.mxu0 %v1495
    %1723 = vmatprep.subr.mxu0 0.0
    %1724 = vmatpush1.msra.mxu0 %v1500
    %1725 = vmatprep.subr.mxu0 0.0
    %1726 = vmatpush1.msra.mxu0 %v1505
    %1727 = vmatprep.subr.mxu0 0.0
    %1728 = vmatpush1.msra.mxu0 %v1719
    %1729 = vmatprep.subr.mxu0 0.0
    %1730 = vmatpush1.msra.mxu0 0.0
    %1731 = vmatprep.subr.mxu0 0.0
    %1732 = vmatpush1.msra.mxu0 0.0
    %1733 = vmatprep.subr.mxu0 0.0
    %1734 = vmatpush1.msra.mxu0 0.0
    %1735 = vmatprep.subr.mxu0 0.0
    %1736 = vmatpush1.msra.mxu0 0.0
    %1737 = vmatprep.subr.mxu0 0.0
    %1738 = vmatpush1.msra.mxu0 0.0
    %1739 = vmatprep.subr.mxu0 0.0
    %1740 = vmatpush1.msra.mxu0 0.0
    %1741 = vmatprep.subr.mxu0 0.0
    %1742 = vmatpush1.msra.mxu0 0.0
    %1743 = vmatprep.subr.mxu0 0.0
    %1744 = vmatpush1.msra.mxu0 0.0
    %1745 = vmatprep.subr.mxu0 0.0
    %1746 = vmatpush1.msra.mxu0 0.0
    %1747 = vmatprep.subr.mxu0 0.0
    %1748 = vmatpush1.msra.mxu0 0.0
    %1749 = vmatprep.subr.mxu0 0.0
    %1750 = vmatpush1.msra.mxu0 0.0
    %1751 = vmatprep.subr.mxu0 0.0
    %1752 = vmatpush1.msra.mxu0 0.0
    %1753 = vmatprep.subr.mxu0 0.0
    %1754 = vmatpush1.msra.mxu0 0.0
    %1755 = vmatprep.subr.mxu0 0.0
    %1756 = vmatpush1.msra.mxu0 0.0
    %1757 = vmatprep.subr.mxu0 0.0
    %1758 = vmatpush1.msra.mxu0 0.0
    %1759 = vmatprep.subr.mxu0 0.0
    %1760 = vmatpush1.msra.mxu0 0.0
    %1761 = vmatprep.subr.mxu0 0.0
    %1762 = vmatpush1.msra.mxu0 0.0
    %1763 = vmatprep.subr.mxu0 0.0
    %1764 = vmatpush1.msra.mxu0 0.0
    %1765 = vmatprep.subr.mxu0 0.0
    %1766 = vmatpush1.msra.mxu0 0.0
    %1767 = vmatprep.subr.mxu0 0.0
    %1768 = vmatpush1.msra.mxu0 0.0
    %1769 = vmatprep.subr.mxu0 0.0
    %1770 = vmatpush1.msra.mxu0 0.0
    %1771 = vmatprep.subr.mxu0 0.0
    %1772 = vmatpush1.msra.mxu0 0.0
    %1773 = vmatprep.subr.mxu0 0.0
    %1774 = vmatpush1.msra.mxu0 0.0
    %1775 = vmatprep.subr.mxu0 0.0
    %1776 = vmatpush1.msra.mxu0 0.0
    %1777 = vmatprep.subr.mxu0 0.0
    %1778 = vmatpush1.msra.mxu0 0.0
    %1779 = vmatprep.subr.mxu0 0.0
    %1780 = vmatpush1.msra.mxu0 0.0
    %1781 = vmatprep.subr.mxu0 0.0
    %1782 = vmatpush1.msra.mxu0 0.0
    %1783 = vmatprep.subr.mxu0 0.0
    %1784 = vmatpush1.msra.mxu0 0.0
    %1785 = vmatprep.mubr.f32.mxu0 0.0
    %1786 = vmatmul.mubr.f32.gmra.mrb[0].mxu0 %v1710
    %v1787 = vpop.f32.mrb[0].mxu0
    %v1788 = vadd.f32 %v1696, %v1787
    %v1789 = vpop.f32.mrb[0].mxu0
    %1790 = vmatprep.mubr.f32.mxu0 0.0
    %1791 = vmatmul.mubr.f32.gmra.mrb[0].mxu0 %v1713
    %v1792 = vpop.f32.mrb[0].mxu0
    %v1793 = vadd.f32 %v1701, %v1792
    %v1794 = vpop.f32.mrb[0].mxu0
    %1795 = vmatprep.mubr.f32.mxu0 0.0
    %1796 = vmatmul.mubr.f32.gmra.mrb[0].mxu0 %v1716
    %v1797 = vpop.f32.mrb[0].mxu0
    %v1798 = vadd.f32 %v1706, %v1797
    %v1799 = vpop.f32.mrb[0].mxu0
    %1800 = vdwg.mxu0
    %s1801 = scalar_lea.vmem %s6, 48
    %v1802 = vld [vmem:[%s1801] sm:$0xff]
    %v1803 = vld [vmem:[%s1801 + $0x8] sm:$0xff]
    %v1804 = vld [vmem:[%s1801 + $0x10] sm:$0xff]
    %s1805 = scalar_lea.vmem %s7, 224
    %v1806 = vld [vmem:[%s1805] sm:$0xff]
    %v1807 = vld [vmem:[%s1805 + $0x8] sm:$0xff]
    %v1808 = vld [vmem:[%s1805 + $0x10] sm:$0xff]
    %v1809 = vld [vmem:[%s1805 + $0x18] sm:$0xff]
    %v1810 = vld [vmem:[%s1805 + $0x20] sm:$0xff]
    %v1811 = vld [vmem:[%s1805 + $0x28] sm:$0xff]
    %v1812 = vld [vmem:[%s1805 + $0x30] sm:$0xff]
    %v1813 = vld [vmem:[%s1805 + $0x38] sm:$0xff]
    %v1814 = vld [vmem:[%s1805 + $0x40] sm:$0xff]
    %v1815 = vld [vmem:[%s1805 + $0x48] sm:$0xff]
    %v1816 = vld [vmem:[%s1805 + $0x50] sm:$0xff]
    %v1817 = vld [vmem:[%s1805 + $0x58] sm:$0xff]
    %v1818 = vld [vmem:[%s1805 + $0x60] sm:$0xff]
    %v1819 = vld [vmem:[%s1805 + $0x68] sm:$0xff]
    %1820 = vmatprep.subr.mxu0 0.0
    %1821 = vmatpush1.msra.mxu0 %v1806
    %1822 = vmatprep.subr.mxu0 0.0
    %1823 = vmatpush1.msra.mxu0 %v1807
    %1824 = vmatprep.subr.mxu0 0.0
    %1825 = vmatpush1.msra.mxu0 %v1808
    %1826 = vmatprep.subr.mxu0 0.0
    %1827 = vmatpush1.msra.mxu0 %v1809
    %1828 = vmatprep.subr.mxu0 0.0
    %1829 = vmatpush1.msra.mxu0 %v1810
    %1830 = vmatprep.subr.mxu0 0.0
    %1831 = vmatpush1.msra.mxu0 %v1811
    %1832 = vmatprep.subr.mxu0 0.0
    %1833 = vmatpush1.msra.mxu0 %v1812
    %1834 = vmatprep.subr.mxu0 0.0
    %1835 = vmatpush1.msra.mxu0 %v1813
    %1836 = vmatprep.subr.mxu0 0.0
    %1837 = vmatpush1.msra.mxu0 %v1814
    %1838 = vmatprep.subr.mxu0 0.0
    %1839 = vmatpush1.msra.mxu0 %v1815
    %1840 = vmatprep.subr.mxu0 0.0
    %1841 = vmatpush1.msra.mxu0 %v1816
    %1842 = vmatprep.subr.mxu0 0.0
    %1843 = vmatpush1.msra.mxu0 %v1817
    %1844 = vmatprep.subr.mxu0 0.0
    %1845 = vmatpush1.msra.mxu0 %v1818
    %1846 = vmatprep.subr.mxu0 0.0
    %1847 = vmatpush1.msra.mxu0 %v1819
    %1848 = vmatprep.subr.mxu0 0.0
    %1849 = vmatpush1.msra.mxu0 0.0
    %1850 = vmatprep.subr.mxu0 0.0
    %1851 = vmatpush1.msra.mxu0 0.0
    %1852 = vmatprep.subr.mxu0 0.0
    %1853 = vmatpush1.msra.mxu0 0.0
    %1854 = vmatprep.subr.mxu0 0.0
    %1855 = vmatpush1.msra.mxu0 0.0
    %1856 = vmatprep.subr.mxu0 0.0
    %1857 = vmatpush1.msra.mxu0 0.0
    %1858 = vmatprep.subr.mxu0 0.0
    %1859 = vmatpush1.msra.mxu0 0.0
    %1860 = vmatprep.subr.mxu0 0.0
    %1861 = vmatpush1.msra.mxu0 0.0
    %1862 = vmatprep.subr.mxu0 0.0
    %1863 = vmatpush1.msra.mxu0 0.0
    %1864 = vmatprep.subr.mxu0 0.0
    %1865 = vmatpush1.msra.mxu0 0.0
    %1866 = vmatprep.subr.mxu0 0.0
    %1867 = vmatpush1.msra.mxu0 0.0
    %1868 = vmatprep.subr.mxu0 0.0
    %1869 = vmatpush1.msra.mxu0 0.0
    %1870 = vmatprep.subr.mxu0 0.0
    %1871 = vmatpush1.msra.mxu0 0.0
    %1872 = vmatprep.subr.mxu0 0.0
    %1873 = vmatpush1.msra.mxu0 0.0
    %1874 = vmatprep.subr.mxu0 0.0
    %1875 = vmatpush1.msra.mxu0 0.0
    %1876 = vmatprep.subr.mxu0 0.0
    %1877 = vmatpush1.msra.mxu0 0.0
    %1878 = vmatprep.subr.mxu0 0.0
    %1879 = vmatpush1.msra.mxu0 0.0
    %1880 = vmatprep.subr.mxu0 0.0
    %1881 = vmatpush1.msra.mxu0 0.0
    %1882 = vmatprep.subr.mxu0 0.0
    %1883 = vmatpush1.msra.mxu0 0.0
    %1884 = vmatprep.mubr.f32.mxu0 0.0
    %1885 = vmatmul.mubr.f32.gmra.mrb[0].mxu0 %v1417
    %v1886 = vpop.f32.mrb[0].mxu0
    %v1887 = vadd.f32 0.0, %v1886
    %v1888 = vpop.f32.mrb[0].mxu0
    %1889 = vmatprep.mubr.f32.mxu0 0.0
    %1890 = vmatmul.mubr.f32.gmra.mrb[0].mxu0 %v1420
    %v1891 = vpop.f32.mrb[0].mxu0
    %v1892 = vadd.f32 0.0, %v1891
    %v1893 = vpop.f32.mrb[0].mxu0
    %1894 = vmatprep.mubr.f32.mxu0 0.0
    %1895 = vmatmul.mubr.f32.gmra.mrb[0].mxu0 %v1423
    %v1896 = vpop.f32.mrb[0].mxu0
    %v1897 = vadd.f32 0.0, %v1896
    %v1898 = vpop.f32.mrb[0].mxu0
    %1899 = vmatprep.mubr.f32.mxu0 0.0
    %1900 = vmatmul.mubr.f32.gmra.mrb[0].mxu0 %v1426
    %v1901 = vpop.f32.mrb[0].mxu0
    %v1902 = vadd.f32 0.0, %v1901
    %v1903 = vpop.f32.mrb[0].mxu0
    %1904 = vdwg.mxu0
    %v1906 = vsel %vm236, %v1802, 0
    %v1909 = vsel %vm236, %v1803, 0
    %v1912 = vsel %vm236, %v1804, 0
    %v1915 = vsel %vm258, %v1902, 0
    %1917 = vmatprep.subr.mxu0 0.0
    %1918 = vmatpush1.msra.mxu0 %v1887
    %1919 = vmatprep.subr.mxu0 0.0
    %1920 = vmatpush1.msra.mxu0 %v1892
    %1921 = vmatprep.subr.mxu0 0.0
    %1922 = vmatpush1.msra.mxu0 %v1897
    %1923 = vmatprep.subr.mxu0 0.0
    %1924 = vmatpush1.msra.mxu0 %v1915
    %1925 = vmatprep.subr.mxu0 0.0
    %1926 = vmatpush1.msra.mxu0 0.0
    %1927 = vmatprep.subr.mxu0 0.0
    %1928 = vmatpush1.msra.mxu0 0.0
    %1929 = vmatprep.subr.mxu0 0.0
    %1930 = vmatpush1.msra.mxu0 0.0
    %1931 = vmatprep.subr.mxu0 0.0
    %1932 = vmatpush1.msra.mxu0 0.0
    %1933 = vmatprep.subr.mxu0 0.0
    %1934 = vmatpush1.msra.mxu0 0.0
    %1935 = vmatprep.subr.mxu0 0.0
    %1936 = vmatpush1.msra.mxu0 0.0
    %1937 = vmatprep.subr.mxu0 0.0
    %1938 = vmatpush1.msra.mxu0 0.0
    %1939 = vmatprep.subr.mxu0 0.0
    %1940 = vmatpush1.msra.mxu0 0.0
    %1941 = vmatprep.subr.mxu0 0.0
    %1942 = vmatpush1.msra.mxu0 0.0
    %1943 = vmatprep.subr.mxu0 0.0
    %1944 = vmatpush1.msra.mxu0 0.0
    %1945 = vmatprep.subr.mxu0 0.0
    %1946 = vmatpush1.msra.mxu0 0.0
    %1947 = vmatprep.subr.mxu0 0.0
    %1948 = vmatpush1.msra.mxu0 0.0
    %1949 = vmatprep.subr.mxu0 0.0
    %1950 = vmatpush1.msra.mxu0 0.0
    %1951 = vmatprep.subr.mxu0 0.0
    %1952 = vmatpush1.msra.mxu0 0.0
    %1953 = vmatprep.subr.mxu0 0.0
    %1954 = vmatpush1.msra.mxu0 0.0
    %1955 = vmatprep.subr.mxu0 0.0
    %1956 = vmatpush1.msra.mxu0 0.0
    %1957 = vmatprep.subr.mxu0 0.0
    %1958 = vmatpush1.msra.mxu0 0.0
    %1959 = vmatprep.subr.mxu0 0.0
    %1960 = vmatpush1.msra.mxu0 0.0
    %1961 = vmatprep.subr.mxu0 0.0
    %1962 = vmatpush1.msra.mxu0 0.0
    %1963 = vmatprep.subr.mxu0 0.0
    %1964 = vmatpush1.msra.mxu0 0.0
    %1965 = vmatprep.subr.mxu0 0.0
    %1966 = vmatpush1.msra.mxu0 0.0
    %1967 = vmatprep.subr.mxu0 0.0
    %1968 = vmatpush1.msra.mxu0 0.0
    %1969 = vmatprep.subr.mxu0 0.0
    %1970 = vmatpush1.msra.mxu0 0.0
    %1971 = vmatprep.subr.mxu0 0.0
    %1972 = vmatpush1.msra.mxu0 0.0
    %1973 = vmatprep.subr.mxu0 0.0
    %1974 = vmatpush1.msra.mxu0 0.0
    %1975 = vmatprep.subr.mxu0 0.0
    %1976 = vmatpush1.msra.mxu0 0.0
    %1977 = vmatprep.subr.mxu0 0.0
    %1978 = vmatpush1.msra.mxu0 0.0
    %1979 = vmatprep.subr.mxu0 0.0
    %1980 = vmatpush1.msra.mxu0 0.0
    %1981 = vmatprep.mubr.f32.mxu0 0.0
    %1982 = vmatmul.mubr.f32.gmra.mrb[0].mxu0 %v1906
    %v1983 = vpop.f32.mrb[0].mxu0
    %v1984 = vadd.f32 0.0, %v1983
    %v1985 = vpop.f32.mrb[0].mxu0
    %1986 = vmatprep.mubr.f32.mxu0 0.0
    %1987 = vmatmul.mubr.f32.gmra.mrb[0].mxu0 %v1909
    %v1988 = vpop.f32.mrb[0].mxu0
    %v1989 = vadd.f32 0.0, %v1988
    %v1990 = vpop.f32.mrb[0].mxu0
    %1991 = vmatprep.mubr.f32.mxu0 0.0
    %1992 = vmatmul.mubr.f32.gmra.mrb[0].mxu0 %v1912
    %v1993 = vpop.f32.mrb[0].mxu0
    %v1994 = vadd.f32 0.0, %v1993
    %v1995 = vpop.f32.mrb[0].mxu0
    %1996 = vdwg.mxu0
    %v1997 = vadd.f32 %v1788, %v1984
    %v1998 = vadd.f32 %v1793, %v1989
    %v1999 = vadd.f32 %v1798, %v1994
    %v2000 = vld [vmem:[%s8] sm:$0x1]
    %v2002 = vlaneseq
    %v2003 = vshrl.u32 %v2002, 7
    %v2004 = vsub.s32 0, %v2003
    %v2005 = vrot.slane %v2000, %v2004
    %v2007 = vadd.f32 %v1997, %v2005
    %v2008 = vadd.f32 %v1998, %v2005
    %v2009 = vadd.f32 %v1999, %v2005
    %v2010 = vmax.f32 %v2007, 0.0
    %v2011 = vmax.f32 %v2008, 0.0
    %v2012 = vmax.f32 %v2009, 0.0
    %v2013 = vld [vmem:[%s9] sm:$0xff]
    %v2014 = vld [vmem:[%s9 + $0x8] sm:$0xf]
    %vm2015 = vcmask 195584
    %v2017 = vsel %vm2015, %v2013, 0
    %v2020 = vsel %vm2015, %v2014, 0
    %2022 = vmatprep.subr.mxu0 0.0
    %2023 = vmatpush1.msra.mxu0 %v2010
    %2024 = vmatprep.subr.mxu0 0.0
    %2025 = vmatpush1.msra.mxu0 %v2011
    %2026 = vmatprep.subr.mxu0 0.0
    %2027 = vmatpush1.msra.mxu0 %v2012
    %2028 = vmatprep.subr.mxu0 0.0
    %2029 = vmatpush1.msra.mxu0 0.0
    %2030 = vmatprep.subr.mxu0 0.0
    %2031 = vmatpush1.msra.mxu0 0.0
    %2032 = vmatprep.subr.mxu0 0.0
    %2033 = vmatpush1.msra.mxu0 0.0
    %2034 = vmatprep.subr.mxu0 0.0
    %2035 = vmatpush1.msra.mxu0 0.0
    %2036 = vmatprep.subr.mxu0 0.0
    %2037 = vmatpush1.msra.mxu0 0.0
    %2038 = vmatprep.subr.mxu0 0.0
    %2039 = vmatpush1.msra.mxu0 0.0
    %2040 = vmatprep.subr.mxu0 0.0
    %2041 = vmatpush1.msra.mxu0 0.0
    %2042 = vmatprep.subr.mxu0 0.0
    %2043 = vmatpush1.msra.mxu0 0.0
    %2044 = vmatprep.subr.mxu0 0.0
    %2045 = vmatpush1.msra.mxu0 0.0
    %2046 = vmatprep.subr.mxu0 0.0
    %2047 = vmatpush1.msra.mxu0 0.0
    %2048 = vmatprep.subr.mxu0 0.0
    %2049 = vmatpush1.msra.mxu0 0.0
    %2050 = vmatprep.subr.mxu0 0.0
    %2051 = vmatpush1.msra.mxu0 0.0
    %2052 = vmatprep.subr.mxu0 0.0
    %2053 = vmatpush1.msra.mxu0 0.0
    %2054 = vmatprep.subr.mxu0 0.0
    %2055 = vmatpush1.msra.mxu0 0.0
    %2056 = vmatprep.subr.mxu0 0.0
    %2057 = vmatpush1.msra.mxu0 0.0
    %2058 = vmatprep.subr.mxu0 0.0
    %2059 = vmatpush1.msra.mxu0 0.0
    %2060 = vmatprep.subr.mxu0 0.0
    %2061 = vmatpush1.msra.mxu0 0.0
    %2062 = vmatprep.subr.mxu0 0.0
    %2063 = vmatpush1.msra.mxu0 0.0
    %2064 = vmatprep.subr.mxu0 0.0
    %2065 = vmatpush1.msra.mxu0 0.0
    %2066 = vmatprep.subr.mxu0 0.0
    %2067 = vmatpush1.msra.mxu0 0.0
    %2068 = vmatprep.subr.mxu0 0.0
    %2069 = vmatpush1.msra.mxu0 0.0
    %2070 = vmatprep.subr.mxu0 0.0
    %2071 = vmatpush1.msra.mxu0 0.0
    %2072 = vmatprep.subr.mxu0 0.0
    %2073 = vmatpush1.msra.mxu0 0.0
    %2074 = vmatprep.subr.mxu0 0.0
    %2075 = vmatpush1.msra.mxu0 0.0
    %2076 = vmatprep.subr.mxu0 0.0
    %2077 = vmatpush1.msra.mxu0 0.0
    %2078 = vmatprep.subr.mxu0 0.0
    %2079 = vmatpush1.msra.mxu0 0.0
    %2080 = vmatprep.subr.mxu0 0.0
    %2081 = vmatpush1.msra.mxu0 0.0
    %2082 = vmatprep.subr.mxu0 0.0
    %2083 = vmatpush1.msra.mxu0 0.0
    %2084 = vmatprep.subr.mxu0 0.0
    %2085 = vmatpush1.msra.mxu0 0.0
    %2086 = vmatprep.mubr.f32.mxu0 0.0
    %2087 = vmatmul.mubr.f32.gmra.mrb[0].mxu0 %v2017
    %v2088 = vpop.f32.mrb[0].mxu0
    %v2089 = vadd.f32 0.0, %v2088
    %v2090 = vpop.f32.mrb[0].mxu0
    %2091 = vmatprep.mubr.f32.mxu0 0.0
    %2092 = vmatmul.mubr.f32.gmra.mrb[0].mxu0 %v2020
    %v2093 = vpop.f32.mrb[0].mxu0
    %v2094 = vadd.f32 0.0, %v2093
    %v2095 = vpop.f32.mrb[0].mxu0
    %2096 = vdwg.mxu0
    %s2097 = scalar_lea.vmem %s9, 16
    %v2098 = vld [vmem:[%s2097] sm:$0xff]
    %v2099 = vld [vmem:[%s2097 + $0x8] sm:$0xf]
    %v2101 = vsel %vm2015, %v2098, 0
    %v2104 = vsel %vm2015, %v2099, 0
    %2106 = vmatprep.subr.mxu0 0.0
    %2107 = vmatpush1.msra.mxu0 %v2010
    %2108 = vmatprep.subr.mxu0 0.0
    %2109 = vmatpush1.msra.mxu0 %v2011
    %2110 = vmatprep.subr.mxu0 0.0
    %2111 = vmatpush1.msra.mxu0 %v2012
    %2112 = vmatprep.subr.mxu0 0.0
    %2113 = vmatpush1.msra.mxu0 0.0
    %2114 = vmatprep.subr.mxu0 0.0
    %2115 = vmatpush1.msra.mxu0 0.0
    %2116 = vmatprep.subr.mxu0 0.0
    %2117 = vmatpush1.msra.mxu0 0.0
    %2118 = vmatprep.subr.mxu0 0.0
    %2119 = vmatpush1.msra.mxu0 0.0
    %2120 = vmatprep.subr.mxu0 0.0
    %2121 = vmatpush1.msra.mxu0 0.0
    %2122 = vmatprep.subr.mxu0 0.0
    %2123 = vmatpush1.msra.mxu0 0.0
    %2124 = vmatprep.subr.mxu0 0.0
    %2125 = vmatpush1.msra.mxu0 0.0
    %2126 = vmatprep.subr.mxu0 0.0
    %2127 = vmatpush1.msra.mxu0 0.0
    %2128 = vmatprep.subr.mxu0 0.0
    %2129 = vmatpush1.msra.mxu0 0.0
    %2130 = vmatprep.subr.mxu0 0.0
    %2131 = vmatpush1.msra.mxu0 0.0
    %2132 = vmatprep.subr.mxu0 0.0
    %2133 = vmatpush1.msra.mxu0 0.0
    %2134 = vmatprep.subr.mxu0 0.0
    %2135 = vmatpush1.msra.mxu0 0.0
    %2136 = vmatprep.subr.mxu0 0.0
    %2137 = vmatpush1.msra.mxu0 0.0
    %2138 = vmatprep.subr.mxu0 0.0
    %2139 = vmatpush1.msra.mxu0 0.0
    %2140 = vmatprep.subr.mxu0 0.0
    %2141 = vmatpush1.msra.mxu0 0.0
    %2142 = vmatprep.subr.mxu0 0.0
    %2143 = vmatpush1.msra.mxu0 0.0
    %2144 = vmatprep.subr.mxu0 0.0
    %2145 = vmatpush1.msra.mxu0 0.0
    %2146 = vmatprep.subr.mxu0 0.0
    %2147 = vmatpush1.msra.mxu0 0.0
    %2148 = vmatprep.subr.mxu0 0.0
    %2149 = vmatpush1.msra.mxu0 0.0
    %2150 = vmatprep.subr.mxu0 0.0
    %2151 = vmatpush1.msra.mxu0 0.0
    %2152 = vmatprep.subr.mxu0 0.0
    %2153 = vmatpush1.msra.mxu0 0.0
    %2154 = vmatprep.subr.mxu0 0.0
    %2155 = vmatpush1.msra.mxu0 0.0
    %2156 = vmatprep.subr.mxu0 0.0
    %2157 = vmatpush1.msra.mxu0 0.0
    %2158 = vmatprep.subr.mxu0 0.0
    %2159 = vmatpush1.msra.mxu0 0.0
    %2160 = vmatprep.subr.mxu0 0.0
    %2161 = vmatpush1.msra.mxu0 0.0
    %2162 = vmatprep.subr.mxu0 0.0
    %2163 = vmatpush1.msra.mxu0 0.0
    %2164 = vmatprep.subr.mxu0 0.0
    %2165 = vmatpush1.msra.mxu0 0.0
    %2166 = vmatprep.subr.mxu0 0.0
    %2167 = vmatpush1.msra.mxu0 0.0
    %2168 = vmatprep.subr.mxu0 0.0
    %2169 = vmatpush1.msra.mxu0 0.0
    %2170 = vmatprep.mubr.f32.mxu0 0.0
    %2171 = vmatmul.mubr.f32.gmra.mrb[0].mxu0 %v2101
    %v2172 = vpop.f32.mrb[0].mxu0
    %v2173 = vadd.f32 0.0, %v2172
    %v2174 = vpop.f32.mrb[0].mxu0
    %2175 = vmatprep.mubr.f32.mxu0 0.0
    %2176 = vmatmul.mubr.f32.gmra.mrb[0].mxu0 %v2104
    %v2177 = vpop.f32.mrb[0].mxu0
    %v2178 = vadd.f32 0.0, %v2177
    %v2179 = vpop.f32.mrb[0].mxu0
    %2180 = vdwg.mxu0
    %v2181 = vmax.f32 %v2089, %v2173
    %v2182 = vmax.f32 %v2094, %v2178
    %v2183 = vld [vmem:[%s10] sm:$0xff]
    %v2184 = vld [vmem:[%s10 + $0x8] sm:$0xff]
    %v2185 = vld [vmem:[%s10 + $0x10] sm:$0xff]
    %v2186 = vld [vmem:[%s10 + $0x18] sm:$0xff]
    %v2187 = vld [vmem:[%s10 + $0x20] sm:$0xff]
    %v2188 = vld [vmem:[%s10 + $0x28] sm:$0xff]
    %v2189 = vld [vmem:[%s10 + $0x30] sm:$0xff]
    %v2190 = vld [vmem:[%s10 + $0x38] sm:$0xff]
    %v2191 = vld [vmem:[%s10 + $0x40] sm:$0xff]
    %v2192 = vld [vmem:[%s10 + $0x48] sm:$0xff]
    %v2193 = vld [vmem:[%s10 + $0x50] sm:$0xff]
    %v2194 = vld [vmem:[%s10 + $0x58] sm:$0xff]
    %v2196 = vsel %vm1182, %v2181, 0
    %v2199 = vsel %vm1182, %v2182, 0
    %2201 = vmatprep.subr.mxu0 0.0
    %2202 = vmatpush1.msra.mxu0 %v2183
    %2203 = vmatprep.subr.mxu0 0.0
    %2204 = vmatpush1.msra.mxu0 %v2184
    %2205 = vmatprep.subr.mxu0 0.0
    %2206 = vmatpush1.msra.mxu0 %v2185
    %2207 = vmatprep.subr.mxu0 0.0
    %2208 = vmatpush1.msra.mxu0 %v2186
    %2209 = vmatprep.subr.mxu0 0.0
    %2210 = vmatpush1.msra.mxu0 %v2187
    %2211 = vmatprep.subr.mxu0 0.0
    %2212 = vmatpush1.msra.mxu0 %v2188
    %2213 = vmatprep.subr.mxu0 0.0
    %2214 = vmatpush1.msra.mxu0 %v2189
    %2215 = vmatprep.subr.mxu0 0.0
    %2216 = vmatpush1.msra.mxu0 %v2190
    %2217 = vmatprep.subr.mxu0 0.0
    %2218 = vmatpush1.msra.mxu0 %v2191
    %2219 = vmatprep.subr.mxu0 0.0
    %2220 = vmatpush1.msra.mxu0 %v2192
    %2221 = vmatprep.subr.mxu0 0.0
    %2222 = vmatpush1.msra.mxu0 %v2193
    %2223 = vmatprep.subr.mxu0 0.0
    %2224 = vmatpush1.msra.mxu0 %v2194
    %2225 = vmatprep.subr.mxu0 0.0
    %2226 = vmatpush1.msra.mxu0 0.0
    %2227 = vmatprep.subr.mxu0 0.0
    %2228 = vmatpush1.msra.mxu0 0.0
    %2229 = vmatprep.subr.mxu0 0.0
    %2230 = vmatpush1.msra.mxu0 0.0
    %2231 = vmatprep.subr.mxu0 0.0
    %2232 = vmatpush1.msra.mxu0 0.0
    %2233 = vmatprep.subr.mxu0 0.0
    %2234 = vmatpush1.msra.mxu0 0.0
    %2235 = vmatprep.subr.mxu0 0.0
    %2236 = vmatpush1.msra.mxu0 0.0
    %2237 = vmatprep.subr.mxu0 0.0
    %2238 = vmatpush1.msra.mxu0 0.0
    %2239 = vmatprep.subr.mxu0 0.0
    %2240 = vmatpush1.msra.mxu0 0.0
    %2241 = vmatprep.subr.mxu0 0.0
    %2242 = vmatpush1.msra.mxu0 0.0
    %2243 = vmatprep.subr.mxu0 0.0
    %2244 = vmatpush1.msra.mxu0 0.0
    %2245 = vmatprep.subr.mxu0 0.0
    %2246 = vmatpush1.msra.mxu0 0.0
    %2247 = vmatprep.subr.mxu0 0.0
    %2248 = vmatpush1.msra.mxu0 0.0
    %2249 = vmatprep.subr.mxu0 0.0
    %2250 = vmatpush1.msra.mxu0 0.0
    %2251 = vmatprep.subr.mxu0 0.0
    %2252 = vmatpush1.msra.mxu0 0.0
    %2253 = vmatprep.subr.mxu0 0.0
    %2254 = vmatpush1.msra.mxu0 0.0
    %2255 = vmatprep.subr.mxu0 0.0
    %2256 = vmatpush1.msra.mxu0 0.0
    %2257 = vmatprep.subr.mxu0 0.0
    %2258 = vmatpush1.msra.mxu0 0.0
    %2259 = vmatprep.subr.mxu0 0.0
    %2260 = vmatpush1.msra.mxu0 0.0
    %2261 = vmatprep.subr.mxu0 0.0
    %2262 = vmatpush1.msra.mxu0 0.0
    %2263 = vmatprep.subr.mxu0 0.0
    %2264 = vmatpush1.msra.mxu0 0.0
    %2265 = vmatprep.mubr.f32.mxu0 0.0
    %2266 = vmatmul.mubr.f32.gmra.mrb[0].mxu0 %v2196
    %v2267 = vpop.f32.mrb[0].mxu0
    %v2268 = vadd.f32 0.0, %v2267
    %v2269 = vpop.f32.mrb[0].mxu0
    %2270 = vmatprep.mubr.f32.mxu0 0.0
    %2271 = vmatmul.mubr.f32.gmra.mrb[0].mxu0 %v2199
    %v2272 = vpop.f32.mrb[0].mxu0
    %v2273 = vadd.f32 0.0, %v2272
    %v2274 = vpop.f32.mrb[0].mxu0
    %2275 = vdwg.mxu0
    %s2276 = scalar_lea.vmem %s10, 96
    %v2277 = vld [vmem:[%s2276] sm:$0xff]
    %v2278 = vld [vmem:[%s2276 + $0x8] sm:$0xff]
    %v2279 = vld [vmem:[%s2276 + $0x10] sm:$0xff]
    %v2280 = vld [vmem:[%s2276 + $0x18] sm:$0xff]
    %v2281 = vld [vmem:[%s2276 + $0x20] sm:$0xff]
    %v2282 = vld [vmem:[%s2276 + $0x28] sm:$0xff]
    %v2283 = vld [vmem:[%s2276 + $0x30] sm:$0xff]
    %v2284 = vld [vmem:[%s2276 + $0x38] sm:$0xff]
    %v2285 = vld [vmem:[%s2276 + $0x40] sm:$0xff]
    %v2286 = vld [vmem:[%s2276 + $0x48] sm:$0xff]
    %v2287 = vld [vmem:[%s2276 + $0x50] sm:$0xff]
    %v2288 = vld [vmem:[%s2276 + $0x58] sm:$0xff]
    %2289 = vmatprep.subr.mxu0 0.0
    %2290 = vmatpush1.msra.mxu0 %v2277
    %2291 = vmatprep.subr.mxu0 0.0
    %2292 = vmatpush1.msra.mxu0 %v2278
    %2293 = vmatprep.subr.mxu0 0.0
    %2294 = vmatpush1.msra.mxu0 %v2279
    %2295 = vmatprep.subr.mxu0 0.0
    %2296 = vmatpush1.msra.mxu0 %v2280
    %2297 = vmatprep.subr.mxu0 0.0
    %2298 = vmatpush1.msra.mxu0 %v2281
    %2299 = vmatprep.subr.mxu0 0.0
    %2300 = vmatpush1.msra.mxu0 %v2282
    %2301 = vmatprep.subr.mxu0 0.0
    %2302 = vmatpush1.msra.mxu0 %v2283
    %2303 = vmatprep.subr.mxu0 0.0
    %2304 = vmatpush1.msra.mxu0 %v2284
    %2305 = vmatprep.subr.mxu0 0.0
    %2306 = vmatpush1.msra.mxu0 %v2285
    %2307 = vmatprep.subr.mxu0 0.0
    %2308 = vmatpush1.msra.mxu0 %v2286
    %2309 = vmatprep.subr.mxu0 0.0
    %2310 = vmatpush1.msra.mxu0 %v2287
    %2311 = vmatprep.subr.mxu0 0.0
    %2312 = vmatpush1.msra.mxu0 %v2288
    %2313 = vmatprep.subr.mxu0 0.0
    %2314 = vmatpush1.msra.mxu0 0.0
    %2315 = vmatprep.subr.mxu0 0.0
    %2316 = vmatpush1.msra.mxu0 0.0
    %2317 = vmatprep.subr.mxu0 0.0
    %2318 = vmatpush1.msra.mxu0 0.0
    %2319 = vmatprep.subr.mxu0 0.0
    %2320 = vmatpush1.msra.mxu0 0.0
    %2321 = vmatprep.subr.mxu0 0.0
    %2322 = vmatpush1.msra.mxu0 0.0
    %2323 = vmatprep.subr.mxu0 0.0
    %2324 = vmatpush1.msra.mxu0 0.0
    %2325 = vmatprep.subr.mxu0 0.0
    %2326 = vmatpush1.msra.mxu0 0.0
    %2327 = vmatprep.subr.mxu0 0.0
    %2328 = vmatpush1.msra.mxu0 0.0
    %2329 = vmatprep.subr.mxu0 0.0
    %2330 = vmatpush1.msra.mxu0 0.0
    %2331 = vmatprep.subr.mxu0 0.0
    %2332 = vmatpush1.msra.mxu0 0.0
    %2333 = vmatprep.subr.mxu0 0.0
    %2334 = vmatpush1.msra.mxu0 0.0
    %2335 = vmatprep.subr.mxu0 0.0
    %2336 = vmatpush1.msra.mxu0 0.0
    %2337 = vmatprep.subr.mxu0 0.0
    %2338 = vmatpush1.msra.mxu0 0.0
    %2339 = vmatprep.subr.mxu0 0.0
    %2340 = vmatpush1.msra.mxu0 0.0
    %2341 = vmatprep.subr.mxu0 0.0
    %2342 = vmatpush1.msra.mxu0 0.0
    %2343 = vmatprep.subr.mxu0 0.0
    %2344 = vmatpush1.msra.mxu0 0.0
    %2345 = vmatprep.subr.mxu0 0.0
    %2346 = vmatpush1.msra.mxu0 0.0
    %2347 = vmatprep.subr.mxu0 0.0
    %2348 = vmatpush1.msra.mxu0 0.0
    %2349 = vmatprep.subr.mxu0 0.0
    %2350 = vmatpush1.msra.mxu0 0.0
    %2351 = vmatprep.subr.mxu0 0.0
    %2352 = vmatpush1.msra.mxu0 0.0
    %2353 = vmatprep.mubr.f32.mxu0 0.0
    %2354 = vmatmul.mubr.f32.gmra.mrb[0].mxu0 %v2196
    %v2355 = vpop.f32.mrb[0].mxu0
    %v2356 = vadd.f32 0.0, %v2355
    %v2357 = vpop.f32.mrb[0].mxu0
    %2358 = vmatprep.mubr.f32.mxu0 0.0
    %2359 = vmatmul.mubr.f32.gmra.mrb[0].mxu0 %v2199
    %v2360 = vpop.f32.mrb[0].mxu0
    %v2361 = vadd.f32 0.0, %v2360
    %v2362 = vpop.f32.mrb[0].mxu0
    %2363 = vdwg.mxu0
    %v2364 = vmax.f32 %v2268, %v2356
    %v2365 = vmax.f32 %v2273, %v2361
    %v2366 = vld [vmem:[#allocation5] sm:$0xff]
    %v2367 = vld [vmem:[%s12] sm:$0xff]
    %v2368 = vld [vmem:[%s12 + $0x8] sm:$0xff]
    %v2369 = vld [vmem:[%s12 + $0x10] sm:$0xff]
    %v2370 = vld [vmem:[%s12 + $0x18] sm:$0xff]
    %v2371 = vld [vmem:[%s12 + $0x20] sm:$0xff]
    %v2372 = vld [vmem:[%s12 + $0x28] sm:$0xff]
    %vm2373 = vcmask 392192
    %v2375 = vsel %vm2373, %v2364, 0
    %v2378 = vsel %vm2373, %v2365, 0
    %2380 = vmatprep.subr.mxu0 0.0
    %2381 = vmatpush1.msra.mxu0 %v2367
    %2382 = vmatprep.subr.mxu0 0.0
    %2383 = vmatpush1.msra.mxu0 %v2368
    %2384 = vmatprep.subr.mxu0 0.0
    %2385 = vmatpush1.msra.mxu0 %v2369
    %2386 = vmatprep.subr.mxu0 0.0
    %2387 = vmatpush1.msra.mxu0 %v2370
    %2388 = vmatprep.subr.mxu0 0.0
    %2389 = vmatpush1.msra.mxu0 %v2371
    %2390 = vmatprep.subr.mxu0 0.0
    %2391 = vmatpush1.msra.mxu0 %v2372
    %2392 = vmatprep.subr.mxu0 0.0
    %2393 = vmatpush1.msra.mxu0 0.0
    %2394 = vmatprep.subr.mxu0 0.0
    %2395 = vmatpush1.msra.mxu0 0.0
    %2396 = vmatprep.subr.mxu0 0.0
    %2397 = vmatpush1.msra.mxu0 0.0
    %2398 = vmatprep.subr.mxu0 0.0
    %2399 = vmatpush1.msra.mxu0 0.0
    %2400 = vmatprep.subr.mxu0 0.0
    %2401 = vmatpush1.msra.mxu0 0.0
    %2402 = vmatprep.subr.mxu0 0.0
    %2403 = vmatpush1.msra.mxu0 0.0
    %2404 = vmatprep.subr.mxu0 0.0
    %2405 = vmatpush1.msra.mxu0 0.0
    %2406 = vmatprep.subr.mxu0 0.0
    %2407 = vmatpush1.msra.mxu0 0.0
    %2408 = vmatprep.subr.mxu0 0.0
    %2409 = vmatpush1.msra.mxu0 0.0
    %2410 = vmatprep.subr.mxu0 0.0
    %2411 = vmatpush1.msra.mxu0 0.0
    %2412 = vmatprep.subr.mxu0 0.0
    %2413 = vmatpush1.msra.mxu0 0.0
    %2414 = vmatprep.subr.mxu0 0.0
    %2415 = vmatpush1.msra.mxu0 0.0
    %2416 = vmatprep.subr.mxu0 0.0
    %2417 = vmatpush1.msra.mxu0 0.0
    %2418 = vmatprep.subr.mxu0 0.0
    %2419 = vmatpush1.msra.mxu0 0.0
    %2420 = vmatprep.subr.mxu0 0.0
    %2421 = vmatpush1.msra.mxu0 0.0
    %2422 = vmatprep.subr.mxu0 0.0
    %2423 = vmatpush1.msra.mxu0 0.0
    %2424 = vmatprep.subr.mxu0 0.0
    %2425 = vmatpush1.msra.mxu0 0.0
    %2426 = vmatprep.subr.mxu0 0.0
    %2427 = vmatpush1.msra.mxu0 0.0
    %2428 = vmatprep.subr.mxu0 0.0
    %2429 = vmatpush1.msra.mxu0 0.0
    %2430 = vmatprep.subr.mxu0 0.0
    %2431 = vmatpush1.msra.mxu0 0.0
    %2432 = vmatprep.subr.mxu0 0.0
    %2433 = vmatpush1.msra.mxu0 0.0
    %2434 = vmatprep.subr.mxu0 0.0
    %2435 = vmatpush1.msra.mxu0 0.0
    %2436 = vmatprep.subr.mxu0 0.0
    %2437 = vmatpush1.msra.mxu0 0.0
    %2438 = vmatprep.subr.mxu0 0.0
    %2439 = vmatpush1.msra.mxu0 0.0
    %2440 = vmatprep.subr.mxu0 0.0
    %2441 = vmatpush1.msra.mxu0 0.0
    %2442 = vmatprep.subr.mxu0 0.0
    %2443 = vmatpush1.msra.mxu0 0.0
    %2444 = vmatprep.mubr.f32.mxu0 0.0
    %2445 = vmatmul.mubr.f32.gmra.mrb[0].mxu0 %v2375
    %v2446 = vpop.f32.mrb[0].mxu0
    %v2447 = vadd.f32 0.0, %v2446
    %v2448 = vpop.f32.mrb[0].mxu0
    %2449 = vmatprep.mubr.f32.mxu0 0.0
    %2450 = vmatmul.mubr.f32.gmra.mrb[0].mxu0 %v2378
    %v2451 = vpop.f32.mrb[0].mxu0
    %v2452 = vadd.f32 0.0, %v2451
    %v2453 = vpop.f32.mrb[0].mxu0
    %2454 = vdwg.mxu0
    %s2455 = scalar_lea.vmem [#allocation5], 8
    %v2456 = vld [vmem:[%s2455] sm:$0xff]
    %s2457 = scalar_lea.vmem %s12, 48
    %v2458 = vld [vmem:[%s2457] sm:$0xff]
    %v2459 = vld [vmem:[%s2457 + $0x8] sm:$0xff]
    %v2460 = vld [vmem:[%s2457 + $0x10] sm:$0xff]
    %v2461 = vld [vmem:[%s2457 + $0x18] sm:$0xff]
    %v2462 = vld [vmem:[%s2457 + $0x20] sm:$0xff]
    %v2463 = vld [vmem:[%s2457 + $0x28] sm:$0xff]
    %2464 = vmatprep.subr.mxu0 0.0
    %2465 = vmatpush1.msra.mxu0 %v2458
    %2466 = vmatprep.subr.mxu0 0.0
    %2467 = vmatpush1.msra.mxu0 %v2459
    %2468 = vmatprep.subr.mxu0 0.0
    %2469 = vmatpush1.msra.mxu0 %v2460
    %2470 = vmatprep.subr.mxu0 0.0
    %2471 = vmatpush1.msra.mxu0 %v2461
    %2472 = vmatprep.subr.mxu0 0.0
    %2473 = vmatpush1.msra.mxu0 %v2462
    %2474 = vmatprep.subr.mxu0 0.0
    %2475 = vmatpush1.msra.mxu0 %v2463
    %2476 = vmatprep.subr.mxu0 0.0
    %2477 = vmatpush1.msra.mxu0 0.0
    %2478 = vmatprep.subr.mxu0 0.0
    %2479 = vmatpush1.msra.mxu0 0.0
    %2480 = vmatprep.subr.mxu0 0.0
    %2481 = vmatpush1.msra.mxu0 0.0
    %2482 = vmatprep.subr.mxu0 0.0
    %2483 = vmatpush1.msra.mxu0 0.0
    %2484 = vmatprep.subr.mxu0 0.0
    %2485 = vmatpush1.msra.mxu0 0.0
    %2486 = vmatprep.subr.mxu0 0.0
    %2487 = vmatpush1.msra.mxu0 0.0
    %2488 = vmatprep.subr.mxu0 0.0
    %2489 = vmatpush1.msra.mxu0 0.0
    %2490 = vmatprep.subr.mxu0 0.0
    %2491 = vmatpush1.msra.mxu0 0.0
    %2492 = vmatprep.subr.mxu0 0.0
    %2493 = vmatpush1.msra.mxu0 0.0
    %2494 = vmatprep.subr.mxu0 0.0
    %2495 = vmatpush1.msra.mxu0 0.0
    %2496 = vmatprep.subr.mxu0 0.0
    %2497 = vmatpush1.msra.mxu0 0.0
    %2498 = vmatprep.subr.mxu0 0.0
    %2499 = vmatpush1.msra.mxu0 0.0
    %2500 = vmatprep.subr.mxu0 0.0
    %2501 = vmatpush1.msra.mxu0 0.0
    %2502 = vmatprep.subr.mxu0 0.0
    %2503 = vmatpush1.msra.mxu0 0.0
    %2504 = vmatprep.subr.mxu0 0.0
    %2505 = vmatpush1.msra.mxu0 0.0
    %2506 = vmatprep.subr.mxu0 0.0
    %2507 = vmatpush1.msra.mxu0 0.0
    %2508 = vmatprep.subr.mxu0 0.0
    %2509 = vmatpush1.msra.mxu0 0.0
    %2510 = vmatprep.subr.mxu0 0.0
    %2511 = vmatpush1.msra.mxu0 0.0
    %2512 = vmatprep.subr.mxu0 0.0
    %2513 = vmatpush1.msra.mxu0 0.0
    %2514 = vmatprep.subr.mxu0 0.0
    %2515 = vmatpush1.msra.mxu0 0.0
    %2516 = vmatprep.subr.mxu0 0.0
    %2517 = vmatpush1.msra.mxu0 0.0
    %2518 = vmatprep.subr.mxu0 0.0
    %2519 = vmatpush1.msra.mxu0 0.0
    %2520 = vmatprep.subr.mxu0 0.0
    %2521 = vmatpush1.msra.mxu0 0.0
    %2522 = vmatprep.subr.mxu0 0.0
    %2523 = vmatpush1.msra.mxu0 0.0
    %2524 = vmatprep.subr.mxu0 0.0
    %2525 = vmatpush1.msra.mxu0 0.0
    %2526 = vmatprep.subr.mxu0 0.0
    %2527 = vmatpush1.msra.mxu0 0.0
    %2528 = vmatprep.mubr.f32.mxu0 0.0
    %2529 = vmatmul.mubr.f32.gmra.mrb[0].mxu0 %v2375
    %v2530 = vpop.f32.mrb[0].mxu0
    %v2531 = vadd.f32 0.0, %v2530
    %v2532 = vpop.f32.mrb[0].mxu0
    %2533 = vmatprep.mubr.f32.mxu0 0.0
    %2534 = vmatmul.mubr.f32.gmra.mrb[0].mxu0 %v2378
    %v2535 = vpop.f32.mrb[0].mxu0
    %v2536 = vadd.f32 0.0, %v2535
    %v2537 = vpop.f32.mrb[0].mxu0
    %2538 = vdwg.mxu0
    %vm2539 = vcmask 97280
    %v2541 = vsel %vm2539, %v2456, 0
    %v2544 = vsel %vm258, %v2536, 0
    %2546 = vmatprep.subr.mxu0 0.0
    %2547 = vmatpush1.msra.mxu0 %v2531
    %2548 = vmatprep.subr.mxu0 0.0
    %2549 = vmatpush1.msra.mxu0 %v2544
    %2550 = vmatprep.subr.mxu0 0.0
    %2551 = vmatpush1.msra.mxu0 0.0
    %2552 = vmatprep.subr.mxu0 0.0
    %2553 = vmatpush1.msra.mxu0 0.0
    %2554 = vmatprep.subr.mxu0 0.0
    %2555 = vmatpush1.msra.mxu0 0.0
    %2556 = vmatprep.subr.mxu0 0.0
    %2557 = vmatpush1.msra.mxu0 0.0
    %2558 = vmatprep.subr.mxu0 0.0
    %2559 = vmatpush1.msra.mxu0 0.0
    %2560 = vmatprep.subr.mxu0 0.0
    %2561 = vmatpush1.msra.mxu0 0.0
    %2562 = vmatprep.subr.mxu0 0.0
    %2563 = vmatpush1.msra.mxu0 0.0
    %2564 = vmatprep.subr.mxu0 0.0
    %2565 = vmatpush1.msra.mxu0 0.0
    %2566 = vmatprep.subr.mxu0 0.0
    %2567 = vmatpush1.msra.mxu0 0.0
    %2568 = vmatprep.subr.mxu0 0.0
    %2569 = vmatpush1.msra.mxu0 0.0
    %2570 = vmatprep.subr.mxu0 0.0
    %2571 = vmatpush1.msra.mxu0 0.0
    %2572 = vmatprep.subr.mxu0 0.0
    %2573 = vmatpush1.msra.mxu0 0.0
    %2574 = vmatprep.subr.mxu0 0.0
    %2575 = vmatpush1.msra.mxu0 0.0
    %2576 = vmatprep.subr.mxu0 0.0
    %2577 = vmatpush1.msra.mxu0 0.0
    %2578 = vmatprep.subr.mxu0 0.0
    %2579 = vmatpush1.msra.mxu0 0.0
    %2580 = vmatprep.subr.mxu0 0.0
    %2581 = vmatpush1.msra.mxu0 0.0
    %2582 = vmatprep.subr.mxu0 0.0
    %2583 = vmatpush1.msra.mxu0 0.0
    %2584 = vmatprep.subr.mxu0 0.0
    %2585 = vmatpush1.msra.mxu0 0.0
    %2586 = vmatprep.subr.mxu0 0.0
    %2587 = vmatpush1.msra.mxu0 0.0
    %2588 = vmatprep.subr.mxu0 0.0
    %2589 = vmatpush1.msra.mxu0 0.0
    %2590 = vmatprep.subr.mxu0 0.0
    %2591 = vmatpush1.msra.mxu0 0.0
    %2592 = vmatprep.subr.mxu0 0.0
    %2593 = vmatpush1.msra.mxu0 0.0
    %2594 = vmatprep.subr.mxu0 0.0
    %2595 = vmatpush1.msra.mxu0 0.0
    %2596 = vmatprep.subr.mxu0 0.0
    %2597 = vmatpush1.msra.mxu0 0.0
    %2598 = vmatprep.subr.mxu0 0.0
    %2599 = vmatpush1.msra.mxu0 0.0
    %2600 = vmatprep.subr.mxu0 0.0
    %2601 = vmatpush1.msra.mxu0 0.0
    %2602 = vmatprep.subr.mxu0 0.0
    %2603 = vmatpush1.msra.mxu0 0.0
    %2604 = vmatprep.subr.mxu0 0.0
    %2605 = vmatpush1.msra.mxu0 0.0
    %2606 = vmatprep.subr.mxu0 0.0
    %2607 = vmatpush1.msra.mxu0 0.0
    %2608 = vmatprep.subr.mxu0 0.0
    %2609 = vmatpush1.msra.mxu0 0.0
    %2610 = vmatprep.mubr.f32.mxu0 0.0
    %2611 = vmatmul.mubr.f32.gmra.mrb[0].mxu0 %v2541
    %v2612 = vpop.f32.mrb[0].mxu0
    %v2613 = vadd.f32 0.0, %v2612
    %v2614 = vpop.f32.mrb[0].mxu0
    %2615 = vdwg.mxu0
    %v2617 = vsel %vm2539, %v2366, 0
    %v2620 = vsel %vm258, %v2452, 0
    %2622 = vmatprep.subr.mxu0 0.0
    %2623 = vmatpush1.msra.mxu0 %v2447
    %2624 = vmatprep.subr.mxu0 0.0
    %2625 = vmatpush1.msra.mxu0 %v2620
    %2626 = vmatprep.subr.mxu0 0.0
    %2627 = vmatpush1.msra.mxu0 0.0
    %2628 = vmatprep.subr.mxu0 0.0
    %2629 = vmatpush1.msra.mxu0 0.0
    %2630 = vmatprep.subr.mxu0 0.0
    %2631 = vmatpush1.msra.mxu0 0.0
    %2632 = vmatprep.subr.mxu0 0.0
    %2633 = vmatpush1.msra.mxu0 0.0
    %2634 = vmatprep.subr.mxu0 0.0
    %2635 = vmatpush1.msra.mxu0 0.0
    %2636 = vmatprep.subr.mxu0 0.0
    %2637 = vmatpush1.msra.mxu0 0.0
    %2638 = vmatprep.subr.mxu0 0.0
    %2639 = vmatpush1.msra.mxu0 0.0
    %2640 = vmatprep.subr.mxu0 0.0
    %2641 = vmatpush1.msra.mxu0 0.0
    %2642 = vmatprep.subr.mxu0 0.0
    %2643 = vmatpush1.msra.mxu0 0.0
    %2644 = vmatprep.subr.mxu0 0.0
    %2645 = vmatpush1.msra.mxu0 0.0
    %2646 = vmatprep.subr.mxu0 0.0
    %2647 = vmatpush1.msra.mxu0 0.0
    %2648 = vmatprep.subr.mxu0 0.0
    %2649 = vmatpush1.msra.mxu0 0.0
    %2650 = vmatprep.subr.mxu0 0.0
    %2651 = vmatpush1.msra.mxu0 0.0
    %2652 = vmatprep.subr.mxu0 0.0
    %2653 = vmatpush1.msra.mxu0 0.0
    %2654 = vmatprep.subr.mxu0 0.0
    %2655 = vmatpush1.msra.mxu0 0.0
    %2656 = vmatprep.subr.mxu0 0.0
    %2657 = vmatpush1.msra.mxu0 0.0
    %2658 = vmatprep.subr.mxu0 0.0
    %2659 = vmatpush1.msra.mxu0 0.0
    %2660 = vmatprep.subr.mxu0 0.0
    %2661 = vmatpush1.msra.mxu0 0.0
    %2662 = vmatprep.subr.mxu0 0.0
    %2663 = vmatpush1.msra.mxu0 0.0
    %2664 = vmatprep.subr.mxu0 0.0
    %2665 = vmatpush1.msra.mxu0 0.0
    %2666 = vmatprep.subr.mxu0 0.0
    %2667 = vmatpush1.msra.mxu0 0.0
    %2668 = vmatprep.subr.mxu0 0.0
    %2669 = vmatpush1.msra.mxu0 0.0
    %2670 = vmatprep.subr.mxu0 0.0
    %2671 = vmatpush1.msra.mxu0 0.0
    %2672 = vmatprep.subr.mxu0 0.0
    %2673 = vmatpush1.msra.mxu0 0.0
    %2674 = vmatprep.subr.mxu0 0.0
    %2675 = vmatpush1.msra.mxu0 0.0
    %2676 = vmatprep.subr.mxu0 0.0
    %2677 = vmatpush1.msra.mxu0 0.0
    %2678 = vmatprep.subr.mxu0 0.0
    %2679 = vmatpush1.msra.mxu0 0.0
    %2680 = vmatprep.subr.mxu0 0.0
    %2681 = vmatpush1.msra.mxu0 0.0
    %2682 = vmatprep.subr.mxu0 0.0
    %2683 = vmatpush1.msra.mxu0 0.0
    %2684 = vmatprep.subr.mxu0 0.0
    %2685 = vmatpush1.msra.mxu0 0.0
    %2686 = vmatprep.mubr.f32.mxu0 0.0
    %2687 = vmatmul.mubr.f32.gmra.mrb[0].mxu0 %v2617
    %v2688 = vpop.f32.mrb[0].mxu0
    %v2689 = vadd.f32 %v2613, %v2688
    %v2690 = vpop.f32.mrb[0].mxu0
    %2691 = vdwg.mxu0
    %s2692 = scalar_lea.vmem [#allocation5], 16
    %v2693 = vld [vmem:[%s2692] sm:$0xff]
    %s2694 = scalar_lea.vmem %s12, 96
    %v2695 = vld [vmem:[%s2694] sm:$0xff]
    %v2696 = vld [vmem:[%s2694 + $0x8] sm:$0xff]
    %v2697 = vld [vmem:[%s2694 + $0x10] sm:$0xff]
    %v2698 = vld [vmem:[%s2694 + $0x18] sm:$0xff]
    %v2699 = vld [vmem:[%s2694 + $0x20] sm:$0xff]
    %v2700 = vld [vmem:[%s2694 + $0x28] sm:$0xff]
    %2701 = vmatprep.subr.mxu0 0.0
    %2702 = vmatpush1.msra.mxu0 %v2695
    %2703 = vmatprep.subr.mxu0 0.0
    %2704 = vmatpush1.msra.mxu0 %v2696
    %2705 = vmatprep.subr.mxu0 0.0
    %2706 = vmatpush1.msra.mxu0 %v2697
    %2707 = vmatprep.subr.mxu0 0.0
    %2708 = vmatpush1.msra.mxu0 %v2698
    %2709 = vmatprep.subr.mxu0 0.0
    %2710 = vmatpush1.msra.mxu0 %v2699
    %2711 = vmatprep.subr.mxu0 0.0
    %2712 = vmatpush1.msra.mxu0 %v2700
    %2713 = vmatprep.subr.mxu0 0.0
    %2714 = vmatpush1.msra.mxu0 0.0
    %2715 = vmatprep.subr.mxu0 0.0
    %2716 = vmatpush1.msra.mxu0 0.0
    %2717 = vmatprep.subr.mxu0 0.0
    %2718 = vmatpush1.msra.mxu0 0.0
    %2719 = vmatprep.subr.mxu0 0.0
    %2720 = vmatpush1.msra.mxu0 0.0
    %2721 = vmatprep.subr.mxu0 0.0
    %2722 = vmatpush1.msra.mxu0 0.0
    %2723 = vmatprep.subr.mxu0 0.0
    %2724 = vmatpush1.msra.mxu0 0.0
    %2725 = vmatprep.subr.mxu0 0.0
    %2726 = vmatpush1.msra.mxu0 0.0
    %2727 = vmatprep.subr.mxu0 0.0
    %2728 = vmatpush1.msra.mxu0 0.0
    %2729 = vmatprep.subr.mxu0 0.0
    %2730 = vmatpush1.msra.mxu0 0.0
    %2731 = vmatprep.subr.mxu0 0.0
    %2732 = vmatpush1.msra.mxu0 0.0
    %2733 = vmatprep.subr.mxu0 0.0
    %2734 = vmatpush1.msra.mxu0 0.0
    %2735 = vmatprep.subr.mxu0 0.0
    %2736 = vmatpush1.msra.mxu0 0.0
    %2737 = vmatprep.subr.mxu0 0.0
    %2738 = vmatpush1.msra.mxu0 0.0
    %2739 = vmatprep.subr.mxu0 0.0
    %2740 = vmatpush1.msra.mxu0 0.0
    %2741 = vmatprep.subr.mxu0 0.0
    %2742 = vmatpush1.msra.mxu0 0.0
    %2743 = vmatprep.subr.mxu0 0.0
    %2744 = vmatpush1.msra.mxu0 0.0
    %2745 = vmatprep.subr.mxu0 0.0
    %2746 = vmatpush1.msra.mxu0 0.0
    %2747 = vmatprep.subr.mxu0 0.0
    %2748 = vmatpush1.msra.mxu0 0.0
    %2749 = vmatprep.subr.mxu0 0.0
    %2750 = vmatpush1.msra.mxu0 0.0
    %2751 = vmatprep.subr.mxu0 0.0
    %2752 = vmatpush1.msra.mxu0 0.0
    %2753 = vmatprep.subr.mxu0 0.0
    %2754 = vmatpush1.msra.mxu0 0.0
    %2755 = vmatprep.subr.mxu0 0.0
    %2756 = vmatpush1.msra.mxu0 0.0
    %2757 = vmatprep.subr.mxu0 0.0
    %2758 = vmatpush1.msra.mxu0 0.0
    %2759 = vmatprep.subr.mxu0 0.0
    %2760 = vmatpush1.msra.mxu0 0.0
    %2761 = vmatprep.subr.mxu0 0.0
    %2762 = vmatpush1.msra.mxu0 0.0
    %2763 = vmatprep.subr.mxu0 0.0
    %2764 = vmatpush1.msra.mxu0 0.0
    %2765 = vmatprep.mubr.f32.mxu0 0.0
    %2766 = vmatmul.mubr.f32.gmra.mrb[0].mxu0 %v2375
    %v2767 = vpop.f32.mrb[0].mxu0
    %v2768 = vadd.f32 0.0, %v2767
    %v2769 = vpop.f32.mrb[0].mxu0
    %2770 = vmatprep.mubr.f32.mxu0 0.0
    %2771 = vmatmul.mubr.f32.gmra.mrb[0].mxu0 %v2378
    %v2772 = vpop.f32.mrb[0].mxu0
    %v2773 = vadd.f32 0.0, %v2772
    %v2774 = vpop.f32.mrb[0].mxu0
    %2775 = vdwg.mxu0
    %v2777 = vsel %vm2539, %v2693, 0
    %v2780 = vsel %vm258, %v2773, 0
    %2782 = vmatprep.subr.mxu0 0.0
    %2783 = vmatpush1.msra.mxu0 %v2768
    %2784 = vmatprep.subr.mxu0 0.0
    %2785 = vmatpush1.msra.mxu0 %v2780
    %2786 = vmatprep.subr.mxu0 0.0
    %2787 = vmatpush1.msra.mxu0 0.0
    %2788 = vmatprep.subr.mxu0 0.0
    %2789 = vmatpush1.msra.mxu0 0.0
    %2790 = vmatprep.subr.mxu0 0.0
    %2791 = vmatpush1.msra.mxu0 0.0
    %2792 = vmatprep.subr.mxu0 0.0
    %2793 = vmatpush1.msra.mxu0 0.0
    %2794 = vmatprep.subr.mxu0 0.0
    %2795 = vmatpush1.msra.mxu0 0.0
    %2796 = vmatprep.subr.mxu0 0.0
    %2797 = vmatpush1.msra.mxu0 0.0
    %2798 = vmatprep.subr.mxu0 0.0
    %2799 = vmatpush1.msra.mxu0 0.0
    %2800 = vmatprep.subr.mxu0 0.0
    %2801 = vmatpush1.msra.mxu0 0.0
    %2802 = vmatprep.subr.mxu0 0.0
    %2803 = vmatpush1.msra.mxu0 0.0
    %2804 = vmatprep.subr.mxu0 0.0
    %2805 = vmatpush1.msra.mxu0 0.0
    %2806 = vmatprep.subr.mxu0 0.0
    %2807 = vmatpush1.msra.mxu0 0.0
    %2808 = vmatprep.subr.mxu0 0.0
    %2809 = vmatpush1.msra.mxu0 0.0
    %2810 = vmatprep.subr.mxu0 0.0
    %2811 = vmatpush1.msra.mxu0 0.0
    %2812 = vmatprep.subr.mxu0 0.0
    %2813 = vmatpush1.msra.mxu0 0.0
    %2814 = vmatprep.subr.mxu0 0.0
    %2815 = vmatpush1.msra.mxu0 0.0
    %2816 = vmatprep.subr.mxu0 0.0
    %2817 = vmatpush1.msra.mxu0 0.0
    %2818 = vmatprep.subr.mxu0 0.0
    %2819 = vmatpush1.msra.mxu0 0.0
    %2820 = vmatprep.subr.mxu0 0.0
    %2821 = vmatpush1.msra.mxu0 0.0
    %2822 = vmatprep.subr.mxu0 0.0
    %2823 = vmatpush1.msra.mxu0 0.0
    %2824 = vmatprep.subr.mxu0 0.0
    %2825 = vmatpush1.msra.mxu0 0.0
    %2826 = vmatprep.subr.mxu0 0.0
    %2827 = vmatpush1.msra.mxu0 0.0
    %2828 = vmatprep.subr.mxu0 0.0
    %2829 = vmatpush1.msra.mxu0 0.0
    %2830 = vmatprep.subr.mxu0 0.0
    %2831 = vmatpush1.msra.mxu0 0.0
    %2832 = vmatprep.subr.mxu0 0.0
    %2833 = vmatpush1.msra.mxu0 0.0
    %2834 = vmatprep.subr.mxu0 0.0
    %2835 = vmatpush1.msra.mxu0 0.0
    %2836 = vmatprep.subr.mxu0 0.0
    %2837 = vmatpush1.msra.mxu0 0.0
    %2838 = vmatprep.subr.mxu0 0.0
    %2839 = vmatpush1.msra.mxu0 0.0
    %2840 = vmatprep.subr.mxu0 0.0
    %2841 = vmatpush1.msra.mxu0 0.0
    %2842 = vmatprep.subr.mxu0 0.0
    %2843 = vmatpush1.msra.mxu0 0.0
    %2844 = vmatprep.subr.mxu0 0.0
    %2845 = vmatpush1.msra.mxu0 0.0
    %2846 = vmatprep.mubr.f32.mxu0 0.0
    %2847 = vmatmul.mubr.f32.gmra.mrb[0].mxu0 %v2777
    %v2848 = vpop.f32.mrb[0].mxu0
    %v2849 = vadd.f32 0.0, %v2848
    %v2850 = vpop.f32.mrb[0].mxu0
    %2851 = vdwg.mxu0
    %v2852 = vadd.f32 %v2689, %v2849
    %v2853 = vld [vmem:[%s13] sm:$0x1]
    %v2855 = vlaneseq
    %v2856 = vshrl.u32 %v2855, 7
    %v2857 = vsub.s32 0, %v2856
    %v2858 = vrot.slane %v2853, %v2857
    %v2860 = vadd.f32 %v2852, %v2858
    %v2861 = vmax.f32 %v2860, 0.0
    %v2862 = vld [vmem:[%s14] sm:$0xf]
    %v2863 = vld [vmem:[%s15] sm:$0xff]
    %v2864 = vld [vmem:[%s15 + $0x8] sm:$0xff]
    %v2865 = vld [vmem:[%s15 + $0x10] sm:$0xff]
    %v2866 = vld [vmem:[%s15 + $0x18] sm:$0xff]
    %vm2867 = vcmask 261120
    %v2869 = vsel %vm2867, %v2861, 0
    %2871 = vmatprep.subr.mxu0 0.0
    %2872 = vmatpush1.msra.mxu0 %v2863
    %2873 = vmatprep.subr.mxu0 0.0
    %2874 = vmatpush1.msra.mxu0 %v2864
    %2875 = vmatprep.subr.mxu0 0.0
    %2876 = vmatpush1.msra.mxu0 %v2865
    %2877 = vmatprep.subr.mxu0 0.0
    %2878 = vmatpush1.msra.mxu0 %v2866
    %2879 = vmatprep.subr.mxu0 0.0
    %2880 = vmatpush1.msra.mxu0 0.0
    %2881 = vmatprep.subr.mxu0 0.0
    %2882 = vmatpush1.msra.mxu0 0.0
    %2883 = vmatprep.subr.mxu0 0.0
    %2884 = vmatpush1.msra.mxu0 0.0
    %2885 = vmatprep.subr.mxu0 0.0
    %2886 = vmatpush1.msra.mxu0 0.0
    %2887 = vmatprep.subr.mxu0 0.0
    %2888 = vmatpush1.msra.mxu0 0.0
    %2889 = vmatprep.subr.mxu0 0.0
    %2890 = vmatpush1.msra.mxu0 0.0
    %2891 = vmatprep.subr.mxu0 0.0
    %2892 = vmatpush1.msra.mxu0 0.0
    %2893 = vmatprep.subr.mxu0 0.0
    %2894 = vmatpush1.msra.mxu0 0.0
    %2895 = vmatprep.subr.mxu0 0.0
    %2896 = vmatpush1.msra.mxu0 0.0
    %2897 = vmatprep.subr.mxu0 0.0
    %2898 = vmatpush1.msra.mxu0 0.0
    %2899 = vmatprep.subr.mxu0 0.0
    %2900 = vmatpush1.msra.mxu0 0.0
    %2901 = vmatprep.subr.mxu0 0.0
    %2902 = vmatpush1.msra.mxu0 0.0
    %2903 = vmatprep.subr.mxu0 0.0
    %2904 = vmatpush1.msra.mxu0 0.0
    %2905 = vmatprep.subr.mxu0 0.0
    %2906 = vmatpush1.msra.mxu0 0.0
    %2907 = vmatprep.subr.mxu0 0.0
    %2908 = vmatpush1.msra.mxu0 0.0
    %2909 = vmatprep.subr.mxu0 0.0
    %2910 = vmatpush1.msra.mxu0 0.0
    %2911 = vmatprep.subr.mxu0 0.0
    %2912 = vmatpush1.msra.mxu0 0.0
    %2913 = vmatprep.subr.mxu0 0.0
    %2914 = vmatpush1.msra.mxu0 0.0
    %2915 = vmatprep.subr.mxu0 0.0
    %2916 = vmatpush1.msra.mxu0 0.0
    %2917 = vmatprep.subr.mxu0 0.0
    %2918 = vmatpush1.msra.mxu0 0.0
    %2919 = vmatprep.subr.mxu0 0.0
    %2920 = vmatpush1.msra.mxu0 0.0
    %2921 = vmatprep.subr.mxu0 0.0
    %2922 = vmatpush1.msra.mxu0 0.0
    %2923 = vmatprep.subr.mxu0 0.0
    %2924 = vmatpush1.msra.mxu0 0.0
    %2925 = vmatprep.subr.mxu0 0.0
    %2926 = vmatpush1.msra.mxu0 0.0
    %2927 = vmatprep.subr.mxu0 0.0
    %2928 = vmatpush1.msra.mxu0 0.0
    %2929 = vmatprep.subr.mxu0 0.0
    %2930 = vmatpush1.msra.mxu0 0.0
    %2931 = vmatprep.subr.mxu0 0.0
    %2932 = vmatpush1.msra.mxu0 0.0
    %2933 = vmatprep.subr.mxu0 0.0
    %2934 = vmatpush1.msra.mxu0 0.0
    %2935 = vmatprep.mubr.f32.mxu0 0.0
    %2936 = vmatmul.mubr.f32.gmra.mrb[0].mxu0 %v2869
    %v2937 = vpop.f32.mrb[0].mxu0
    %v2938 = vadd.f32 0.0, %v2937
    %v2939 = vpop.f32.mrb[0].mxu0
    %2940 = vdwg.mxu0
    %s2941 = scalar_lea.vmem %s14, 4
    %v2942 = vld [vmem:[%s2941] sm:$0xf]
    %s2943 = scalar_lea.vmem %s15, 32
    %v2944 = vld [vmem:[%s2943] sm:$0xff]
    %v2945 = vld [vmem:[%s2943 + $0x8] sm:$0xff]
    %v2946 = vld [vmem:[%s2943 + $0x10] sm:$0xff]
    %v2947 = vld [vmem:[%s2943 + $0x18] sm:$0xff]
    %2948 = vmatprep.subr.mxu0 0.0
    %2949 = vmatpush1.msra.mxu0 %v2944
    %2950 = vmatprep.subr.mxu0 0.0
    %2951 = vmatpush1.msra.mxu0 %v2945
    %2952 = vmatprep.subr.mxu0 0.0
    %2953 = vmatpush1.msra.mxu0 %v2946
    %2954 = vmatprep.subr.mxu0 0.0
    %2955 = vmatpush1.msra.mxu0 %v2947
    %2956 = vmatprep.subr.mxu0 0.0
    %2957 = vmatpush1.msra.mxu0 0.0
    %2958 = vmatprep.subr.mxu0 0.0
    %2959 = vmatpush1.msra.mxu0 0.0
    %2960 = vmatprep.subr.mxu0 0.0
    %2961 = vmatpush1.msra.mxu0 0.0
    %2962 = vmatprep.subr.mxu0 0.0
    %2963 = vmatpush1.msra.mxu0 0.0
    %2964 = vmatprep.subr.mxu0 0.0
    %2965 = vmatpush1.msra.mxu0 0.0
    %2966 = vmatprep.subr.mxu0 0.0
    %2967 = vmatpush1.msra.mxu0 0.0
    %2968 = vmatprep.subr.mxu0 0.0
    %2969 = vmatpush1.msra.mxu0 0.0
    %2970 = vmatprep.subr.mxu0 0.0
    %2971 = vmatpush1.msra.mxu0 0.0
    %2972 = vmatprep.subr.mxu0 0.0
    %2973 = vmatpush1.msra.mxu0 0.0
    %2974 = vmatprep.subr.mxu0 0.0
    %2975 = vmatpush1.msra.mxu0 0.0
    %2976 = vmatprep.subr.mxu0 0.0
    %2977 = vmatpush1.msra.mxu0 0.0
    %2978 = vmatprep.subr.mxu0 0.0
    %2979 = vmatpush1.msra.mxu0 0.0
    %2980 = vmatprep.subr.mxu0 0.0
    %2981 = vmatpush1.msra.mxu0 0.0
    %2982 = vmatprep.subr.mxu0 0.0
    %2983 = vmatpush1.msra.mxu0 0.0
    %2984 = vmatprep.subr.mxu0 0.0
    %2985 = vmatpush1.msra.mxu0 0.0
    %2986 = vmatprep.subr.mxu0 0.0
    %2987 = vmatpush1.msra.mxu0 0.0
    %2988 = vmatprep.subr.mxu0 0.0
    %2989 = vmatpush1.msra.mxu0 0.0
    %2990 = vmatprep.subr.mxu0 0.0
    %2991 = vmatpush1.msra.mxu0 0.0
    %2992 = vmatprep.subr.mxu0 0.0
    %2993 = vmatpush1.msra.mxu0 0.0
    %2994 = vmatprep.subr.mxu0 0.0
    %2995 = vmatpush1.msra.mxu0 0.0
    %2996 = vmatprep.subr.mxu0 0.0
    %2997 = vmatpush1.msra.mxu0 0.0
    %2998 = vmatprep.subr.mxu0 0.0
    %2999 = vmatpush1.msra.mxu0 0.0
    %3000 = vmatprep.subr.mxu0 0.0
    %3001 = vmatpush1.msra.mxu0 0.0
    %3002 = vmatprep.subr.mxu0 0.0
    %3003 = vmatpush1.msra.mxu0 0.0
    %3004 = vmatprep.subr.mxu0 0.0
    %3005 = vmatpush1.msra.mxu0 0.0
    %3006 = vmatprep.subr.mxu0 0.0
    %3007 = vmatpush1.msra.mxu0 0.0
    %3008 = vmatprep.subr.mxu0 0.0
    %3009 = vmatpush1.msra.mxu0 0.0
    %3010 = vmatprep.subr.mxu0 0.0
    %3011 = vmatpush1.msra.mxu0 0.0
    %3012 = vmatprep.mubr.f32.mxu0 0.0
    %3013 = vmatmul.mubr.f32.gmra.mrb[0].mxu0 %v2869
    %v3014 = vpop.f32.mrb[0].mxu0
    %v3015 = vadd.f32 0.0, %v3014
    %v3016 = vpop.f32.mrb[0].mxu0
    %3017 = vdwg.mxu0
    %vm3018 = vcmask 64512
    %v3020 = vsel %vm3018, %v2942, 0
    %3022 = vmatprep.subr.mxu0 0.0
    %3023 = vmatpush1.msra.mxu0 %v3015
    %3024 = vmatprep.subr.mxu0 0.0
    %3025 = vmatpush1.msra.mxu0 0.0
    %3026 = vmatprep.subr.mxu0 0.0
    %3027 = vmatpush1.msra.mxu0 0.0
    %3028 = vmatprep.subr.mxu0 0.0
    %3029 = vmatpush1.msra.mxu0 0.0
    %3030 = vmatprep.subr.mxu0 0.0
    %3031 = vmatpush1.msra.mxu0 0.0
    %3032 = vmatprep.subr.mxu0 0.0
    %3033 = vmatpush1.msra.mxu0 0.0
    %3034 = vmatprep.subr.mxu0 0.0
    %3035 = vmatpush1.msra.mxu0 0.0
    %3036 = vmatprep.subr.mxu0 0.0
    %3037 = vmatpush1.msra.mxu0 0.0
    %3038 = vmatprep.subr.mxu0 0.0
    %3039 = vmatpush1.msra.mxu0 0.0
    %3040 = vmatprep.subr.mxu0 0.0
    %3041 = vmatpush1.msra.mxu0 0.0
    %3042 = vmatprep.subr.mxu0 0.0
    %3043 = vmatpush1.msra.mxu0 0.0
    %3044 = vmatprep.subr.mxu0 0.0
    %3045 = vmatpush1.msra.mxu0 0.0
    %3046 = vmatprep.subr.mxu0 0.0
    %3047 = vmatpush1.msra.mxu0 0.0
    %3048 = vmatprep.subr.mxu0 0.0
    %3049 = vmatpush1.msra.mxu0 0.0
    %3050 = vmatprep.subr.mxu0 0.0
    %3051 = vmatpush1.msra.mxu0 0.0
    %3052 = vmatprep.subr.mxu0 0.0
    %3053 = vmatpush1.msra.mxu0 0.0
    %3054 = vmatprep.subr.mxu0 0.0
    %3055 = vmatpush1.msra.mxu0 0.0
    %3056 = vmatprep.subr.mxu0 0.0
    %3057 = vmatpush1.msra.mxu0 0.0
    %3058 = vmatprep.subr.mxu0 0.0
    %3059 = vmatpush1.msra.mxu0 0.0
    %3060 = vmatprep.subr.mxu0 0.0
    %3061 = vmatpush1.msra.mxu0 0.0
    %3062 = vmatprep.subr.mxu0 0.0
    %3063 = vmatpush1.msra.mxu0 0.0
    %3064 = vmatprep.subr.mxu0 0.0
    %3065 = vmatpush1.msra.mxu0 0.0
    %3066 = vmatprep.subr.mxu0 0.0
    %3067 = vmatpush1.msra.mxu0 0.0
    %3068 = vmatprep.subr.mxu0 0.0
    %3069 = vmatpush1.msra.mxu0 0.0
    %3070 = vmatprep.subr.mxu0 0.0
    %3071 = vmatpush1.msra.mxu0 0.0
    %3072 = vmatprep.subr.mxu0 0.0
    %3073 = vmatpush1.msra.mxu0 0.0
    %3074 = vmatprep.subr.mxu0 0.0
    %3075 = vmatpush1.msra.mxu0 0.0
    %3076 = vmatprep.subr.mxu0 0.0
    %3077 = vmatpush1.msra.mxu0 0.0
    %3078 = vmatprep.subr.mxu0 0.0
    %3079 = vmatpush1.msra.mxu0 0.0
    %3080 = vmatprep.subr.mxu0 0.0
    %3081 = vmatpush1.msra.mxu0 0.0
    %3082 = vmatprep.subr.mxu0 0.0
    %3083 = vmatpush1.msra.mxu0 0.0
    %3084 = vmatprep.subr.mxu0 0.0
    %3085 = vmatpush1.msra.mxu0 0.0
    %3086 = vmatprep.mubr.f32.mxu0 0.0
    %3087 = vmatmul.mubr.f32.gmra.mrb[0].mxu0 %v3020
    %v3088 = vpop.f32.mrb[0].mxu0
    %v3089 = vadd.f32 0.0, %v3088
    %v3090 = vpop.f32.mrb[0].mxu0
    %3091 = vdwg.mxu0
    %v3093 = vsel %vm3018, %v2862, 0
    %3095 = vmatprep.subr.mxu0 0.0
    %3096 = vmatpush1.msra.mxu0 %v2938
    %3097 = vmatprep.subr.mxu0 0.0
    %3098 = vmatpush1.msra.mxu0 0.0
    %3099 = vmatprep.subr.mxu0 0.0
    %3100 = vmatpush1.msra.mxu0 0.0
    %3101 = vmatprep.subr.mxu0 0.0
    %3102 = vmatpush1.msra.mxu0 0.0
    %3103 = vmatprep.subr.mxu0 0.0
    %3104 = vmatpush1.msra.mxu0 0.0
    %3105 = vmatprep.subr.mxu0 0.0
    %3106 = vmatpush1.msra.mxu0 0.0
    %3107 = vmatprep.subr.mxu0 0.0
    %3108 = vmatpush1.msra.mxu0 0.0
    %3109 = vmatprep.subr.mxu0 0.0
    %3110 = vmatpush1.msra.mxu0 0.0
    %3111 = vmatprep.subr.mxu0 0.0
    %3112 = vmatpush1.msra.mxu0 0.0
    %3113 = vmatprep.subr.mxu0 0.0
    %3114 = vmatpush1.msra.mxu0 0.0
    %3115 = vmatprep.subr.mxu0 0.0
    %3116 = vmatpush1.msra.mxu0 0.0
    %3117 = vmatprep.subr.mxu0 0.0
    %3118 = vmatpush1.msra.mxu0 0.0
    %3119 = vmatprep.subr.mxu0 0.0
    %3120 = vmatpush1.msra.mxu0 0.0
    %3121 = vmatprep.subr.mxu0 0.0
    %3122 = vmatpush1.msra.mxu0 0.0
    %3123 = vmatprep.subr.mxu0 0.0
    %3124 = vmatpush1.msra.mxu0 0.0
    %3125 = vmatprep.subr.mxu0 0.0
    %3126 = vmatpush1.msra.mxu0 0.0
    %3127 = vmatprep.subr.mxu0 0.0
    %3128 = vmatpush1.msra.mxu0 0.0
    %3129 = vmatprep.subr.mxu0 0.0
    %3130 = vmatpush1.msra.mxu0 0.0
    %3131 = vmatprep.subr.mxu0 0.0
    %3132 = vmatpush1.msra.mxu0 0.0
    %3133 = vmatprep.subr.mxu0 0.0
    %3134 = vmatpush1.msra.mxu0 0.0
    %3135 = vmatprep.subr.mxu0 0.0
    %3136 = vmatpush1.msra.mxu0 0.0
    %3137 = vmatprep.subr.mxu0 0.0
    %3138 = vmatpush1.msra.mxu0 0.0
    %3139 = vmatprep.subr.mxu0 0.0
    %3140 = vmatpush1.msra.mxu0 0.0
    %3141 = vmatprep.subr.mxu0 0.0
    %3142 = vmatpush1.msra.mxu0 0.0
    %3143 = vmatprep.subr.mxu0 0.0
    %3144 = vmatpush1.msra.mxu0 0.0
    %3145 = vmatprep.subr.mxu0 0.0
    %3146 = vmatpush1.msra.mxu0 0.0
    %3147 = vmatprep.subr.mxu0 0.0
    %3148 = vmatpush1.msra.mxu0 0.0
    %3149 = vmatprep.subr.mxu0 0.0
    %3150 = vmatpush1.msra.mxu0 0.0
    %3151 = vmatprep.subr.mxu0 0.0
    %3152 = vmatpush1.msra.mxu0 0.0
    %3153 = vmatprep.subr.mxu0 0.0
    %3154 = vmatpush1.msra.mxu0 0.0
    %3155 = vmatprep.subr.mxu0 0.0
    %3156 = vmatpush1.msra.mxu0 0.0
    %3157 = vmatprep.subr.mxu0 0.0
    %3158 = vmatpush1.msra.mxu0 0.0
    %3159 = vmatprep.mubr.f32.mxu0 0.0
    %3160 = vmatmul.mubr.f32.gmra.mrb[0].mxu0 %v3093
    %v3161 = vpop.f32.mrb[0].mxu0
    %v3162 = vadd.f32 %v3089, %v3161
    %v3163 = vpop.f32.mrb[0].mxu0
    %3164 = vdwg.mxu0
    %s3165 = scalar_lea.vmem %s14, 8
    %v3166 = vld [vmem:[%s3165] sm:$0xf]
    %s3167 = scalar_lea.vmem %s15, 64
    %v3168 = vld [vmem:[%s3167] sm:$0xff]
    %v3169 = vld [vmem:[%s3167 + $0x8] sm:$0xff]
    %v3170 = vld [vmem:[%s3167 + $0x10] sm:$0xff]
    %v3171 = vld [vmem:[%s3167 + $0x18] sm:$0xff]
    %3172 = vmatprep.subr.mxu0 0.0
    %3173 = vmatpush1.msra.mxu0 %v3168
    %3174 = vmatprep.subr.mxu0 0.0
    %3175 = vmatpush1.msra.mxu0 %v3169
    %3176 = vmatprep.subr.mxu0 0.0
    %3177 = vmatpush1.msra.mxu0 %v3170
    %3178 = vmatprep.subr.mxu0 0.0
    %3179 = vmatpush1.msra.mxu0 %v3171
    %3180 = vmatprep.subr.mxu0 0.0
    %3181 = vmatpush1.msra.mxu0 0.0
    %3182 = vmatprep.subr.mxu0 0.0
    %3183 = vmatpush1.msra.mxu0 0.0
    %3184 = vmatprep.subr.mxu0 0.0
    %3185 = vmatpush1.msra.mxu0 0.0
    %3186 = vmatprep.subr.mxu0 0.0
    %3187 = vmatpush1.msra.mxu0 0.0
    %3188 = vmatprep.subr.mxu0 0.0
    %3189 = vmatpush1.msra.mxu0 0.0
    %3190 = vmatprep.subr.mxu0 0.0
    %3191 = vmatpush1.msra.mxu0 0.0
    %3192 = vmatprep.subr.mxu0 0.0
    %3193 = vmatpush1.msra.mxu0 0.0
    %3194 = vmatprep.subr.mxu0 0.0
    %3195 = vmatpush1.msra.mxu0 0.0
    %3196 = vmatprep.subr.mxu0 0.0
    %3197 = vmatpush1.msra.mxu0 0.0
    %3198 = vmatprep.subr.mxu0 0.0
    %3199 = vmatpush1.msra.mxu0 0.0
    %3200 = vmatprep.subr.mxu0 0.0
    %3201 = vmatpush1.msra.mxu0 0.0
    %3202 = vmatprep.subr.mxu0 0.0
    %3203 = vmatpush1.msra.mxu0 0.0
    %3204 = vmatprep.subr.mxu0 0.0
    %3205 = vmatpush1.msra.mxu0 0.0
    %3206 = vmatprep.subr.mxu0 0.0
    %3207 = vmatpush1.msra.mxu0 0.0
    %3208 = vmatprep.subr.mxu0 0.0
    %3209 = vmatpush1.msra.mxu0 0.0
    %3210 = vmatprep.subr.mxu0 0.0
    %3211 = vmatpush1.msra.mxu0 0.0
    %3212 = vmatprep.subr.mxu0 0.0
    %3213 = vmatpush1.msra.mxu0 0.0
    %3214 = vmatprep.subr.mxu0 0.0
    %3215 = vmatpush1.msra.mxu0 0.0
    %3216 = vmatprep.subr.mxu0 0.0
    %3217 = vmatpush1.msra.mxu0 0.0
    %3218 = vmatprep.subr.mxu0 0.0
    %3219 = vmatpush1.msra.mxu0 0.0
    %3220 = vmatprep.subr.mxu0 0.0
    %3221 = vmatpush1.msra.mxu0 0.0
    %3222 = vmatprep.subr.mxu0 0.0
    %3223 = vmatpush1.msra.mxu0 0.0
    %3224 = vmatprep.subr.mxu0 0.0
    %3225 = vmatpush1.msra.mxu0 0.0
    %3226 = vmatprep.subr.mxu0 0.0
    %3227 = vmatpush1.msra.mxu0 0.0
    %3228 = vmatprep.subr.mxu0 0.0
    %3229 = vmatpush1.msra.mxu0 0.0
    %3230 = vmatprep.subr.mxu0 0.0
    %3231 = vmatpush1.msra.mxu0 0.0
    %3232 = vmatprep.subr.mxu0 0.0
    %3233 = vmatpush1.msra.mxu0 0.0
    %3234 = vmatprep.subr.mxu0 0.0
    %3235 = vmatpush1.msra.mxu0 0.0
    %3236 = vmatprep.mubr.f32.mxu0 0.0
    %3237 = vmatmul.mubr.f32.gmra.mrb[0].mxu0 %v2869
    %v3238 = vpop.f32.mrb[0].mxu0
    %v3239 = vadd.f32 0.0, %v3238
    %v3240 = vpop.f32.mrb[0].mxu0
    %3241 = vdwg.mxu0
    %v3243 = vsel %vm3018, %v3166, 0
    %3245 = vmatprep.subr.mxu0 0.0
    %3246 = vmatpush1.msra.mxu0 %v3239
    %3247 = vmatprep.subr.mxu0 0.0
    %3248 = vmatpush1.msra.mxu0 0.0
    %3249 = vmatprep.subr.mxu0 0.0
    %3250 = vmatpush1.msra.mxu0 0.0
    %3251 = vmatprep.subr.mxu0 0.0
    %3252 = vmatpush1.msra.mxu0 0.0
    %3253 = vmatprep.subr.mxu0 0.0
    %3254 = vmatpush1.msra.mxu0 0.0
    %3255 = vmatprep.subr.mxu0 0.0
    %3256 = vmatpush1.msra.mxu0 0.0
    %3257 = vmatprep.subr.mxu0 0.0
    %3258 = vmatpush1.msra.mxu0 0.0
    %3259 = vmatprep.subr.mxu0 0.0
    %3260 = vmatpush1.msra.mxu0 0.0
    %3261 = vmatprep.subr.mxu0 0.0
    %3262 = vmatpush1.msra.mxu0 0.0
    %3263 = vmatprep.subr.mxu0 0.0
    %3264 = vmatpush1.msra.mxu0 0.0
    %3265 = vmatprep.subr.mxu0 0.0
    %3266 = vmatpush1.msra.mxu0 0.0
    %3267 = vmatprep.subr.mxu0 0.0
    %3268 = vmatpush1.msra.mxu0 0.0
    %3269 = vmatprep.subr.mxu0 0.0
    %3270 = vmatpush1.msra.mxu0 0.0
    %3271 = vmatprep.subr.mxu0 0.0
    %3272 = vmatpush1.msra.mxu0 0.0
    %3273 = vmatprep.subr.mxu0 0.0
    %3274 = vmatpush1.msra.mxu0 0.0
    %3275 = vmatprep.subr.mxu0 0.0
    %3276 = vmatpush1.msra.mxu0 0.0
    %3277 = vmatprep.subr.mxu0 0.0
    %3278 = vmatpush1.msra.mxu0 0.0
    %3279 = vmatprep.subr.mxu0 0.0
    %3280 = vmatpush1.msra.mxu0 0.0
    %3281 = vmatprep.subr.mxu0 0.0
    %3282 = vmatpush1.msra.mxu0 0.0
    %3283 = vmatprep.subr.mxu0 0.0
    %3284 = vmatpush1.msra.mxu0 0.0
    %3285 = vmatprep.subr.mxu0 0.0
    %3286 = vmatpush1.msra.mxu0 0.0
    %3287 = vmatprep.subr.mxu0 0.0
    %3288 = vmatpush1.msra.mxu0 0.0
    %3289 = vmatprep.subr.mxu0 0.0
    %3290 = vmatpush1.msra.mxu0 0.0
    %3291 = vmatprep.subr.mxu0 0.0
    %3292 = vmatpush1.msra.mxu0 0.0
    %3293 = vmatprep.subr.mxu0 0.0
    %3294 = vmatpush1.msra.mxu0 0.0
    %3295 = vmatprep.subr.mxu0 0.0
    %3296 = vmatpush1.msra.mxu0 0.0
    %3297 = vmatprep.subr.mxu0 0.0
    %3298 = vmatpush1.msra.mxu0 0.0
    %3299 = vmatprep.subr.mxu0 0.0
    %3300 = vmatpush1.msra.mxu0 0.0
    %3301 = vmatprep.subr.mxu0 0.0
    %3302 = vmatpush1.msra.mxu0 0.0
    %3303 = vmatprep.subr.mxu0 0.0
    %3304 = vmatpush1.msra.mxu0 0.0
    %3305 = vmatprep.subr.mxu0 0.0
    %3306 = vmatpush1.msra.mxu0 0.0
    %3307 = vmatprep.subr.mxu0 0.0
    %3308 = vmatpush1.msra.mxu0 0.0
    %3309 = vmatprep.mubr.f32.mxu0 0.0
    %3310 = vmatmul.mubr.f32.gmra.mrb[0].mxu0 %v3243
    %v3311 = vpop.f32.mrb[0].mxu0
    %v3312 = vadd.f32 0.0, %v3311
    %v3313 = vpop.f32.mrb[0].mxu0
    %3314 = vdwg.mxu0
    %v3315 = vadd.f32 %v3162, %v3312
    %v3316 = vld [vmem:[#allocation7] sm:$0x1]
    %v3318 = vlaneseq
    %v3319 = vshrl.u32 %v3318, 7
    %v3320 = vsub.s32 0, %v3319
    %v3321 = vrot.slane %v3316, %v3320
    %v3323 = vadd.f32 %v3315, %v3321
    %v3324 = vmax.f32 %v3323, 0.0
    %v3325 = vld [vmem:[#allocation8] sm:$0xf]
    %v3326 = vld [vmem:[#allocation10] sm:$0xff]
    %v3327 = vld [vmem:[#allocation10 + $0x8] sm:$0xff]
    %vm3328 = vcmask 130048
    %v3330 = vsel %vm3328, %v3324, 0
    %3332 = vmatprep.subr.mxu0 0.0
    %3333 = vmatpush1.msra.mxu0 %v3326
    %3334 = vmatprep.subr.mxu0 0.0
    %3335 = vmatpush1.msra.mxu0 %v3327
    %3336 = vmatprep.subr.mxu0 0.0
    %3337 = vmatpush1.msra.mxu0 0.0
    %3338 = vmatprep.subr.mxu0 0.0
    %3339 = vmatpush1.msra.mxu0 0.0
    %3340 = vmatprep.subr.mxu0 0.0
    %3341 = vmatpush1.msra.mxu0 0.0
    %3342 = vmatprep.subr.mxu0 0.0
    %3343 = vmatpush1.msra.mxu0 0.0
    %3344 = vmatprep.subr.mxu0 0.0
    %3345 = vmatpush1.msra.mxu0 0.0
    %3346 = vmatprep.subr.mxu0 0.0
    %3347 = vmatpush1.msra.mxu0 0.0
    %3348 = vmatprep.subr.mxu0 0.0
    %3349 = vmatpush1.msra.mxu0 0.0
    %3350 = vmatprep.subr.mxu0 0.0
    %3351 = vmatpush1.msra.mxu0 0.0
    %3352 = vmatprep.subr.mxu0 0.0
    %3353 = vmatpush1.msra.mxu0 0.0
    %3354 = vmatprep.subr.mxu0 0.0
    %3355 = vmatpush1.msra.mxu0 0.0
    %3356 = vmatprep.subr.mxu0 0.0
    %3357 = vmatpush1.msra.mxu0 0.0
    %3358 = vmatprep.subr.mxu0 0.0
    %3359 = vmatpush1.msra.mxu0 0.0
    %3360 = vmatprep.subr.mxu0 0.0
    %3361 = vmatpush1.msra.mxu0 0.0
    %3362 = vmatprep.subr.mxu0 0.0
    %3363 = vmatpush1.msra.mxu0 0.0
    %3364 = vmatprep.subr.mxu0 0.0
    %3365 = vmatpush1.msra.mxu0 0.0
    %3366 = vmatprep.subr.mxu0 0.0
    %3367 = vmatpush1.msra.mxu0 0.0
    %3368 = vmatprep.subr.mxu0 0.0
    %3369 = vmatpush1.msra.mxu0 0.0
    %3370 = vmatprep.subr.mxu0 0.0
    %3371 = vmatpush1.msra.mxu0 0.0
    %3372 = vmatprep.subr.mxu0 0.0
    %3373 = vmatpush1.msra.mxu0 0.0
    %3374 = vmatprep.subr.mxu0 0.0
    %3375 = vmatpush1.msra.mxu0 0.0
    %3376 = vmatprep.subr.mxu0 0.0
    %3377 = vmatpush1.msra.mxu0 0.0
    %3378 = vmatprep.subr.mxu0 0.0
    %3379 = vmatpush1.msra.mxu0 0.0
    %3380 = vmatprep.subr.mxu0 0.0
    %3381 = vmatpush1.msra.mxu0 0.0
    %3382 = vmatprep.subr.mxu0 0.0
    %3383 = vmatpush1.msra.mxu0 0.0
    %3384 = vmatprep.subr.mxu0 0.0
    %3385 = vmatpush1.msra.mxu0 0.0
    %3386 = vmatprep.subr.mxu0 0.0
    %3387 = vmatpush1.msra.mxu0 0.0
    %3388 = vmatprep.subr.mxu0 0.0
    %3389 = vmatpush1.msra.mxu0 0.0
    %3390 = vmatprep.subr.mxu0 0.0
    %3391 = vmatpush1.msra.mxu0 0.0
    %3392 = vmatprep.subr.mxu0 0.0
    %3393 = vmatpush1.msra.mxu0 0.0
    %3394 = vmatprep.subr.mxu0 0.0
    %3395 = vmatpush1.msra.mxu0 0.0
    %3396 = vmatprep.mubr.f32.mxu0 0.0
    %3397 = vmatmul.mubr.f32.gmra.mrb[0].mxu0 %v3330
    %v3398 = vpop.f32.mrb[0].mxu0
    %v3399 = vadd.f32 0.0, %v3398
    %v3400 = vpop.f32.mrb[0].mxu0
    %3401 = vdwg.mxu0
    %s3402 = scalar_lea.vmem [#allocation10], 16
    %v3403 = vld [vmem:[%s3402] sm:$0xff]
    %v3404 = vld [vmem:[%s3402 + $0x8] sm:$0xff]
    %3405 = vmatprep.subr.mxu0 0.0
    %3406 = vmatpush1.msra.mxu0 %v3403
    %3407 = vmatprep.subr.mxu0 0.0
    %3408 = vmatpush1.msra.mxu0 %v3404
    %3409 = vmatprep.subr.mxu0 0.0
    %3410 = vmatpush1.msra.mxu0 0.0
    %3411 = vmatprep.subr.mxu0 0.0
    %3412 = vmatpush1.msra.mxu0 0.0
    %3413 = vmatprep.subr.mxu0 0.0
    %3414 = vmatpush1.msra.mxu0 0.0
    %3415 = vmatprep.subr.mxu0 0.0
    %3416 = vmatpush1.msra.mxu0 0.0
    %3417 = vmatprep.subr.mxu0 0.0
    %3418 = vmatpush1.msra.mxu0 0.0
    %3419 = vmatprep.subr.mxu0 0.0
    %3420 = vmatpush1.msra.mxu0 0.0
    %3421 = vmatprep.subr.mxu0 0.0
    %3422 = vmatpush1.msra.mxu0 0.0
    %3423 = vmatprep.subr.mxu0 0.0
    %3424 = vmatpush1.msra.mxu0 0.0
    %3425 = vmatprep.subr.mxu0 0.0
    %3426 = vmatpush1.msra.mxu0 0.0
    %3427 = vmatprep.subr.mxu0 0.0
    %3428 = vmatpush1.msra.mxu0 0.0
    %3429 = vmatprep.subr.mxu0 0.0
    %3430 = vmatpush1.msra.mxu0 0.0
    %3431 = vmatprep.subr.mxu0 0.0
    %3432 = vmatpush1.msra.mxu0 0.0
    %3433 = vmatprep.subr.mxu0 0.0
    %3434 = vmatpush1.msra.mxu0 0.0
    %3435 = vmatprep.subr.mxu0 0.0
    %3436 = vmatpush1.msra.mxu0 0.0
    %3437 = vmatprep.subr.mxu0 0.0
    %3438 = vmatpush1.msra.mxu0 0.0
    %3439 = vmatprep.subr.mxu0 0.0
    %3440 = vmatpush1.msra.mxu0 0.0
    %3441 = vmatprep.subr.mxu0 0.0
    %3442 = vmatpush1.msra.mxu0 0.0
    %3443 = vmatprep.subr.mxu0 0.0
    %3444 = vmatpush1.msra.mxu0 0.0
    %3445 = vmatprep.subr.mxu0 0.0
    %3446 = vmatpush1.msra.mxu0 0.0
    %3447 = vmatprep.subr.mxu0 0.0
    %3448 = vmatpush1.msra.mxu0 0.0
    %3449 = vmatprep.subr.mxu0 0.0
    %3450 = vmatpush1.msra.mxu0 0.0
    %3451 = vmatprep.subr.mxu0 0.0
    %3452 = vmatpush1.msra.mxu0 0.0
    %3453 = vmatprep.subr.mxu0 0.0
    %3454 = vmatpush1.msra.mxu0 0.0
    %3455 = vmatprep.subr.mxu0 0.0
    %3456 = vmatpush1.msra.mxu0 0.0
    %3457 = vmatprep.subr.mxu0 0.0
    %3458 = vmatpush1.msra.mxu0 0.0
    %3459 = vmatprep.subr.mxu0 0.0
    %3460 = vmatpush1.msra.mxu0 0.0
    %3461 = vmatprep.subr.mxu0 0.0
    %3462 = vmatpush1.msra.mxu0 0.0
    %3463 = vmatprep.subr.mxu0 0.0
    %3464 = vmatpush1.msra.mxu0 0.0
    %3465 = vmatprep.subr.mxu0 0.0
    %3466 = vmatpush1.msra.mxu0 0.0
    %3467 = vmatprep.subr.mxu0 0.0
    %3468 = vmatpush1.msra.mxu0 0.0
    %3469 = vmatprep.mubr.f32.mxu0 0.0
    %3470 = vmatmul.mubr.f32.gmra.mrb[0].mxu0 %v3330
    %v3471 = vpop.f32.mrb[0].mxu0
    %v3472 = vadd.f32 0.0, %v3471
    %v3473 = vpop.f32.mrb[0].mxu0
    %3474 = vdwg.mxu0
    %vm3475 = vcmask 31744
    %v3477 = vsel %vm3475, %v3325, 0
    %v3480 = vsel %vm258, %v3399, 0
    %3482 = vmatprep.subr.mxu0 0.0
    %3483 = vmatpush1.msra.mxu0 %v3480
    %3484 = vmatprep.subr.mxu0 0.0
    %3485 = vmatpush1.msra.mxu0 0.0
    %3486 = vmatprep.subr.mxu0 0.0
    %3487 = vmatpush1.msra.mxu0 0.0
    %3488 = vmatprep.subr.mxu0 0.0
    %3489 = vmatpush1.msra.mxu0 0.0
    %3490 = vmatprep.subr.mxu0 0.0
    %3491 = vmatpush1.msra.mxu0 0.0
    %3492 = vmatprep.subr.mxu0 0.0
    %3493 = vmatpush1.msra.mxu0 0.0
    %3494 = vmatprep.subr.mxu0 0.0
    %3495 = vmatpush1.msra.mxu0 0.0
    %3496 = vmatprep.subr.mxu0 0.0
    %3497 = vmatpush1.msra.mxu0 0.0
    %3498 = vmatprep.subr.mxu0 0.0
    %3499 = vmatpush1.msra.mxu0 0.0
    %3500 = vmatprep.subr.mxu0 0.0
    %3501 = vmatpush1.msra.mxu0 0.0
    %3502 = vmatprep.subr.mxu0 0.0
    %3503 = vmatpush1.msra.mxu0 0.0
    %3504 = vmatprep.subr.mxu0 0.0
    %3505 = vmatpush1.msra.mxu0 0.0
    %3506 = vmatprep.subr.mxu0 0.0
    %3507 = vmatpush1.msra.mxu0 0.0
    %3508 = vmatprep.subr.mxu0 0.0
    %3509 = vmatpush1.msra.mxu0 0.0
    %3510 = vmatprep.subr.mxu0 0.0
    %3511 = vmatpush1.msra.mxu0 0.0
    %3512 = vmatprep.subr.mxu0 0.0
    %3513 = vmatpush1.msra.mxu0 0.0
    %3514 = vmatprep.subr.mxu0 0.0
    %3515 = vmatpush1.msra.mxu0 0.0
    %3516 = vmatprep.subr.mxu0 0.0
    %3517 = vmatpush1.msra.mxu0 0.0
    %3518 = vmatprep.subr.mxu0 0.0
    %3519 = vmatpush1.msra.mxu0 0.0
    %3520 = vmatprep.subr.mxu0 0.0
    %3521 = vmatpush1.msra.mxu0 0.0
    %3522 = vmatprep.subr.mxu0 0.0
    %3523 = vmatpush1.msra.mxu0 0.0
    %3524 = vmatprep.subr.mxu0 0.0
    %3525 = vmatpush1.msra.mxu0 0.0
    %3526 = vmatprep.subr.mxu0 0.0
    %3527 = vmatpush1.msra.mxu0 0.0
    %3528 = vmatprep.subr.mxu0 0.0
    %3529 = vmatpush1.msra.mxu0 0.0
    %3530 = vmatprep.subr.mxu0 0.0
    %3531 = vmatpush1.msra.mxu0 0.0
    %3532 = vmatprep.subr.mxu0 0.0
    %3533 = vmatpush1.msra.mxu0 0.0
    %3534 = vmatprep.subr.mxu0 0.0
    %3535 = vmatpush1.msra.mxu0 0.0
    %3536 = vmatprep.subr.mxu0 0.0
    %3537 = vmatpush1.msra.mxu0 0.0
    %3538 = vmatprep.subr.mxu0 0.0
    %3539 = vmatpush1.msra.mxu0 0.0
    %3540 = vmatprep.subr.mxu0 0.0
    %3541 = vmatpush1.msra.mxu0 0.0
    %3542 = vmatprep.subr.mxu0 0.0
    %3543 = vmatpush1.msra.mxu0 0.0
    %3544 = vmatprep.subr.mxu0 0.0
    %3545 = vmatpush1.msra.mxu0 0.0
    %3546 = vmatprep.mubr.f32.mxu0 0.0
    %3547 = vmatmul.mubr.f32.gmra.mrb[0].mxu0 %v3477
    %v3548 = vpop.f32.mrb[0].mxu0
    %v3549 = vadd.f32 %v3472, %v3548
    %v3550 = vpop.f32.mrb[0].mxu0
    %3551 = vdwg.mxu0
    %s3552 = scalar_lea.vmem [#allocation8], 4
    %v3553 = vld [vmem:[%s3552] sm:$0xf]
    %s3554 = scalar_lea.vmem [#allocation10], 32
    %v3555 = vld [vmem:[%s3554] sm:$0xff]
    %v3556 = vld [vmem:[%s3554 + $0x8] sm:$0xff]
    %3557 = vmatprep.subr.mxu0 0.0
    %3558 = vmatpush1.msra.mxu0 %v3555
    %3559 = vmatprep.subr.mxu0 0.0
    %3560 = vmatpush1.msra.mxu0 %v3556
    %3561 = vmatprep.subr.mxu0 0.0
    %3562 = vmatpush1.msra.mxu0 0.0
    %3563 = vmatprep.subr.mxu0 0.0
    %3564 = vmatpush1.msra.mxu0 0.0
    %3565 = vmatprep.subr.mxu0 0.0
    %3566 = vmatpush1.msra.mxu0 0.0
    %3567 = vmatprep.subr.mxu0 0.0
    %3568 = vmatpush1.msra.mxu0 0.0
    %3569 = vmatprep.subr.mxu0 0.0
    %3570 = vmatpush1.msra.mxu0 0.0
    %3571 = vmatprep.subr.mxu0 0.0
    %3572 = vmatpush1.msra.mxu0 0.0
    %3573 = vmatprep.subr.mxu0 0.0
    %3574 = vmatpush1.msra.mxu0 0.0
    %3575 = vmatprep.subr.mxu0 0.0
    %3576 = vmatpush1.msra.mxu0 0.0
    %3577 = vmatprep.subr.mxu0 0.0
    %3578 = vmatpush1.msra.mxu0 0.0
    %3579 = vmatprep.subr.mxu0 0.0
    %3580 = vmatpush1.msra.mxu0 0.0
    %3581 = vmatprep.subr.mxu0 0.0
    %3582 = vmatpush1.msra.mxu0 0.0
    %3583 = vmatprep.subr.mxu0 0.0
    %3584 = vmatpush1.msra.mxu0 0.0
    %3585 = vmatprep.subr.mxu0 0.0
    %3586 = vmatpush1.msra.mxu0 0.0
    %3587 = vmatprep.subr.mxu0 0.0
    %3588 = vmatpush1.msra.mxu0 0.0
    %3589 = vmatprep.subr.mxu0 0.0
    %3590 = vmatpush1.msra.mxu0 0.0
    %3591 = vmatprep.subr.mxu0 0.0
    %3592 = vmatpush1.msra.mxu0 0.0
    %3593 = vmatprep.subr.mxu0 0.0
    %3594 = vmatpush1.msra.mxu0 0.0
    %3595 = vmatprep.subr.mxu0 0.0
    %3596 = vmatpush1.msra.mxu0 0.0
    %3597 = vmatprep.subr.mxu0 0.0
    %3598 = vmatpush1.msra.mxu0 0.0
    %3599 = vmatprep.subr.mxu0 0.0
    %3600 = vmatpush1.msra.mxu0 0.0
    %3601 = vmatprep.subr.mxu0 0.0
    %3602 = vmatpush1.msra.mxu0 0.0
    %3603 = vmatprep.subr.mxu0 0.0
    %3604 = vmatpush1.msra.mxu0 0.0
    %3605 = vmatprep.subr.mxu0 0.0
    %3606 = vmatpush1.msra.mxu0 0.0
    %3607 = vmatprep.subr.mxu0 0.0
    %3608 = vmatpush1.msra.mxu0 0.0
    %3609 = vmatprep.subr.mxu0 0.0
    %3610 = vmatpush1.msra.mxu0 0.0
    %3611 = vmatprep.subr.mxu0 0.0
    %3612 = vmatpush1.msra.mxu0 0.0
    %3613 = vmatprep.subr.mxu0 0.0
    %3614 = vmatpush1.msra.mxu0 0.0
    %3615 = vmatprep.subr.mxu0 0.0
    %3616 = vmatpush1.msra.mxu0 0.0
    %3617 = vmatprep.subr.mxu0 0.0
    %3618 = vmatpush1.msra.mxu0 0.0
    %3619 = vmatprep.subr.mxu0 0.0
    %3620 = vmatpush1.msra.mxu0 0.0
    %3621 = vmatprep.mubr.f32.mxu0 0.0
    %3622 = vmatmul.mubr.f32.gmra.mrb[0].mxu0 %v3330
    %v3623 = vpop.f32.mrb[0].mxu0
    %v3624 = vadd.f32 0.0, %v3623
    %v3625 = vpop.f32.mrb[0].mxu0
    %3626 = vdwg.mxu0
    %v3628 = vsel %vm3475, %v3553, 0
    %v3631 = vsel %vm258, %v3624, 0
    %3633 = vmatprep.subr.mxu0 0.0
    %3634 = vmatpush1.msra.mxu0 %v3631
    %3635 = vmatprep.subr.mxu0 0.0
    %3636 = vmatpush1.msra.mxu0 0.0
    %3637 = vmatprep.subr.mxu0 0.0
    %3638 = vmatpush1.msra.mxu0 0.0
    %3639 = vmatprep.subr.mxu0 0.0
    %3640 = vmatpush1.msra.mxu0 0.0
    %3641 = vmatprep.subr.mxu0 0.0
    %3642 = vmatpush1.msra.mxu0 0.0
    %3643 = vmatprep.subr.mxu0 0.0
    %3644 = vmatpush1.msra.mxu0 0.0
    %3645 = vmatprep.subr.mxu0 0.0
    %3646 = vmatpush1.msra.mxu0 0.0
    %3647 = vmatprep.subr.mxu0 0.0
    %3648 = vmatpush1.msra.mxu0 0.0
    %3649 = vmatprep.subr.mxu0 0.0
    %3650 = vmatpush1.msra.mxu0 0.0
    %3651 = vmatprep.subr.mxu0 0.0
    %3652 = vmatpush1.msra.mxu0 0.0
    %3653 = vmatprep.subr.mxu0 0.0
    %3654 = vmatpush1.msra.mxu0 0.0
    %3655 = vmatprep.subr.mxu0 0.0
    %3656 = vmatpush1.msra.mxu0 0.0
    %3657 = vmatprep.subr.mxu0 0.0
    %3658 = vmatpush1.msra.mxu0 0.0
    %3659 = vmatprep.subr.mxu0 0.0
    %3660 = vmatpush1.msra.mxu0 0.0
    %3661 = vmatprep.subr.mxu0 0.0
    %3662 = vmatpush1.msra.mxu0 0.0
    %3663 = vmatprep.subr.mxu0 0.0
    %3664 = vmatpush1.msra.mxu0 0.0
    %3665 = vmatprep.subr.mxu0 0.0
    %3666 = vmatpush1.msra.mxu0 0.0
    %3667 = vmatprep.subr.mxu0 0.0
    %3668 = vmatpush1.msra.mxu0 0.0
    %3669 = vmatprep.subr.mxu0 0.0
    %3670 = vmatpush1.msra.mxu0 0.0
    %3671 = vmatprep.subr.mxu0 0.0
    %3672 = vmatpush1.msra.mxu0 0.0
    %3673 = vmatprep.subr.mxu0 0.0
    %3674 = vmatpush1.msra.mxu0 0.0
    %3675 = vmatprep.subr.mxu0 0.0
    %3676 = vmatpush1.msra.mxu0 0.0
    %3677 = vmatprep.subr.mxu0 0.0
    %3678 = vmatpush1.msra.mxu0 0.0
    %3679 = vmatprep.subr.mxu0 0.0
    %3680 = vmatpush1.msra.mxu0 0.0
    %3681 = vmatprep.subr.mxu0 0.0
    %3682 = vmatpush1.msra.mxu0 0.0
    %3683 = vmatprep.subr.mxu0 0.0
    %3684 = vmatpush1.msra.mxu0 0.0
    %3685 = vmatprep.subr.mxu0 0.0
    %3686 = vmatpush1.msra.mxu0 0.0
    %3687 = vmatprep.subr.mxu0 0.0
    %3688 = vmatpush1.msra.mxu0 0.0
    %3689 = vmatprep.subr.mxu0 0.0
    %3690 = vmatpush1.msra.mxu0 0.0
    %3691 = vmatprep.subr.mxu0 0.0
    %3692 = vmatpush1.msra.mxu0 0.0
    %3693 = vmatprep.subr.mxu0 0.0
    %3694 = vmatpush1.msra.mxu0 0.0
    %3695 = vmatprep.subr.mxu0 0.0
    %3696 = vmatpush1.msra.mxu0 0.0
    %3697 = vmatprep.mubr.f32.mxu0 0.0
    %3698 = vmatmul.mubr.f32.gmra.mrb[0].mxu0 %v3628
    %v3699 = vpop.f32.mrb[0].mxu0
    %v3700 = vadd.f32 0.0, %v3699
    %v3701 = vpop.f32.mrb[0].mxu0
    %3702 = vdwg.mxu0
    %v3703 = vadd.f32 %v3549, %v3700
    %v3704 = vld [vmem:[#allocation11] sm:$0x1]
    %v3706 = vlaneseq
    %v3707 = vshrl.u32 %v3706, 7
    %v3708 = vsub.s32 0, %v3707
    %v3709 = vrot.slane %v3704, %v3708
    %v3711 = vadd.f32 %v3703, %v3709
    %v3712 = vmax.f32 %v3711, 0.0
    %v3713 = vld [vmem:[#allocation13] sm:$0x3]
    %v3715 = vsel %vm3475, %v3713, 0
    %v3718 = vsel %vm258, %v3712, 0
    %3720 = vmatprep.subr.mxu0 0.0
    %3721 = vmatpush1.msra.mxu0 %v3718
    %3722 = vmatprep.subr.mxu0 0.0
    %3723 = vmatpush1.msra.mxu0 0.0
    %3724 = vmatprep.subr.mxu0 0.0
    %3725 = vmatpush1.msra.mxu0 0.0
    %3726 = vmatprep.subr.mxu0 0.0
    %3727 = vmatpush1.msra.mxu0 0.0
    %3728 = vmatprep.subr.mxu0 0.0
    %3729 = vmatpush1.msra.mxu0 0.0
    %3730 = vmatprep.subr.mxu0 0.0
    %3731 = vmatpush1.msra.mxu0 0.0
    %3732 = vmatprep.subr.mxu0 0.0
    %3733 = vmatpush1.msra.mxu0 0.0
    %3734 = vmatprep.subr.mxu0 0.0
    %3735 = vmatpush1.msra.mxu0 0.0
    %3736 = vmatprep.subr.mxu0 0.0
    %3737 = vmatpush1.msra.mxu0 0.0
    %3738 = vmatprep.subr.mxu0 0.0
    %3739 = vmatpush1.msra.mxu0 0.0
    %3740 = vmatprep.subr.mxu0 0.0
    %3741 = vmatpush1.msra.mxu0 0.0
    %3742 = vmatprep.subr.mxu0 0.0
    %3743 = vmatpush1.msra.mxu0 0.0
    %3744 = vmatprep.subr.mxu0 0.0
    %3745 = vmatpush1.msra.mxu0 0.0
    %3746 = vmatprep.subr.mxu0 0.0
    %3747 = vmatpush1.msra.mxu0 0.0
    %3748 = vmatprep.subr.mxu0 0.0
    %3749 = vmatpush1.msra.mxu0 0.0
    %3750 = vmatprep.subr.mxu0 0.0
    %3751 = vmatpush1.msra.mxu0 0.0
    %3752 = vmatprep.subr.mxu0 0.0
    %3753 = vmatpush1.msra.mxu0 0.0
    %3754 = vmatprep.subr.mxu0 0.0
    %3755 = vmatpush1.msra.mxu0 0.0
    %3756 = vmatprep.subr.mxu0 0.0
    %3757 = vmatpush1.msra.mxu0 0.0
    %3758 = vmatprep.subr.mxu0 0.0
    %3759 = vmatpush1.msra.mxu0 0.0
    %3760 = vmatprep.subr.mxu0 0.0
    %3761 = vmatpush1.msra.mxu0 0.0
    %3762 = vmatprep.subr.mxu0 0.0
    %3763 = vmatpush1.msra.mxu0 0.0
    %3764 = vmatprep.subr.mxu0 0.0
    %3765 = vmatpush1.msra.mxu0 0.0
    %3766 = vmatprep.subr.mxu0 0.0
    %3767 = vmatpush1.msra.mxu0 0.0
    %3768 = vmatprep.subr.mxu0 0.0
    %3769 = vmatpush1.msra.mxu0 0.0
    %3770 = vmatprep.subr.mxu0 0.0
    %3771 = vmatpush1.msra.mxu0 0.0
    %3772 = vmatprep.subr.mxu0 0.0
    %3773 = vmatpush1.msra.mxu0 0.0
    %3774 = vmatprep.subr.mxu0 0.0
    %3775 = vmatpush1.msra.mxu0 0.0
    %3776 = vmatprep.subr.mxu0 0.0
    %3777 = vmatpush1.msra.mxu0 0.0
    %3778 = vmatprep.subr.mxu0 0.0
    %3779 = vmatpush1.msra.mxu0 0.0
    %3780 = vmatprep.subr.mxu0 0.0
    %3781 = vmatpush1.msra.mxu0 0.0
    %3782 = vmatprep.subr.mxu0 0.0
    %3783 = vmatpush1.msra.mxu0 0.0
    %3784 = vmatprep.mubr.f32.mxu0 0.0
    %3785 = vmatmul.mubr.f32.gmra.mrb[0].mxu0 %v3715
    %v3786 = vpop.f32.mrb[0].mxu0
    %v3787 = vadd.f32 0.0, %v3786
    %v3788 = vpop.f32.mrb[0].mxu0
    %3789 = vdwg.mxu0
    %s3790 = scalar_lea.vmem [#allocation13], 2
    %v3791 = vld [vmem:[%s3790] sm:$0x3]
    %v3793 = vsel %vm3475, %v3791, 0
    %3795 = vmatprep.subr.mxu0 0.0
    %3796 = vmatpush1.msra.mxu0 %v3718
    %3797 = vmatprep.subr.mxu0 0.0
    %3798 = vmatpush1.msra.mxu0 0.0
    %3799 = vmatprep.subr.mxu0 0.0
    %3800 = vmatpush1.msra.mxu0 0.0
    %3801 = vmatprep.subr.mxu0 0.0
    %3802 = vmatpush1.msra.mxu0 0.0
    %3803 = vmatprep.subr.mxu0 0.0
    %3804 = vmatpush1.msra.mxu0 0.0
    %3805 = vmatprep.subr.mxu0 0.0
    %3806 = vmatpush1.msra.mxu0 0.0
    %3807 = vmatprep.subr.mxu0 0.0
    %3808 = vmatpush1.msra.mxu0 0.0
    %3809 = vmatprep.subr.mxu0 0.0
    %3810 = vmatpush1.msra.mxu0 0.0
    %3811 = vmatprep.subr.mxu0 0.0
    %3812 = vmatpush1.msra.mxu0 0.0
    %3813 = vmatprep.subr.mxu0 0.0
    %3814 = vmatpush1.msra.mxu0 0.0
    %3815 = vmatprep.subr.mxu0 0.0
    %3816 = vmatpush1.msra.mxu0 0.0
    %3817 = vmatprep.subr.mxu0 0.0
    %3818 = vmatpush1.msra.mxu0 0.0
    %3819 = vmatprep.subr.mxu0 0.0
    %3820 = vmatpush1.msra.mxu0 0.0
    %3821 = vmatprep.subr.mxu0 0.0
    %3822 = vmatpush1.msra.mxu0 0.0
    %3823 = vmatprep.subr.mxu0 0.0
    %3824 = vmatpush1.msra.mxu0 0.0
    %3825 = vmatprep.subr.mxu0 0.0
    %3826 = vmatpush1.msra.mxu0 0.0
    %3827 = vmatprep.subr.mxu0 0.0
    %3828 = vmatpush1.msra.mxu0 0.0
    %3829 = vmatprep.subr.mxu0 0.0
    %3830 = vmatpush1.msra.mxu0 0.0
    %3831 = vmatprep.subr.mxu0 0.0
    %3832 = vmatpush1.msra.mxu0 0.0
    %3833 = vmatprep.subr.mxu0 0.0
    %3834 = vmatpush1.msra.mxu0 0.0
    %3835 = vmatprep.subr.mxu0 0.0
    %3836 = vmatpush1.msra.mxu0 0.0
    %3837 = vmatprep.subr.mxu0 0.0
    %3838 = vmatpush1.msra.mxu0 0.0
    %3839 = vmatprep.subr.mxu0 0.0
    %3840 = vmatpush1.msra.mxu0 0.0
    %3841 = vmatprep.subr.mxu0 0.0
    %3842 = vmatpush1.msra.mxu0 0.0
    %3843 = vmatprep.subr.mxu0 0.0
    %3844 = vmatpush1.msra.mxu0 0.0
    %3845 = vmatprep.subr.mxu0 0.0
    %3846 = vmatpush1.msra.mxu0 0.0
    %3847 = vmatprep.subr.mxu0 0.0
    %3848 = vmatpush1.msra.mxu0 0.0
    %3849 = vmatprep.subr.mxu0 0.0
    %3850 = vmatpush1.msra.mxu0 0.0
    %3851 = vmatprep.subr.mxu0 0.0
    %3852 = vmatpush1.msra.mxu0 0.0
    %3853 = vmatprep.subr.mxu0 0.0
    %3854 = vmatpush1.msra.mxu0 0.0
    %3855 = vmatprep.subr.mxu0 0.0
    %3856 = vmatpush1.msra.mxu0 0.0
    %3857 = vmatprep.subr.mxu0 0.0
    %3858 = vmatpush1.msra.mxu0 0.0
    %3859 = vmatprep.mubr.f32.mxu0 0.0
    %3860 = vmatmul.mubr.f32.gmra.mrb[0].mxu0 %v3793
    %v3861 = vpop.f32.mrb[0].mxu0
    %v3862 = vadd.f32 0.0, %v3861
    %v3863 = vpop.f32.mrb[0].mxu0
    %3864 = vdwg.mxu0
    %v3865 = vmax.f32 %v3787, %v3862
    %v3866 = vld [vmem:[%s21] sm:$0xff]
    %v3867 = vld [vmem:[%s21 + $0x8] sm:$0xff]
    %v3869 = vsel %vm3328, %v3865, 0
    %3871 = vmatprep.subr.mxu0 0.0
    %3872 = vmatpush1.msra.mxu0 %v3866
    %3873 = vmatprep.subr.mxu0 0.0
    %3874 = vmatpush1.msra.mxu0 %v3867
    %3875 = vmatprep.subr.mxu0 0.0
    %3876 = vmatpush1.msra.mxu0 0.0
    %3877 = vmatprep.subr.mxu0 0.0
    %3878 = vmatpush1.msra.mxu0 0.0
    %3879 = vmatprep.subr.mxu0 0.0
    %3880 = vmatpush1.msra.mxu0 0.0
    %3881 = vmatprep.subr.mxu0 0.0
    %3882 = vmatpush1.msra.mxu0 0.0
    %3883 = vmatprep.subr.mxu0 0.0
    %3884 = vmatpush1.msra.mxu0 0.0
    %3885 = vmatprep.subr.mxu0 0.0
    %3886 = vmatpush1.msra.mxu0 0.0
    %3887 = vmatprep.subr.mxu0 0.0
    %3888 = vmatpush1.msra.mxu0 0.0
    %3889 = vmatprep.subr.mxu0 0.0
    %3890 = vmatpush1.msra.mxu0 0.0
    %3891 = vmatprep.subr.mxu0 0.0
    %3892 = vmatpush1.msra.mxu0 0.0
    %3893 = vmatprep.subr.mxu0 0.0
    %3894 = vmatpush1.msra.mxu0 0.0
    %3895 = vmatprep.subr.mxu0 0.0
    %3896 = vmatpush1.msra.mxu0 0.0
    %3897 = vmatprep.subr.mxu0 0.0
    %3898 = vmatpush1.msra.mxu0 0.0
    %3899 = vmatprep.subr.mxu0 0.0
    %3900 = vmatpush1.msra.mxu0 0.0
    %3901 = vmatprep.subr.mxu0 0.0
    %3902 = vmatpush1.msra.mxu0 0.0
    %3903 = vmatprep.subr.mxu0 0.0
    %3904 = vmatpush1.msra.mxu0 0.0
    %3905 = vmatprep.subr.mxu0 0.0
    %3906 = vmatpush1.msra.mxu0 0.0
    %3907 = vmatprep.subr.mxu0 0.0
    %3908 = vmatpush1.msra.mxu0 0.0
    %3909 = vmatprep.subr.mxu0 0.0
    %3910 = vmatpush1.msra.mxu0 0.0
    %3911 = vmatprep.subr.mxu0 0.0
    %3912 = vmatpush1.msra.mxu0 0.0
    %3913 = vmatprep.subr.mxu0 0.0
    %3914 = vmatpush1.msra.mxu0 0.0
    %3915 = vmatprep.subr.mxu0 0.0
    %3916 = vmatpush1.msra.mxu0 0.0
    %3917 = vmatprep.subr.mxu0 0.0
    %3918 = vmatpush1.msra.mxu0 0.0
    %3919 = vmatprep.subr.mxu0 0.0
    %3920 = vmatpush1.msra.mxu0 0.0
    %3921 = vmatprep.subr.mxu0 0.0
    %3922 = vmatpush1.msra.mxu0 0.0
    %3923 = vmatprep.subr.mxu0 0.0
    %3924 = vmatpush1.msra.mxu0 0.0
    %3925 = vmatprep.subr.mxu0 0.0
    %3926 = vmatpush1.msra.mxu0 0.0
    %3927 = vmatprep.subr.mxu0 0.0
    %3928 = vmatpush1.msra.mxu0 0.0
    %3929 = vmatprep.subr.mxu0 0.0
    %3930 = vmatpush1.msra.mxu0 0.0
    %3931 = vmatprep.subr.mxu0 0.0
    %3932 = vmatpush1.msra.mxu0 0.0
    %3933 = vmatprep.subr.mxu0 0.0
    %3934 = vmatpush1.msra.mxu0 0.0
    %3935 = vmatprep.mubr.f32.mxu0 0.0
    %3936 = vmatmul.mubr.f32.gmra.mrb[0].mxu0 %v3869
    %v3937 = vpop.f32.mrb[0].mxu0
    %v3938 = vadd.f32 0.0, %v3937
    %v3939 = vpop.f32.mrb[0].mxu0
    %3940 = vdwg.mxu0
    %s3941 = scalar_lea.vmem %s21, 16
    %v3942 = vld [vmem:[%s3941] sm:$0xff]
    %v3943 = vld [vmem:[%s3941 + $0x8] sm:$0xff]
    %3944 = vmatprep.subr.mxu0 0.0
    %3945 = vmatpush1.msra.mxu0 %v3942
    %3946 = vmatprep.subr.mxu0 0.0
    %3947 = vmatpush1.msra.mxu0 %v3943
    %3948 = vmatprep.subr.mxu0 0.0
    %3949 = vmatpush1.msra.mxu0 0.0
    %3950 = vmatprep.subr.mxu0 0.0
    %3951 = vmatpush1.msra.mxu0 0.0
    %3952 = vmatprep.subr.mxu0 0.0
    %3953 = vmatpush1.msra.mxu0 0.0
    %3954 = vmatprep.subr.mxu0 0.0
    %3955 = vmatpush1.msra.mxu0 0.0
    %3956 = vmatprep.subr.mxu0 0.0
    %3957 = vmatpush1.msra.mxu0 0.0
    %3958 = vmatprep.subr.mxu0 0.0
    %3959 = vmatpush1.msra.mxu0 0.0
    %3960 = vmatprep.subr.mxu0 0.0
    %3961 = vmatpush1.msra.mxu0 0.0
    %3962 = vmatprep.subr.mxu0 0.0
    %3963 = vmatpush1.msra.mxu0 0.0
    %3964 = vmatprep.subr.mxu0 0.0
    %3965 = vmatpush1.msra.mxu0 0.0
    %3966 = vmatprep.subr.mxu0 0.0
    %3967 = vmatpush1.msra.mxu0 0.0
    %3968 = vmatprep.subr.mxu0 0.0
    %3969 = vmatpush1.msra.mxu0 0.0
    %3970 = vmatprep.subr.mxu0 0.0
    %3971 = vmatpush1.msra.mxu0 0.0
    %3972 = vmatprep.subr.mxu0 0.0
    %3973 = vmatpush1.msra.mxu0 0.0
    %3974 = vmatprep.subr.mxu0 0.0
    %3975 = vmatpush1.msra.mxu0 0.0
    %3976 = vmatprep.subr.mxu0 0.0
    %3977 = vmatpush1.msra.mxu0 0.0
    %3978 = vmatprep.subr.mxu0 0.0
    %3979 = vmatpush1.msra.mxu0 0.0
    %3980 = vmatprep.subr.mxu0 0.0
    %3981 = vmatpush1.msra.mxu0 0.0
    %3982 = vmatprep.subr.mxu0 0.0
    %3983 = vmatpush1.msra.mxu0 0.0
    %3984 = vmatprep.subr.mxu0 0.0
    %3985 = vmatpush1.msra.mxu0 0.0
    %3986 = vmatprep.subr.mxu0 0.0
    %3987 = vmatpush1.msra.mxu0 0.0
    %3988 = vmatprep.subr.mxu0 0.0
    %3989 = vmatpush1.msra.mxu0 0.0
    %3990 = vmatprep.subr.mxu0 0.0
    %3991 = vmatpush1.msra.mxu0 0.0
    %3992 = vmatprep.subr.mxu0 0.0
    %3993 = vmatpush1.msra.mxu0 0.0
    %3994 = vmatprep.subr.mxu0 0.0
    %3995 = vmatpush1.msra.mxu0 0.0
    %3996 = vmatprep.subr.mxu0 0.0
    %3997 = vmatpush1.msra.mxu0 0.0
    %3998 = vmatprep.subr.mxu0 0.0
    %3999 = vmatpush1.msra.mxu0 0.0
    %4000 = vmatprep.subr.mxu0 0.0
    %4001 = vmatpush1.msra.mxu0 0.0
    %4002 = vmatprep.subr.mxu0 0.0
    %4003 = vmatpush1.msra.mxu0 0.0
    %4004 = vmatprep.subr.mxu0 0.0
    %4005 = vmatpush1.msra.mxu0 0.0
    %4006 = vmatprep.subr.mxu0 0.0
    %4007 = vmatpush1.msra.mxu0 0.0
    %4008 = vmatprep.mubr.f32.mxu0 0.0
    %4009 = vmatmul.mubr.f32.gmra.mrb[0].mxu0 %v3869
    %v4010 = vpop.f32.mrb[0].mxu0
    %v4011 = vadd.f32 0.0, %v4010
    %v4012 = vpop.f32.mrb[0].mxu0
    %4013 = vdwg.mxu0
    %v4014 = vmax.f32 %v3938, %v4011
    %v4015 = vld [vmem:[#allocation14] sm:$0xff]
    %v4016 = vld [vmem:[#allocation16] sm:$0x1]
    %v4018 = vlaneseq
    %v4019 = vshrl.u32 %v4018, 7
    %v4020 = vsub.s32 0, %v4019
    %v4021 = vrot.slane %v4016, %v4020
    %v4024 = vsel %vm3018, %v4014, 0
    %4026 = vmatprep.subr.mxu0 0.0
    %4027 = vmatpush1.msra.mxu0 %v4015
    %4028 = vmatprep.subr.mxu0 0.0
    %4029 = vmatpush1.msra.mxu0 0.0
    %4030 = vmatprep.subr.mxu0 0.0
    %4031 = vmatpush1.msra.mxu0 0.0
    %4032 = vmatprep.subr.mxu0 0.0
    %4033 = vmatpush1.msra.mxu0 0.0
    %4034 = vmatprep.subr.mxu0 0.0
    %4035 = vmatpush1.msra.mxu0 0.0
    %4036 = vmatprep.subr.mxu0 0.0
    %4037 = vmatpush1.msra.mxu0 0.0
    %4038 = vmatprep.subr.mxu0 0.0
    %4039 = vmatpush1.msra.mxu0 0.0
    %4040 = vmatprep.subr.mxu0 0.0
    %4041 = vmatpush1.msra.mxu0 0.0
    %4042 = vmatprep.subr.mxu0 0.0
    %4043 = vmatpush1.msra.mxu0 0.0
    %4044 = vmatprep.subr.mxu0 0.0
    %4045 = vmatpush1.msra.mxu0 0.0
    %4046 = vmatprep.subr.mxu0 0.0
    %4047 = vmatpush1.msra.mxu0 0.0
    %4048 = vmatprep.subr.mxu0 0.0
    %4049 = vmatpush1.msra.mxu0 0.0
    %4050 = vmatprep.subr.mxu0 0.0
    %4051 = vmatpush1.msra.mxu0 0.0
    %4052 = vmatprep.subr.mxu0 0.0
    %4053 = vmatpush1.msra.mxu0 0.0
    %4054 = vmatprep.subr.mxu0 0.0
    %4055 = vmatpush1.msra.mxu0 0.0
    %4056 = vmatprep.subr.mxu0 0.0
    %4057 = vmatpush1.msra.mxu0 0.0
    %4058 = vmatprep.subr.mxu0 0.0
    %4059 = vmatpush1.msra.mxu0 0.0
    %4060 = vmatprep.subr.mxu0 0.0
    %4061 = vmatpush1.msra.mxu0 0.0
    %4062 = vmatprep.subr.mxu0 0.0
    %4063 = vmatpush1.msra.mxu0 0.0
    %4064 = vmatprep.subr.mxu0 0.0
    %4065 = vmatpush1.msra.mxu0 0.0
    %4066 = vmatprep.subr.mxu0 0.0
    %4067 = vmatpush1.msra.mxu0 0.0
    %4068 = vmatprep.subr.mxu0 0.0
    %4069 = vmatpush1.msra.mxu0 0.0
    %4070 = vmatprep.subr.mxu0 0.0
    %4071 = vmatpush1.msra.mxu0 0.0
    %4072 = vmatprep.subr.mxu0 0.0
    %4073 = vmatpush1.msra.mxu0 0.0
    %4074 = vmatprep.subr.mxu0 0.0
    %4075 = vmatpush1.msra.mxu0 0.0
    %4076 = vmatprep.subr.mxu0 0.0
    %4077 = vmatpush1.msra.mxu0 0.0
    %4078 = vmatprep.subr.mxu0 0.0
    %4079 = vmatpush1.msra.mxu0 0.0
    %4080 = vmatprep.subr.mxu0 0.0
    %4081 = vmatpush1.msra.mxu0 0.0
    %4082 = vmatprep.subr.mxu0 0.0
    %4083 = vmatpush1.msra.mxu0 0.0
    %4084 = vmatprep.subr.mxu0 0.0
    %4085 = vmatpush1.msra.mxu0 0.0
    %4086 = vmatprep.subr.mxu0 0.0
    %4087 = vmatpush1.msra.mxu0 0.0
    %4088 = vmatprep.subr.mxu0 0.0
    %4089 = vmatpush1.msra.mxu0 0.0
    %4090 = vmatprep.mubr.f32.mxu0 0.0
    %4091 = vmatmul.mubr.f32.gmra.mrb[0].mxu0 %v4024
    %v4092 = vpop.f32.mrb[0].mxu0
    %v4093 = vadd.f32 %v4021, %v4092
    %v4094 = vpop.f32.mrb[0].mxu0
    %4095 = vdwg.mxu0
    %v4096 = vmax.f32 %v4093, 0.0
    %v4097 = vld [vmem:[%s24] sm:$0xff]
    %v4098 = vld [vmem:[%s24 + $0x8] sm:$0xff]
    %v4099 = vld [vmem:[%s24 + $0x10] sm:$0xff]
    %v4100 = vld [vmem:[%s24 + $0x18] sm:$0xff]
    %v4101 = vld [vmem:[#allocation17] sm:$0x1]
    %v4103 = vlaneseq
    %v4104 = vshrl.u32 %v4103, 7
    %v4105 = vsub.s32 0, %v4104
    %v4106 = vrot.slane %v4101, %v4105
    %v4109 = vsel %vm2867, %v4096, 0
    %4111 = vmatprep.subr.mxu0 0.0
    %4112 = vmatpush1.msra.mxu0 %v4097
    %4113 = vmatprep.subr.mxu0 0.0
    %4114 = vmatpush1.msra.mxu0 %v4098
    %4115 = vmatprep.subr.mxu0 0.0
    %4116 = vmatpush1.msra.mxu0 %v4099
    %4117 = vmatprep.subr.mxu0 0.0
    %4118 = vmatpush1.msra.mxu0 %v4100
    %4119 = vmatprep.subr.mxu0 0.0
    %4120 = vmatpush1.msra.mxu0 0.0
    %4121 = vmatprep.subr.mxu0 0.0
    %4122 = vmatpush1.msra.mxu0 0.0
    %4123 = vmatprep.subr.mxu0 0.0
    %4124 = vmatpush1.msra.mxu0 0.0
    %4125 = vmatprep.subr.mxu0 0.0
    %4126 = vmatpush1.msra.mxu0 0.0
    %4127 = vmatprep.subr.mxu0 0.0
    %4128 = vmatpush1.msra.mxu0 0.0
    %4129 = vmatprep.subr.mxu0 0.0
    %4130 = vmatpush1.msra.mxu0 0.0
    %4131 = vmatprep.subr.mxu0 0.0
    %4132 = vmatpush1.msra.mxu0 0.0
    %4133 = vmatprep.subr.mxu0 0.0
    %4134 = vmatpush1.msra.mxu0 0.0
    %4135 = vmatprep.subr.mxu0 0.0
    %4136 = vmatpush1.msra.mxu0 0.0
    %4137 = vmatprep.subr.mxu0 0.0
    %4138 = vmatpush1.msra.mxu0 0.0
    %4139 = vmatprep.subr.mxu0 0.0
    %4140 = vmatpush1.msra.mxu0 0.0
    %4141 = vmatprep.subr.mxu0 0.0
    %4142 = vmatpush1.msra.mxu0 0.0
    %4143 = vmatprep.subr.mxu0 0.0
    %4144 = vmatpush1.msra.mxu0 0.0
    %4145 = vmatprep.subr.mxu0 0.0
    %4146 = vmatpush1.msra.mxu0 0.0
    %4147 = vmatprep.subr.mxu0 0.0
    %4148 = vmatpush1.msra.mxu0 0.0
    %4149 = vmatprep.subr.mxu0 0.0
    %4150 = vmatpush1.msra.mxu0 0.0
    %4151 = vmatprep.subr.mxu0 0.0
    %4152 = vmatpush1.msra.mxu0 0.0
    %4153 = vmatprep.subr.mxu0 0.0
    %4154 = vmatpush1.msra.mxu0 0.0
    %4155 = vmatprep.subr.mxu0 0.0
    %4156 = vmatpush1.msra.mxu0 0.0
    %4157 = vmatprep.subr.mxu0 0.0
    %4158 = vmatpush1.msra.mxu0 0.0
    %4159 = vmatprep.subr.mxu0 0.0
    %4160 = vmatpush1.msra.mxu0 0.0
    %4161 = vmatprep.subr.mxu0 0.0
    %4162 = vmatpush1.msra.mxu0 0.0
    %4163 = vmatprep.subr.mxu0 0.0
    %4164 = vmatpush1.msra.mxu0 0.0
    %4165 = vmatprep.subr.mxu0 0.0
    %4166 = vmatpush1.msra.mxu0 0.0
    %4167 = vmatprep.subr.mxu0 0.0
    %4168 = vmatpush1.msra.mxu0 0.0
    %4169 = vmatprep.subr.mxu0 0.0
    %4170 = vmatpush1.msra.mxu0 0.0
    %4171 = vmatprep.subr.mxu0 0.0
    %4172 = vmatpush1.msra.mxu0 0.0
    %4173 = vmatprep.subr.mxu0 0.0
    %4174 = vmatpush1.msra.mxu0 0.0
    %4175 = vmatprep.mubr.f32.mxu0 0.0
    %4176 = vmatmul.mubr.f32.gmra.mrb[0].mxu0 %v4109
    %v4177 = vpop.f32.mrb[0].mxu0
    %v4178 = vadd.f32 %v4106, %v4177
    %v4179 = vpop.f32.mrb[0].mxu0
    %4180 = vdwg.mxu0
    %v4181 = vmax.f32 %v4178, 0.0
    %v4182 = vld [vmem:[%s26] sm:$0xff]
    %v4183 = vld [vmem:[%s26 + $0x8] sm:$0xff]
    %v4184 = vld [vmem:[%s27] sm:$0x1]
    %v4186 = vlaneseq
    %v4187 = vshrl.u32 %v4186, 7
    %v4188 = vsub.s32 0, %v4187
    %v4189 = vrot.slane %v4184, %v4188
    %v4192 = vsel %vm3328, %v4181, 0
    %4194 = vmatprep.subr.mxu0 0.0
    %4195 = vmatpush1.msra.mxu0 %v4182
    %4196 = vmatprep.subr.mxu0 0.0
    %4197 = vmatpush1.msra.mxu0 %v4183
    %4198 = vmatprep.subr.mxu0 0.0
    %4199 = vmatpush1.msra.mxu0 0.0
    %4200 = vmatprep.subr.mxu0 0.0
    %4201 = vmatpush1.msra.mxu0 0.0
    %4202 = vmatprep.subr.mxu0 0.0
    %4203 = vmatpush1.msra.mxu0 0.0
    %4204 = vmatprep.subr.mxu0 0.0
    %4205 = vmatpush1.msra.mxu0 0.0
    %4206 = vmatprep.subr.mxu0 0.0
    %4207 = vmatpush1.msra.mxu0 0.0
    %4208 = vmatprep.subr.mxu0 0.0
    %4209 = vmatpush1.msra.mxu0 0.0
    %4210 = vmatprep.subr.mxu0 0.0
    %4211 = vmatpush1.msra.mxu0 0.0
    %4212 = vmatprep.subr.mxu0 0.0
    %4213 = vmatpush1.msra.mxu0 0.0
    %4214 = vmatprep.subr.mxu0 0.0
    %4215 = vmatpush1.msra.mxu0 0.0
    %4216 = vmatprep.subr.mxu0 0.0
    %4217 = vmatpush1.msra.mxu0 0.0
    %4218 = vmatprep.subr.mxu0 0.0
    %4219 = vmatpush1.msra.mxu0 0.0
    %4220 = vmatprep.subr.mxu0 0.0
    %4221 = vmatpush1.msra.mxu0 0.0
    %4222 = vmatprep.subr.mxu0 0.0
    %4223 = vmatpush1.msra.mxu0 0.0
    %4224 = vmatprep.subr.mxu0 0.0
    %4225 = vmatpush1.msra.mxu0 0.0
    %4226 = vmatprep.subr.mxu0 0.0
    %4227 = vmatpush1.msra.mxu0 0.0
    %4228 = vmatprep.subr.mxu0 0.0
    %4229 = vmatpush1.msra.mxu0 0.0
    %4230 = vmatprep.subr.mxu0 0.0
    %4231 = vmatpush1.msra.mxu0 0.0
    %4232 = vmatprep.subr.mxu0 0.0
    %4233 = vmatpush1.msra.mxu0 0.0
    %4234 = vmatprep.subr.mxu0 0.0
    %4235 = vmatpush1.msra.mxu0 0.0
    %4236 = vmatprep.subr.mxu0 0.0
    %4237 = vmatpush1.msra.mxu0 0.0
    %4238 = vmatprep.subr.mxu0 0.0
    %4239 = vmatpush1.msra.mxu0 0.0
    %4240 = vmatprep.subr.mxu0 0.0
    %4241 = vmatpush1.msra.mxu0 0.0
    %4242 = vmatprep.subr.mxu0 0.0
    %4243 = vmatpush1.msra.mxu0 0.0
    %4244 = vmatprep.subr.mxu0 0.0
    %4245 = vmatpush1.msra.mxu0 0.0
    %4246 = vmatprep.subr.mxu0 0.0
    %4247 = vmatpush1.msra.mxu0 0.0
    %4248 = vmatprep.subr.mxu0 0.0
    %4249 = vmatpush1.msra.mxu0 0.0
    %4250 = vmatprep.subr.mxu0 0.0
    %4251 = vmatpush1.msra.mxu0 0.0
    %4252 = vmatprep.subr.mxu0 0.0
    %4253 = vmatpush1.msra.mxu0 0.0
    %4254 = vmatprep.subr.mxu0 0.0
    %4255 = vmatpush1.msra.mxu0 0.0
    %4256 = vmatprep.subr.mxu0 0.0
    %4257 = vmatpush1.msra.mxu0 0.0
    %4258 = vmatprep.mubr.f32.mxu0 0.0
    %4259 = vmatmul.mubr.f32.gmra.mrb[0].mxu0 %v4192
    %v4260 = vpop.f32.mrb[0].mxu0
    %v4261 = vadd.f32 %v4189, %v4260
    %v4262 = vpop.f32.mrb[0].mxu0
    %4263 = vdwg.mxu0
    %4264 = vst [vmem:[#allocation19] sm:$0x3] %v4261
    // Predicated region
    $region154: #{cnn_forward.1} parent=1 // pred_check
      _
    $region155: #{cnn_forward.1} parent=1 // pred_check_branch
      %4266 = sbr.rel (0) target = $region157
    $region156: #{cnn_forward.1} parent=1 // pred_region
      %s4268 = ssub.s32 32, 32
      %4269 = vsyncadd [#allocation4], %s4268
      %s4271 = sshll.u32 [#allocation19], 4
      %s4272 = int_to_ptr.vmem [resolvable:$true] %s4271
      %4274 = dma.vmem_to_hbm [thread:$0]  %s4272, 32, %s28, [#allocation4]
    $region157: #{cnn_forward.1} parent=1 // pred_fallthru
      _
    // Predicated region
    $region158: #{cnn_forward.1} parent=1 // pred_check
      _
    $region159: #{cnn_forward.1} parent=1 // pred_check_branch
      %4276 = sbr.rel (0) target = $region161
    $region160: #{cnn_forward.1} parent=1 // pred_region
      %4277 = dma.done [#allocation4], 32
    $region161: #{cnn_forward.1} parent=1 // pred_fallthru
      _
    %4278 = vsyncpa [#allocation3], 1
    %4279 = vsyncpa [#allocation6], 1
    %4280 = vsyncpa [#allocation9], 1
    %4281 = vsyncpa [#allocation12], 1
    %4282 = vsyncpa [#allocation15], 1
    %4283 = vsyncpa [#allocation18], 1
    %4284 = vsyncpa [#allocation4], 1

</llo_original>
